<compile_context>
chip_gen: v7x
topology: tpu7x:2x2x1
jax: 0.10.0
libtpu: 0.0.40
codegen_flags: <defaults>
</compile_context>

<pallas_src>
import jax
import jax.numpy as jnp
import numpy as np
from jax.experimental import pallas as pl
from jax.experimental.pallas import tpu as pltpu


def _round_up(v, m):
    return ((v + m - 1) // m) * m


def _make_fused_kernel(H, W, C, Cp, G, Bt):
    """Fused kernel body: mfm-conv1 -> mfm-conv2 -> + residual, Bt images/step."""
    Wp, Hp = W + 2, H + 2
    Lp = Hp * Wp                 # flattened padded-image length
    HW = H * W

    def conv_mfm(src, w_ref, b_ref):
        # src: (Cp, Lbuf) cleaned padded activation (channels on sublanes,
        # flat padded spatial on lanes).  9 accumulating MXU matmuls, one per
        # conv tap, each a static lane-shifted view of src.  Returns (C, Lp).
        acc = jnp.zeros((2 * Cp, Lp), jnp.float32) + b_ref[...]
        for k in range(9):
            dy, dx = k // 3, k % 3
            s = G + (dy - 1) * Wp + (dx - 1)          # static lane offset
            acc = acc + jnp.dot(w_ref[k], src[:, s:s + Lp],
                                preferred_element_type=jnp.float32)
        # MFM: max over the two output-channel halves; split at Cp (multiple
        # of 8) is sublane-tile aligned.
        return jnp.maximum(acc[:C], acc[Cp:Cp + C])

    def kernel(x_ref, w1_ref, b1_ref, w2_ref, b2_ref, mask_ref, out_ref, buf_ref):
        valid = mask_ref[...] > 0.5                    # (Cp, Lbuf) interior mask
        for b in range(Bt):
            xb = x_ref[b]                              # (C, HW) lane-dense load

            # Place real pixels into the flat padded scratch (row stride W+2).
            # Halo / guard positions are NOT bulk-zeroed; the select below
            # forces them to exact zeros (border handling without a full-
            # buffer zero fill per grid step).
            for h in range(H):
                dst = G + (h + 1) * Wp + 1
                buf_ref[:C, dst:dst + W] = (
                    xb[:, h * W:(h + 1) * W].astype(buf_ref.dtype))
            src1 = jnp.where(valid, buf_ref[...], 0.0)
            out1 = conv_mfm(src1, w1_ref, b1_ref)                  # (C, Lp)

            # Reuse the SAME scratch as conv2's padded input (conv1's padded
            # copy of x is dead here); junk at halo positions is masked away.
            buf_ref[:C, G:G + Lp] = out1
            src2 = jnp.where(valid, buf_ref[...], 0.0)
            out2 = conv_mfm(src2, w2_ref, b2_ref)                  # (C, Lp)

            # Extract interior rows, fuse the residual add, store into the
            # lane-dense (C, HW) output block.  (For production W=128 these
            # per-row stores are dense 128-lane stores.)
            for h in range(H):
                p0 = (h + 1) * Wp + 1
                res = out2[:, p0:p0 + W] + xb[:, h * W:(h + 1) * W].astype(
                    jnp.float32)
                out_ref[b, :, h * W:(h + 1) * W] = res.astype(out_ref.dtype)

    return kernel


def residual_block_forward(x_nchw, params, images_per_step=1):
    """ResidualBlock forward. x_nchw: (N, C, H, W) -> (N, C, H, W).

    params: (w1, b1, w2, b2) with w*: (2C, C, 3, 3) PyTorch OIHW, b*: (2C,).
    """
    w1, b1, w2, b2 = params
    N, C, H, W = x_nchw.shape
    HW = H * W
    Wp, Hp = W + 2, H + 2
    Lp = Hp * Wp
    Cp = _round_up(C, 8)                  # sublane-aligned channel padding
    G = _round_up(Wp + 1, 128)            # lane-aligned guard margin
    Lbuf = Lp + 2 * G

    Bt = images_per_step if (images_per_step > 0 and N % images_per_step == 0) else 1

    def prep_w(w_oihw):                   # (2C, C, 3, 3) -> (9, 2Cp, Cp) taps
        wt = jnp.transpose(w_oihw, (2, 3, 0, 1)).reshape(9, 2 * C, C)  # (k, o, ci)
        out = jnp.zeros((9, 2 * Cp, Cp), jnp.float32)
        out = out.at[:, :C, :C].set(wt[:, :C, :])
        out = out.at[:, Cp:Cp + C, :C].set(wt[:, C:, :])
        return out

    def prep_b(bias):                     # (2C,) -> (2Cp, 1)
        out = jnp.zeros((2 * Cp, 1), jnp.float32)
        out = out.at[:C, 0].set(bias[:C])
        out = out.at[Cp:Cp + C, 0].set(bias[C:])
        return out

    # Interior mask over flat padded coords: 1 at real pixels, 0 at halo rows/
    # columns, guard margins and padded channel rows.
    j = np.arange(Lbuf)
    p = j - G
    r = p // Wp
    c = p - r * Wp
    interior = (p >= 0) & (p < Lp) & (r >= 1) & (r <= H) & (c >= 1) & (c <= W)
    mask_np = np.zeros((Cp, Lbuf), np.float32)
    mask_np[:C, :] = interior.astype(np.float32)[None, :]
    mask = jnp.asarray(mask_np)

    x_flat = x_nchw.reshape(N, C, HW)     # free reshape (no HBM transpose)

    vmem_full = pl.BlockSpec(memory_space=pltpu.MemorySpace.VMEM)

    out_flat = pl.pallas_call(
        _make_fused_kernel(H, W, C, Cp, G, Bt),
        out_shape=jax.ShapeDtypeStruct((N, C, HW), x_nchw.dtype),
        grid_spec=pltpu.PrefetchScalarGridSpec(
            num_scalar_prefetch=0,
            grid=(N // Bt,),
            in_specs=[
                pl.BlockSpec((Bt, C, HW), lambda n: (n, 0, 0)),   # x (lane-dense)
                vmem_full,   # w1 taps (9, 2Cp, Cp), resident
                vmem_full,   # b1 (2Cp, 1)
                vmem_full,   # w2 taps
                vmem_full,   # b2
                vmem_full,   # interior mask (Cp, Lbuf)
            ],
            out_specs=pl.BlockSpec((Bt, C, HW), lambda n: (n, 0, 0)),
            scratch_shapes=[
                pltpu.VMEM((Cp, Lbuf), jnp.float32),  # shared padded buffer
            ],
        ),
        compiler_params=pltpu.CompilerParams(
            dimension_semantics=("parallel",),        # v7x: 2 TCs split the grid
            vmem_limit_bytes=32 * 1024 * 1024,
        ),
    )(x_flat, prep_w(w1), prep_b(b1), prep_w(w2), prep_b(b2), mask)

    return out_flat.reshape(N, C, H, W)


def init_residual_block_params(key, channels):
    """Deterministic synthetic params, PyTorch Conv2d(C, 2C, 3) layout (OIHW)."""
    k1, k2, k3, k4 = jax.random.split(key, 4)
    fan_in = channels * 3 * 3
    scale = 1.0 / jnp.sqrt(fan_in)
    w1 = jax.random.uniform(k1, (2 * channels, channels, 3, 3), jnp.float32,
                            -scale, scale)
    w2 = jax.random.uniform(k2, (2 * channels, channels, 3, 3), jnp.float32,
                            -scale, scale)
    b1 = jax.random.uniform(k3, (2 * channels,), jnp.float32, -scale, scale)
    b2 = jax.random.uniform(k4, (2 * channels,), jnp.float32, -scale, scale)
    return (w1, b1, w2, b2)


def _reference_forward(x_nchw, params):
    """Pure-JAX (XLA conv) reference for correctness check."""
    w1, b1, w2, b2 = params

    def mfm(x, w_oihw, bias):
        w_hwio = jnp.transpose(w_oihw, (2, 3, 1, 0))
        y = jax.lax.conv_general_dilated(
            x, w_hwio, window_strides=(1, 1), padding=((1, 1), (1, 1)),
            dimension_numbers=("NCHW", "HWIO", "NCHW"),
        ) + bias[None, :, None, None]
        c = y.shape[1] // 2
        return jnp.maximum(y[:, :c], y[:, c:])

    return mfm(mfm(x_nchw, w1, b1), w2, b2) + x_nchw


if __name__ == "__main__":
    N, C, H, W = 2, 4, 16, 16
    key = jax.random.PRNGKey(0)
    kx, kp = jax.random.split(key)
    x = jax.random.normal(kx, (N, C, H, W), jnp.float32)
    params = init_residual_block_params(kp, C)

    out = residual_block_forward(x, params)
    out = jax.block_until_ready(out)

    ref = _reference_forward(x, params)
    assert out.shape == (N, C, H, W), out.shape
    assert jnp.allclose(out, ref, atol=1e-4, rtol=1e-4), (
        "mismatch vs reference, max abs err = "
        + str(float(jnp.max(jnp.abs(out - ref)))))

    print("KERNEL_OK")
</pallas_src>

<mosaic_0001>
module attributes {stable_mosaic.version = 11 : i64} {
  func.func @kernel(%arg0: i32, %arg1: memref<1x4x256xf32, #tpu.memory_space<vmem>>, %arg2: memref<9x16x8xf32, #tpu.memory_space<vmem>>, %arg3: memref<16x1xf32, #tpu.memory_space<vmem>>, %arg4: memref<9x16x8xf32, #tpu.memory_space<vmem>>, %arg5: memref<16x1xf32, #tpu.memory_space<vmem>>, %arg6: memref<8x580xf32, #tpu.memory_space<vmem>>, %arg7: memref<1x4x256xf32, #tpu.memory_space<vmem>>, %arg8: memref<8x580xf32, #tpu.memory_space<vmem>>) attributes {dimension_semantics = [#tpu.dimension_semantics<parallel>], iteration_bounds = array<i64: 2>, scalar_prefetch = 0 : i64, scratch_operands = 1 : i64, tpu.core_type = #tpu.core_type<tc>, window_params = [{transform_indices = @transform_0, window_bounds = array<i64: 1, 4, 256>}, {pipeline_mode = #tpu.pipeline_mode<synchronous>, transform_indices = @transform_1, window_bounds = array<i64: 9, 16, 8>}, {pipeline_mode = #tpu.pipeline_mode<synchronous>, transform_indices = @transform_2, window_bounds = array<i64: 16, 1>}, {pipeline_mode = #tpu.pipeline_mode<synchronous>, transform_indices = @transform_3, window_bounds = array<i64: 9, 16, 8>}, {pipeline_mode = #tpu.pipeline_mode<synchronous>, transform_indices = @transform_4, window_bounds = array<i64: 16, 1>}, {pipeline_mode = #tpu.pipeline_mode<synchronous>, transform_indices = @transform_5, window_bounds = array<i64: 8, 580>}, {transform_indices = @transform_6, window_bounds = array<i64: 1, 4, 256>}]} {
    %c0 = arith.constant 0 : index
    %c0_0 = arith.constant 0 : index
    %0 = vector.load %arg6[%c0, %c0_0] : memref<8x580xf32, #tpu.memory_space<vmem>>, vector<8x580xf32>
    %cst = arith.constant 5.000000e-01 : f32
    %1 = vector.broadcast %cst : f32 to vector<8x580xf32>
    %2 = arith.cmpf ogt, %0, %1 : vector<8x580xf32>
    %c0_1 = arith.constant 0 : index
    %c0_2 = arith.constant 0 : index
    %c0_3 = arith.constant 0 : index
    %3 = vector.load %arg1[%c0_1, %c0_2, %c0_3] : memref<1x4x256xf32, #tpu.memory_space<vmem>>, vector<1x4x256xf32>
    %4 = vector.shape_cast %3 : vector<1x4x256xf32> to vector<4x256xf32>
    %5 = vector.extract_strided_slice %4 {offsets = [0, 0], sizes = [4, 16], strides = [1, 1]} : vector<4x256xf32> to vector<4x16xf32>
    %c0_4 = arith.constant 0 : index
    %c147 = arith.constant 147 : index
    %6 = vector.load %arg8[%c0_4, %c147] : memref<8x580xf32, #tpu.memory_space<vmem>>, vector<4x16xf32>
    tpu.vector_store %arg8[%c0_4, %c147], %5 {strides = array<i32>} : memref<8x580xf32, #tpu.memory_space<vmem>>, vector<4x16xf32>,
    %7 = vector.extract_strided_slice %4 {offsets = [0, 16], sizes = [4, 16], strides = [1, 1]} : vector<4x256xf32> to vector<4x16xf32>
    %c0_5 = arith.constant 0 : index
    %c165 = arith.constant 165 : index
    %8 = vector.load %arg8[%c0_5, %c165] : memref<8x580xf32, #tpu.memory_space<vmem>>, vector<4x16xf32>
    tpu.vector_store %arg8[%c0_5, %c165], %7 {strides = array<i32>} : memref<8x580xf32, #tpu.memory_space<vmem>>, vector<4x16xf32>,
    %9 = vector.extract_strided_slice %4 {offsets = [0, 32], sizes = [4, 16], strides = [1, 1]} : vector<4x256xf32> to vector<4x16xf32>
    %c0_6 = arith.constant 0 : index
    %c183 = arith.constant 183 : index
    %10 = vector.load %arg8[%c0_6, %c183] : memref<8x580xf32, #tpu.memory_space<vmem>>, vector<4x16xf32>
    tpu.vector_store %arg8[%c0_6, %c183], %9 {strides = array<i32>} : memref<8x580xf32, #tpu.memory_space<vmem>>, vector<4x16xf32>,
    %11 = vector.extract_strided_slice %4 {offsets = [0, 48], sizes = [4, 16], strides = [1, 1]} : vector<4x256xf32> to vector<4x16xf32>
    %c0_7 = arith.constant 0 : index
    %c201 = arith.constant 201 : index
    %12 = vector.load %arg8[%c0_7, %c201] : memref<8x580xf32, #tpu.memory_space<vmem>>, vector<4x16xf32>
    tpu.vector_store %arg8[%c0_7, %c201], %11 {strides = array<i32>} : memref<8x580xf32, #tpu.memory_space<vmem>>, vector<4x16xf32>,
    %13 = vector.extract_strided_slice %4 {offsets = [0, 64], sizes = [4, 16], strides = [1, 1]} : vector<4x256xf32> to vector<4x16xf32>
    %c0_8 = arith.constant 0 : index
    %c219 = arith.constant 219 : index
    %14 = vector.load %arg8[%c0_8, %c219] : memref<8x580xf32, #tpu.memory_space<vmem>>, vector<4x16xf32>
    tpu.vector_store %arg8[%c0_8, %c219], %13 {strides = array<i32>} : memref<8x580xf32, #tpu.memory_space<vmem>>, vector<4x16xf32>,
    %15 = vector.extract_strided_slice %4 {offsets = [0, 80], sizes = [4, 16], strides = [1, 1]} : vector<4x256xf32> to vector<4x16xf32>
    %c0_9 = arith.constant 0 : index
    %c237 = arith.constant 237 : index
    %16 = vector.load %arg8[%c0_9, %c237] : memref<8x580xf32, #tpu.memory_space<vmem>>, vector<4x16xf32>
    tpu.vector_store %arg8[%c0_9, %c237], %15 {strides = array<i32>} : memref<8x580xf32, #tpu.memory_space<vmem>>, vector<4x16xf32>,
    %17 = vector.extract_strided_slice %4 {offsets = [0, 96], sizes = [4, 16], strides = [1, 1]} : vector<4x256xf32> to vector<4x16xf32>
    %c0_10 = arith.constant 0 : index
    %c255 = arith.constant 255 : index
    %18 = vector.load %arg8[%c0_10, %c255] : memref<8x580xf32, #tpu.memory_space<vmem>>, vector<4x16xf32>
    tpu.vector_store %arg8[%c0_10, %c255], %17 {strides = array<i32>} : memref<8x580xf32, #tpu.memory_space<vmem>>, vector<4x16xf32>,
    %19 = vector.extract_strided_slice %4 {offsets = [0, 112], sizes = [4, 16], strides = [1, 1]} : vector<4x256xf32> to vector<4x16xf32>
    %c0_11 = arith.constant 0 : index
    %c273 = arith.constant 273 : index
    %20 = vector.load %arg8[%c0_11, %c273] : memref<8x580xf32, #tpu.memory_space<vmem>>, vector<4x16xf32>
    tpu.vector_store %arg8[%c0_11, %c273], %19 {strides = array<i32>} : memref<8x580xf32, #tpu.memory_space<vmem>>, vector<4x16xf32>,
    %21 = vector.extract_strided_slice %4 {offsets = [0, 128], sizes = [4, 16], strides = [1, 1]} : vector<4x256xf32> to vector<4x16xf32>
    %c0_12 = arith.constant 0 : index
    %c291 = arith.constant 291 : index
    %22 = vector.load %arg8[%c0_12, %c291] : memref<8x580xf32, #tpu.memory_space<vmem>>, vector<4x16xf32>
    tpu.vector_store %arg8[%c0_12, %c291], %21 {strides = array<i32>} : memref<8x580xf32, #tpu.memory_space<vmem>>, vector<4x16xf32>,
    %23 = vector.extract_strided_slice %4 {offsets = [0, 144], sizes = [4, 16], strides = [1, 1]} : vector<4x256xf32> to vector<4x16xf32>
    %c0_13 = arith.constant 0 : index
    %c309 = arith.constant 309 : index
    %24 = vector.load %arg8[%c0_13, %c309] : memref<8x580xf32, #tpu.memory_space<vmem>>, vector<4x16xf32>
    tpu.vector_store %arg8[%c0_13, %c309], %23 {strides = array<i32>} : memref<8x580xf32, #tpu.memory_space<vmem>>, vector<4x16xf32>,
    %25 = vector.extract_strided_slice %4 {offsets = [0, 160], sizes = [4, 16], strides = [1, 1]} : vector<4x256xf32> to vector<4x16xf32>
    %c0_14 = arith.constant 0 : index
    %c327 = arith.constant 327 : index
    %26 = vector.load %arg8[%c0_14, %c327] : memref<8x580xf32, #tpu.memory_space<vmem>>, vector<4x16xf32>
    tpu.vector_store %arg8[%c0_14, %c327], %25 {strides = array<i32>} : memref<8x580xf32, #tpu.memory_space<vmem>>, vector<4x16xf32>,
    %27 = vector.extract_strided_slice %4 {offsets = [0, 176], sizes = [4, 16], strides = [1, 1]} : vector<4x256xf32> to vector<4x16xf32>
    %c0_15 = arith.constant 0 : index
    %c345 = arith.constant 345 : index
    %28 = vector.load %arg8[%c0_15, %c345] : memref<8x580xf32, #tpu.memory_space<vmem>>, vector<4x16xf32>
    tpu.vector_store %arg8[%c0_15, %c345], %27 {strides = array<i32>} : memref<8x580xf32, #tpu.memory_space<vmem>>, vector<4x16xf32>,
    %29 = vector.extract_strided_slice %4 {offsets = [0, 192], sizes = [4, 16], strides = [1, 1]} : vector<4x256xf32> to vector<4x16xf32>
    %c0_16 = arith.constant 0 : index
    %c363 = arith.constant 363 : index
    %30 = vector.load %arg8[%c0_16, %c363] : memref<8x580xf32, #tpu.memory_space<vmem>>, vector<4x16xf32>
    tpu.vector_store %arg8[%c0_16, %c363], %29 {strides = array<i32>} : memref<8x580xf32, #tpu.memory_space<vmem>>, vector<4x16xf32>,
    %31 = vector.extract_strided_slice %4 {offsets = [0, 208], sizes = [4, 16], strides = [1, 1]} : vector<4x256xf32> to vector<4x16xf32>
    %c0_17 = arith.constant 0 : index
    %c381 = arith.constant 381 : index
    %32 = vector.load %arg8[%c0_17, %c381] : memref<8x580xf32, #tpu.memory_space<vmem>>, vector<4x16xf32>
    tpu.vector_store %arg8[%c0_17, %c381], %31 {strides = array<i32>} : memref<8x580xf32, #tpu.memory_space<vmem>>, vector<4x16xf32>,
    %33 = vector.extract_strided_slice %4 {offsets = [0, 224], sizes = [4, 16], strides = [1, 1]} : vector<4x256xf32> to vector<4x16xf32>
    %c0_18 = arith.constant 0 : index
    %c399 = arith.constant 399 : index
    %34 = vector.load %arg8[%c0_18, %c399] : memref<8x580xf32, #tpu.memory_space<vmem>>, vector<4x16xf32>
    tpu.vector_store %arg8[%c0_18, %c399], %33 {strides = array<i32>} : memref<8x580xf32, #tpu.memory_space<vmem>>, vector<4x16xf32>,
    %35 = vector.extract_strided_slice %4 {offsets = [0, 240], sizes = [4, 16], strides = [1, 1]} : vector<4x256xf32> to vector<4x16xf32>
    %c0_19 = arith.constant 0 : index
    %c417 = arith.constant 417 : index
    %36 = vector.load %arg8[%c0_19, %c417] : memref<8x580xf32, #tpu.memory_space<vmem>>, vector<4x16xf32>
    tpu.vector_store %arg8[%c0_19, %c417], %35 {strides = array<i32>} : memref<8x580xf32, #tpu.memory_space<vmem>>, vector<4x16xf32>,
    %c0_20 = arith.constant 0 : index
    %c0_21 = arith.constant 0 : index
    %37 = vector.load %arg8[%c0_20, %c0_21] : memref<8x580xf32, #tpu.memory_space<vmem>>, vector<8x580xf32>
    %cst_22 = arith.constant 0.000000e+00 : f32
    %38 = vector.broadcast %cst_22 : f32 to vector<8x580xf32>
    %39 = arith.select %2, %37, %38 : vector<8x580xi1>, vector<8x580xf32>
    %cst_23 = arith.constant 0.000000e+00 : f32
    %40 = vector.broadcast %cst_23 : f32 to vector<16x324xf32>
    %c0_24 = arith.constant 0 : index
    %c0_25 = arith.constant 0 : index
    %41 = vector.load %arg3[%c0_24, %c0_25] : memref<16x1xf32, #tpu.memory_space<vmem>>, vector<16x1xf32>
    %42 = vector.broadcast %41 : vector<16x1xf32> to vector<16x324xf32>
    %43 = arith.addf %40, %42 : vector<16x324xf32>
    %c0_26 = arith.constant 0 : index
    %c0_27 = arith.constant 0 : index
    %c0_28 = arith.constant 0 : index
    %44 = vector.load %arg2[%c0_26, %c0_27, %c0_28] : memref<9x16x8xf32, #tpu.memory_space<vmem>>, vector<1x16x8xf32>
    %45 = vector.shape_cast %44 : vector<1x16x8xf32> to vector<16x8xf32>
    %46 = vector.extract_strided_slice %39 {offsets = [0, 109], sizes = [8, 324], strides = [1, 1]} : vector<8x580xf32> to vector<8x324xf32>
    %cst_29 = arith.constant dense<0.000000e+00> : vector<16x324xf32>
    %47 = tpu.matmul %45, %46, %cst_29 {dimension_numbers = #tpu.dot_dimension_numbers<[1], [0], [0], [1], [0, 0, 1, 1], [], []>} : vector<16x8xf32>, vector<8x324xf32>, vector<16x324xf32> -> vector<16x324xf32>
    %48 = arith.addf %43, %47 : vector<16x324xf32>
    %c1 = arith.constant 1 : index
    %c0_30 = arith.constant 0 : index
    %c0_31 = arith.constant 0 : index
    %49 = vector.load %arg2[%c1, %c0_30, %c0_31] : memref<9x16x8xf32, #tpu.memory_space<vmem>>, vector<1x16x8xf32>
    %50 = vector.shape_cast %49 : vector<1x16x8xf32> to vector<16x8xf32>
    %51 = vector.extract_strided_slice %39 {offsets = [0, 110], sizes = [8, 324], strides = [1, 1]} : vector<8x580xf32> to vector<8x324xf32>
    %cst_32 = arith.constant dense<0.000000e+00> : vector<16x324xf32>
    %52 = tpu.matmul %50, %51, %cst_32 {dimension_numbers = #tpu.dot_dimension_numbers<[1], [0], [0], [1], [0, 0, 1, 1], [], []>} : vector<16x8xf32>, vector<8x324xf32>, vector<16x324xf32> -> vector<16x324xf32>
    %53 = arith.addf %48, %52 : vector<16x324xf32>
    %c2 = arith.constant 2 : index
    %c0_33 = arith.constant 0 : index
    %c0_34 = arith.constant 0 : index
    %54 = vector.load %arg2[%c2, %c0_33, %c0_34] : memref<9x16x8xf32, #tpu.memory_space<vmem>>, vector<1x16x8xf32>
    %55 = vector.shape_cast %54 : vector<1x16x8xf32> to vector<16x8xf32>
    %56 = vector.extract_strided_slice %39 {offsets = [0, 111], sizes = [8, 324], strides = [1, 1]} : vector<8x580xf32> to vector<8x324xf32>
    %cst_35 = arith.constant dense<0.000000e+00> : vector<16x324xf32>
    %57 = tpu.matmul %55, %56, %cst_35 {dimension_numbers = #tpu.dot_dimension_numbers<[1], [0], [0], [1], [0, 0, 1, 1], [], []>} : vector<16x8xf32>, vector<8x324xf32>, vector<16x324xf32> -> vector<16x324xf32>
    %58 = arith.addf %53, %57 : vector<16x324xf32>
    %c3 = arith.constant 3 : index
    %c0_36 = arith.constant 0 : index
    %c0_37 = arith.constant 0 : index
    %59 = vector.load %arg2[%c3, %c0_36, %c0_37] : memref<9x16x8xf32, #tpu.memory_space<vmem>>, vector<1x16x8xf32>
    %60 = vector.shape_cast %59 : vector<1x16x8xf32> to vector<16x8xf32>
    %61 = vector.extract_strided_slice %39 {offsets = [0, 127], sizes = [8, 324], strides = [1, 1]} : vector<8x580xf32> to vector<8x324xf32>
    %cst_38 = arith.constant dense<0.000000e+00> : vector<16x324xf32>
    %62 = tpu.matmul %60, %61, %cst_38 {dimension_numbers = #tpu.dot_dimension_numbers<[1], [0], [0], [1], [0, 0, 1, 1], [], []>} : vector<16x8xf32>, vector<8x324xf32>, vector<16x324xf32> -> vector<16x324xf32>
    %63 = arith.addf %58, %62 : vector<16x324xf32>
    %c4 = arith.constant 4 : index
    %c0_39 = arith.constant 0 : index
    %c0_40 = arith.constant 0 : index
    %64 = vector.load %arg2[%c4, %c0_39, %c0_40] : memref<9x16x8xf32, #tpu.memory_space<vmem>>, vector<1x16x8xf32>
    %65 = vector.shape_cast %64 : vector<1x16x8xf32> to vector<16x8xf32>
    %66 = vector.extract_strided_slice %39 {offsets = [0, 128], sizes = [8, 324], strides = [1, 1]} : vector<8x580xf32> to vector<8x324xf32>
    %cst_41 = arith.constant dense<0.000000e+00> : vector<16x324xf32>
    %67 = tpu.matmul %65, %66, %cst_41 {dimension_numbers = #tpu.dot_dimension_numbers<[1], [0], [0], [1], [0, 0, 1, 1], [], []>} : vector<16x8xf32>, vector<8x324xf32>, vector<16x324xf32> -> vector<16x324xf32>
    %68 = arith.addf %63, %67 : vector<16x324xf32>
    %c5 = arith.constant 5 : index
    %c0_42 = arith.constant 0 : index
    %c0_43 = arith.constant 0 : index
    %69 = vector.load %arg2[%c5, %c0_42, %c0_43] : memref<9x16x8xf32, #tpu.memory_space<vmem>>, vector<1x16x8xf32>
    %70 = vector.shape_cast %69 : vector<1x16x8xf32> to vector<16x8xf32>
    %71 = vector.extract_strided_slice %39 {offsets = [0, 129], sizes = [8, 324], strides = [1, 1]} : vector<8x580xf32> to vector<8x324xf32>
    %cst_44 = arith.constant dense<0.000000e+00> : vector<16x324xf32>
    %72 = tpu.matmul %70, %71, %cst_44 {dimension_numbers = #tpu.dot_dimension_numbers<[1], [0], [0], [1], [0, 0, 1, 1], [], []>} : vector<16x8xf32>, vector<8x324xf32>, vector<16x324xf32> -> vector<16x324xf32>
    %73 = arith.addf %68, %72 : vector<16x324xf32>
    %c6 = arith.constant 6 : index
    %c0_45 = arith.constant 0 : index
    %c0_46 = arith.constant 0 : index
    %74 = vector.load %arg2[%c6, %c0_45, %c0_46] : memref<9x16x8xf32, #tpu.memory_space<vmem>>, vector<1x16x8xf32>
    %75 = vector.shape_cast %74 : vector<1x16x8xf32> to vector<16x8xf32>
    %76 = vector.extract_strided_slice %39 {offsets = [0, 145], sizes = [8, 324], strides = [1, 1]} : vector<8x580xf32> to vector<8x324xf32>
    %cst_47 = arith.constant dense<0.000000e+00> : vector<16x324xf32>
    %77 = tpu.matmul %75, %76, %cst_47 {dimension_numbers = #tpu.dot_dimension_numbers<[1], [0], [0], [1], [0, 0, 1, 1], [], []>} : vector<16x8xf32>, vector<8x324xf32>, vector<16x324xf32> -> vector<16x324xf32>
    %78 = arith.addf %73, %77 : vector<16x324xf32>
    %c7 = arith.constant 7 : index
    %c0_48 = arith.constant 0 : index
    %c0_49 = arith.constant 0 : index
    %79 = vector.load %arg2[%c7, %c0_48, %c0_49] : memref<9x16x8xf32, #tpu.memory_space<vmem>>, vector<1x16x8xf32>
    %80 = vector.shape_cast %79 : vector<1x16x8xf32> to vector<16x8xf32>
    %81 = vector.extract_strided_slice %39 {offsets = [0, 146], sizes = [8, 324], strides = [1, 1]} : vector<8x580xf32> to vector<8x324xf32>
    %cst_50 = arith.constant dense<0.000000e+00> : vector<16x324xf32>
    %82 = tpu.matmul %80, %81, %cst_50 {dimension_numbers = #tpu.dot_dimension_numbers<[1], [0], [0], [1], [0, 0, 1, 1], [], []>} : vector<16x8xf32>, vector<8x324xf32>, vector<16x324xf32> -> vector<16x324xf32>
    %83 = arith.addf %78, %82 : vector<16x324xf32>
    %c8 = arith.constant 8 : index
    %c0_51 = arith.constant 0 : index
    %c0_52 = arith.constant 0 : index
    %84 = vector.load %arg2[%c8, %c0_51, %c0_52] : memref<9x16x8xf32, #tpu.memory_space<vmem>>, vector<1x16x8xf32>
    %85 = vector.shape_cast %84 : vector<1x16x8xf32> to vector<16x8xf32>
    %86 = vector.extract_strided_slice %39 {offsets = [0, 147], sizes = [8, 324], strides = [1, 1]} : vector<8x580xf32> to vector<8x324xf32>
    %cst_53 = arith.constant dense<0.000000e+00> : vector<16x324xf32>
    %87 = tpu.matmul %85, %86, %cst_53 {dimension_numbers = #tpu.dot_dimension_numbers<[1], [0], [0], [1], [0, 0, 1, 1], [], []>} : vector<16x8xf32>, vector<8x324xf32>, vector<16x324xf32> -> vector<16x324xf32>
    %88 = arith.addf %83, %87 : vector<16x324xf32>
    %89 = vector.extract_strided_slice %88 {offsets = [0, 0], sizes = [4, 324], strides = [1, 1]} : vector<16x324xf32> to vector<4x324xf32>
    %90 = vector.extract_strided_slice %88 {offsets = [8, 0], sizes = [4, 324], strides = [1, 1]} : vector<16x324xf32> to vector<4x324xf32>
    %91 = arith.maximumf %89, %90 : vector<4x324xf32>
    %c0_54 = arith.constant 0 : index
    %c128 = arith.constant 128 : index
    %92 = vector.load %arg8[%c0_54, %c128] : memref<8x580xf32, #tpu.memory_space<vmem>>, vector<4x324xf32>
    tpu.vector_store %arg8[%c0_54, %c128], %91 {strides = array<i32>} : memref<8x580xf32, #tpu.memory_space<vmem>>, vector<4x324xf32>,
    %c0_55 = arith.constant 0 : index
    %c0_56 = arith.constant 0 : index
    %93 = vector.load %arg8[%c0_55, %c0_56] : memref<8x580xf32, #tpu.memory_space<vmem>>, vector<8x580xf32>
    %cst_57 = arith.constant 0.000000e+00 : f32
    %94 = vector.broadcast %cst_57 : f32 to vector<8x580xf32>
    %95 = arith.select %2, %93, %94 : vector<8x580xi1>, vector<8x580xf32>
    %cst_58 = arith.constant 0.000000e+00 : f32
    %96 = vector.broadcast %cst_58 : f32 to vector<16x324xf32>
    %c0_59 = arith.constant 0 : index
    %c0_60 = arith.constant 0 : index
    %97 = vector.load %arg5[%c0_59, %c0_60] : memref<16x1xf32, #tpu.memory_space<vmem>>, vector<16x1xf32>
    %98 = vector.broadcast %97 : vector<16x1xf32> to vector<16x324xf32>
    %99 = arith.addf %96, %98 : vector<16x324xf32>
    %c0_61 = arith.constant 0 : index
    %c0_62 = arith.constant 0 : index
    %c0_63 = arith.constant 0 : index
    %100 = vector.load %arg4[%c0_61, %c0_62, %c0_63] : memref<9x16x8xf32, #tpu.memory_space<vmem>>, vector<1x16x8xf32>
    %101 = vector.shape_cast %100 : vector<1x16x8xf32> to vector<16x8xf32>
    %102 = vector.extract_strided_slice %95 {offsets = [0, 109], sizes = [8, 324], strides = [1, 1]} : vector<8x580xf32> to vector<8x324xf32>
    %cst_64 = arith.constant dense<0.000000e+00> : vector<16x324xf32>
    %103 = tpu.matmul %101, %102, %cst_64 {dimension_numbers = #tpu.dot_dimension_numbers<[1], [0], [0], [1], [0, 0, 1, 1], [], []>} : vector<16x8xf32>, vector<8x324xf32>, vector<16x324xf32> -> vector<16x324xf32>
    %104 = arith.addf %99, %103 : vector<16x324xf32>
    %c1_65 = arith.constant 1 : index
    %c0_66 = arith.constant 0 : index
    %c0_67 = arith.constant 0 : index
    %105 = vector.load %arg4[%c1_65, %c0_66, %c0_67] : memref<9x16x8xf32, #tpu.memory_space<vmem>>, vector<1x16x8xf32>
    %106 = vector.shape_cast %105 : vector<1x16x8xf32> to vector<16x8xf32>
    %107 = vector.extract_strided_slice %95 {offsets = [0, 110], sizes = [8, 324], strides = [1, 1]} : vector<8x580xf32> to vector<8x324xf32>
    %cst_68 = arith.constant dense<0.000000e+00> : vector<16x324xf32>
    %108 = tpu.matmul %106, %107, %cst_68 {dimension_numbers = #tpu.dot_dimension_numbers<[1], [0], [0], [1], [0, 0, 1, 1], [], []>} : vector<16x8xf32>, vector<8x324xf32>, vector<16x324xf32> -> vector<16x324xf32>
    %109 = arith.addf %104, %108 : vector<16x324xf32>
    %c2_69 = arith.constant 2 : index
    %c0_70 = arith.constant 0 : index
    %c0_71 = arith.constant 0 : index
    %110 = vector.load %arg4[%c2_69, %c0_70, %c0_71] : memref<9x16x8xf32, #tpu.memory_space<vmem>>, vector<1x16x8xf32>
    %111 = vector.shape_cast %110 : vector<1x16x8xf32> to vector<16x8xf32>
    %112 = vector.extract_strided_slice %95 {offsets = [0, 111], sizes = [8, 324], strides = [1, 1]} : vector<8x580xf32> to vector<8x324xf32>
    %cst_72 = arith.constant dense<0.000000e+00> : vector<16x324xf32>
    %113 = tpu.matmul %111, %112, %cst_72 {dimension_numbers = #tpu.dot_dimension_numbers<[1], [0], [0], [1], [0, 0, 1, 1], [], []>} : vector<16x8xf32>, vector<8x324xf32>, vector<16x324xf32> -> vector<16x324xf32>
    %114 = arith.addf %109, %113 : vector<16x324xf32>
    %c3_73 = arith.constant 3 : index
    %c0_74 = arith.constant 0 : index
    %c0_75 = arith.constant 0 : index
    %115 = vector.load %arg4[%c3_73, %c0_74, %c0_75] : memref<9x16x8xf32, #tpu.memory_space<vmem>>, vector<1x16x8xf32>
    %116 = vector.shape_cast %115 : vector<1x16x8xf32> to vector<16x8xf32>
    %117 = vector.extract_strided_slice %95 {offsets = [0, 127], sizes = [8, 324], strides = [1, 1]} : vector<8x580xf32> to vector<8x324xf32>
    %cst_76 = arith.constant dense<0.000000e+00> : vector<16x324xf32>
    %118 = tpu.matmul %116, %117, %cst_76 {dimension_numbers = #tpu.dot_dimension_numbers<[1], [0], [0], [1], [0, 0, 1, 1], [], []>} : vector<16x8xf32>, vector<8x324xf32>, vector<16x324xf32> -> vector<16x324xf32>
    %119 = arith.addf %114, %118 : vector<16x324xf32>
    %c4_77 = arith.constant 4 : index
    %c0_78 = arith.constant 0 : index
    %c0_79 = arith.constant 0 : index
    %120 = vector.load %arg4[%c4_77, %c0_78, %c0_79] : memref<9x16x8xf32, #tpu.memory_space<vmem>>, vector<1x16x8xf32>
    %121 = vector.shape_cast %120 : vector<1x16x8xf32> to vector<16x8xf32>
    %122 = vector.extract_strided_slice %95 {offsets = [0, 128], sizes = [8, 324], strides = [1, 1]} : vector<8x580xf32> to vector<8x324xf32>
    %cst_80 = arith.constant dense<0.000000e+00> : vector<16x324xf32>
    %123 = tpu.matmul %121, %122, %cst_80 {dimension_numbers = #tpu.dot_dimension_numbers<[1], [0], [0], [1], [0, 0, 1, 1], [], []>} : vector<16x8xf32>, vector<8x324xf32>, vector<16x324xf32> -> vector<16x324xf32>
    %124 = arith.addf %119, %123 : vector<16x324xf32>
    %c5_81 = arith.constant 5 : index
    %c0_82 = arith.constant 0 : index
    %c0_83 = arith.constant 0 : index
    %125 = vector.load %arg4[%c5_81, %c0_82, %c0_83] : memref<9x16x8xf32, #tpu.memory_space<vmem>>, vector<1x16x8xf32>
    %126 = vector.shape_cast %125 : vector<1x16x8xf32> to vector<16x8xf32>
    %127 = vector.extract_strided_slice %95 {offsets = [0, 129], sizes = [8, 324], strides = [1, 1]} : vector<8x580xf32> to vector<8x324xf32>
    %cst_84 = arith.constant dense<0.000000e+00> : vector<16x324xf32>
    %128 = tpu.matmul %126, %127, %cst_84 {dimension_numbers = #tpu.dot_dimension_numbers<[1], [0], [0], [1], [0, 0, 1, 1], [], []>} : vector<16x8xf32>, vector<8x324xf32>, vector<16x324xf32> -> vector<16x324xf32>
    %129 = arith.addf %124, %128 : vector<16x324xf32>
    %c6_85 = arith.constant 6 : index
    %c0_86 = arith.constant 0 : index
    %c0_87 = arith.constant 0 : index
    %130 = vector.load %arg4[%c6_85, %c0_86, %c0_87] : memref<9x16x8xf32, #tpu.memory_space<vmem>>, vector<1x16x8xf32>
    %131 = vector.shape_cast %130 : vector<1x16x8xf32> to vector<16x8xf32>
    %132 = vector.extract_strided_slice %95 {offsets = [0, 145], sizes = [8, 324], strides = [1, 1]} : vector<8x580xf32> to vector<8x324xf32>
    %cst_88 = arith.constant dense<0.000000e+00> : vector<16x324xf32>
    %133 = tpu.matmul %131, %132, %cst_88 {dimension_numbers = #tpu.dot_dimension_numbers<[1], [0], [0], [1], [0, 0, 1, 1], [], []>} : vector<16x8xf32>, vector<8x324xf32>, vector<16x324xf32> -> vector<16x324xf32>
    %134 = arith.addf %129, %133 : vector<16x324xf32>
    %c7_89 = arith.constant 7 : index
    %c0_90 = arith.constant 0 : index
    %c0_91 = arith.constant 0 : index
    %135 = vector.load %arg4[%c7_89, %c0_90, %c0_91] : memref<9x16x8xf32, #tpu.memory_space<vmem>>, vector<1x16x8xf32>
    %136 = vector.shape_cast %135 : vector<1x16x8xf32> to vector<16x8xf32>
    %137 = vector.extract_strided_slice %95 {offsets = [0, 146], sizes = [8, 324], strides = [1, 1]} : vector<8x580xf32> to vector<8x324xf32>
    %cst_92 = arith.constant dense<0.000000e+00> : vector<16x324xf32>
    %138 = tpu.matmul %136, %137, %cst_92 {dimension_numbers = #tpu.dot_dimension_numbers<[1], [0], [0], [1], [0, 0, 1, 1], [], []>} : vector<16x8xf32>, vector<8x324xf32>, vector<16x324xf32> -> vector<16x324xf32>
    %139 = arith.addf %134, %138 : vector<16x324xf32>
    %c8_93 = arith.constant 8 : index
    %c0_94 = arith.constant 0 : index
    %c0_95 = arith.constant 0 : index
    %140 = vector.load %arg4[%c8_93, %c0_94, %c0_95] : memref<9x16x8xf32, #tpu.memory_space<vmem>>, vector<1x16x8xf32>
    %141 = vector.shape_cast %140 : vector<1x16x8xf32> to vector<16x8xf32>
    %142 = vector.extract_strided_slice %95 {offsets = [0, 147], sizes = [8, 324], strides = [1, 1]} : vector<8x580xf32> to vector<8x324xf32>
    %cst_96 = arith.constant dense<0.000000e+00> : vector<16x324xf32>
    %143 = tpu.matmul %141, %142, %cst_96 {dimension_numbers = #tpu.dot_dimension_numbers<[1], [0], [0], [1], [0, 0, 1, 1], [], []>} : vector<16x8xf32>, vector<8x324xf32>, vector<16x324xf32> -> vector<16x324xf32>
    %144 = arith.addf %139, %143 : vector<16x324xf32>
    %145 = vector.extract_strided_slice %144 {offsets = [0, 0], sizes = [4, 324], strides = [1, 1]} : vector<16x324xf32> to vector<4x324xf32>
    %146 = vector.extract_strided_slice %144 {offsets = [8, 0], sizes = [4, 324], strides = [1, 1]} : vector<16x324xf32> to vector<4x324xf32>
    %147 = arith.maximumf %145, %146 : vector<4x324xf32>
    %148 = vector.extract_strided_slice %147 {offsets = [0, 19], sizes = [4, 16], strides = [1, 1]} : vector<4x324xf32> to vector<4x16xf32>
    %149 = vector.extract_strided_slice %4 {offsets = [0, 0], sizes = [4, 16], strides = [1, 1]} : vector<4x256xf32> to vector<4x16xf32>
    %150 = arith.addf %148, %149 : vector<4x16xf32>
    %c0_97 = arith.constant 0 : index
    %c0_98 = arith.constant 0 : index
    %c0_99 = arith.constant 0 : index
    %151 = vector.load %arg7[%c0_97, %c0_98, %c0_99] : memref<1x4x256xf32, #tpu.memory_space<vmem>>, vector<1x4x16xf32>
    %152 = vector.shape_cast %151 : vector<1x4x16xf32> to vector<4x16xf32>
    %153 = vector.shape_cast %150 : vector<4x16xf32> to vector<1x4x16xf32>
    tpu.vector_store %arg7[%c0_97, %c0_98, %c0_99], %153 {strides = array<i32>} : memref<1x4x256xf32, #tpu.memory_space<vmem>>, vector<1x4x16xf32>,
    %154 = vector.extract_strided_slice %147 {offsets = [0, 37], sizes = [4, 16], strides = [1, 1]} : vector<4x324xf32> to vector<4x16xf32>
    %155 = vector.extract_strided_slice %4 {offsets = [0, 16], sizes = [4, 16], strides = [1, 1]} : vector<4x256xf32> to vector<4x16xf32>
    %156 = arith.addf %154, %155 : vector<4x16xf32>
    %c0_100 = arith.constant 0 : index
    %c0_101 = arith.constant 0 : index
    %c16 = arith.constant 16 : index
    %157 = vector.load %arg7[%c0_100, %c0_101, %c16] : memref<1x4x256xf32, #tpu.memory_space<vmem>>, vector<1x4x16xf32>
    %158 = vector.shape_cast %157 : vector<1x4x16xf32> to vector<4x16xf32>
    %159 = vector.shape_cast %156 : vector<4x16xf32> to vector<1x4x16xf32>
    tpu.vector_store %arg7[%c0_100, %c0_101, %c16], %159 {strides = array<i32>} : memref<1x4x256xf32, #tpu.memory_space<vmem>>, vector<1x4x16xf32>,
    %160 = vector.extract_strided_slice %147 {offsets = [0, 55], sizes = [4, 16], strides = [1, 1]} : vector<4x324xf32> to vector<4x16xf32>
    %161 = vector.extract_strided_slice %4 {offsets = [0, 32], sizes = [4, 16], strides = [1, 1]} : vector<4x256xf32> to vector<4x16xf32>
    %162 = arith.addf %160, %161 : vector<4x16xf32>
    %c0_102 = arith.constant 0 : index
    %c0_103 = arith.constant 0 : index
    %c32 = arith.constant 32 : index
    %163 = vector.load %arg7[%c0_102, %c0_103, %c32] : memref<1x4x256xf32, #tpu.memory_space<vmem>>, vector<1x4x16xf32>
    %164 = vector.shape_cast %163 : vector<1x4x16xf32> to vector<4x16xf32>
    %165 = vector.shape_cast %162 : vector<4x16xf32> to vector<1x4x16xf32>
    tpu.vector_store %arg7[%c0_102, %c0_103, %c32], %165 {strides = array<i32>} : memref<1x4x256xf32, #tpu.memory_space<vmem>>, vector<1x4x16xf32>,
    %166 = vector.extract_strided_slice %147 {offsets = [0, 73], sizes = [4, 16], strides = [1, 1]} : vector<4x324xf32> to vector<4x16xf32>
    %167 = vector.extract_strided_slice %4 {offsets = [0, 48], sizes = [4, 16], strides = [1, 1]} : vector<4x256xf32> to vector<4x16xf32>
    %168 = arith.addf %166, %167 : vector<4x16xf32>
    %c0_104 = arith.constant 0 : index
    %c0_105 = arith.constant 0 : index
    %c48 = arith.constant 48 : index
    %169 = vector.load %arg7[%c0_104, %c0_105, %c48] : memref<1x4x256xf32, #tpu.memory_space<vmem>>, vector<1x4x16xf32>
    %170 = vector.shape_cast %169 : vector<1x4x16xf32> to vector<4x16xf32>
    %171 = vector.shape_cast %168 : vector<4x16xf32> to vector<1x4x16xf32>
    tpu.vector_store %arg7[%c0_104, %c0_105, %c48], %171 {strides = array<i32>} : memref<1x4x256xf32, #tpu.memory_space<vmem>>, vector<1x4x16xf32>,
    %172 = vector.extract_strided_slice %147 {offsets = [0, 91], sizes = [4, 16], strides = [1, 1]} : vector<4x324xf32> to vector<4x16xf32>
    %173 = vector.extract_strided_slice %4 {offsets = [0, 64], sizes = [4, 16], strides = [1, 1]} : vector<4x256xf32> to vector<4x16xf32>
    %174 = arith.addf %172, %173 : vector<4x16xf32>
    %c0_106 = arith.constant 0 : index
    %c0_107 = arith.constant 0 : index
    %c64 = arith.constant 64 : index
    %175 = vector.load %arg7[%c0_106, %c0_107, %c64] : memref<1x4x256xf32, #tpu.memory_space<vmem>>, vector<1x4x16xf32>
    %176 = vector.shape_cast %175 : vector<1x4x16xf32> to vector<4x16xf32>
    %177 = vector.shape_cast %174 : vector<4x16xf32> to vector<1x4x16xf32>
    tpu.vector_store %arg7[%c0_106, %c0_107, %c64], %177 {strides = array<i32>} : memref<1x4x256xf32, #tpu.memory_space<vmem>>, vector<1x4x16xf32>,
    %178 = vector.extract_strided_slice %147 {offsets = [0, 109], sizes = [4, 16], strides = [1, 1]} : vector<4x324xf32> to vector<4x16xf32>
    %179 = vector.extract_strided_slice %4 {offsets = [0, 80], sizes = [4, 16], strides = [1, 1]} : vector<4x256xf32> to vector<4x16xf32>
    %180 = arith.addf %178, %179 : vector<4x16xf32>
    %c0_108 = arith.constant 0 : index
    %c0_109 = arith.constant 0 : index
    %c80 = arith.constant 80 : index
    %181 = vector.load %arg7[%c0_108, %c0_109, %c80] : memref<1x4x256xf32, #tpu.memory_space<vmem>>, vector<1x4x16xf32>
    %182 = vector.shape_cast %181 : vector<1x4x16xf32> to vector<4x16xf32>
    %183 = vector.shape_cast %180 : vector<4x16xf32> to vector<1x4x16xf32>
    tpu.vector_store %arg7[%c0_108, %c0_109, %c80], %183 {strides = array<i32>} : memref<1x4x256xf32, #tpu.memory_space<vmem>>, vector<1x4x16xf32>,
    %184 = vector.extract_strided_slice %147 {offsets = [0, 127], sizes = [4, 16], strides = [1, 1]} : vector<4x324xf32> to vector<4x16xf32>
    %185 = vector.extract_strided_slice %4 {offsets = [0, 96], sizes = [4, 16], strides = [1, 1]} : vector<4x256xf32> to vector<4x16xf32>
    %186 = arith.addf %184, %185 : vector<4x16xf32>
    %c0_110 = arith.constant 0 : index
    %c0_111 = arith.constant 0 : index
    %c96 = arith.constant 96 : index
    %187 = vector.load %arg7[%c0_110, %c0_111, %c96] : memref<1x4x256xf32, #tpu.memory_space<vmem>>, vector<1x4x16xf32>
    %188 = vector.shape_cast %187 : vector<1x4x16xf32> to vector<4x16xf32>
    %189 = vector.shape_cast %186 : vector<4x16xf32> to vector<1x4x16xf32>
    tpu.vector_store %arg7[%c0_110, %c0_111, %c96], %189 {strides = array<i32>} : memref<1x4x256xf32, #tpu.memory_space<vmem>>, vector<1x4x16xf32>,
    %190 = vector.extract_strided_slice %147 {offsets = [0, 145], sizes = [4, 16], strides = [1, 1]} : vector<4x324xf32> to vector<4x16xf32>
    %191 = vector.extract_strided_slice %4 {offsets = [0, 112], sizes = [4, 16], strides = [1, 1]} : vector<4x256xf32> to vector<4x16xf32>
    %192 = arith.addf %190, %191 : vector<4x16xf32>
    %c0_112 = arith.constant 0 : index
    %c0_113 = arith.constant 0 : index
    %c112 = arith.constant 112 : index
    %193 = vector.load %arg7[%c0_112, %c0_113, %c112] : memref<1x4x256xf32, #tpu.memory_space<vmem>>, vector<1x4x16xf32>
    %194 = vector.shape_cast %193 : vector<1x4x16xf32> to vector<4x16xf32>
    %195 = vector.shape_cast %192 : vector<4x16xf32> to vector<1x4x16xf32>
    tpu.vector_store %arg7[%c0_112, %c0_113, %c112], %195 {strides = array<i32>} : memref<1x4x256xf32, #tpu.memory_space<vmem>>, vector<1x4x16xf32>,
    %196 = vector.extract_strided_slice %147 {offsets = [0, 163], sizes = [4, 16], strides = [1, 1]} : vector<4x324xf32> to vector<4x16xf32>
    %197 = vector.extract_strided_slice %4 {offsets = [0, 128], sizes = [4, 16], strides = [1, 1]} : vector<4x256xf32> to vector<4x16xf32>
    %198 = arith.addf %196, %197 : vector<4x16xf32>
    %c0_114 = arith.constant 0 : index
    %c0_115 = arith.constant 0 : index
    %c128_116 = arith.constant 128 : index
    %199 = vector.load %arg7[%c0_114, %c0_115, %c128_116] : memref<1x4x256xf32, #tpu.memory_space<vmem>>, vector<1x4x16xf32>
    %200 = vector.shape_cast %199 : vector<1x4x16xf32> to vector<4x16xf32>
    %201 = vector.shape_cast %198 : vector<4x16xf32> to vector<1x4x16xf32>
    tpu.vector_store %arg7[%c0_114, %c0_115, %c128_116], %201 {strides = array<i32>} : memref<1x4x256xf32, #tpu.memory_space<vmem>>, vector<1x4x16xf32>,
    %202 = vector.extract_strided_slice %147 {offsets = [0, 181], sizes = [4, 16], strides = [1, 1]} : vector<4x324xf32> to vector<4x16xf32>
    %203 = vector.extract_strided_slice %4 {offsets = [0, 144], sizes = [4, 16], strides = [1, 1]} : vector<4x256xf32> to vector<4x16xf32>
    %204 = arith.addf %202, %203 : vector<4x16xf32>
    %c0_117 = arith.constant 0 : index
    %c0_118 = arith.constant 0 : index
    %c144 = arith.constant 144 : index
    %205 = vector.load %arg7[%c0_117, %c0_118, %c144] : memref<1x4x256xf32, #tpu.memory_space<vmem>>, vector<1x4x16xf32>
    %206 = vector.shape_cast %205 : vector<1x4x16xf32> to vector<4x16xf32>
    %207 = vector.shape_cast %204 : vector<4x16xf32> to vector<1x4x16xf32>
    tpu.vector_store %arg7[%c0_117, %c0_118, %c144], %207 {strides = array<i32>} : memref<1x4x256xf32, #tpu.memory_space<vmem>>, vector<1x4x16xf32>,
    %208 = vector.extract_strided_slice %147 {offsets = [0, 199], sizes = [4, 16], strides = [1, 1]} : vector<4x324xf32> to vector<4x16xf32>
    %209 = vector.extract_strided_slice %4 {offsets = [0, 160], sizes = [4, 16], strides = [1, 1]} : vector<4x256xf32> to vector<4x16xf32>
    %210 = arith.addf %208, %209 : vector<4x16xf32>
    %c0_119 = arith.constant 0 : index
    %c0_120 = arith.constant 0 : index
    %c160 = arith.constant 160 : index
    %211 = vector.load %arg7[%c0_119, %c0_120, %c160] : memref<1x4x256xf32, #tpu.memory_space<vmem>>, vector<1x4x16xf32>
    %212 = vector.shape_cast %211 : vector<1x4x16xf32> to vector<4x16xf32>
    %213 = vector.shape_cast %210 : vector<4x16xf32> to vector<1x4x16xf32>
    tpu.vector_store %arg7[%c0_119, %c0_120, %c160], %213 {strides = array<i32>} : memref<1x4x256xf32, #tpu.memory_space<vmem>>, vector<1x4x16xf32>,
    %214 = vector.extract_strided_slice %147 {offsets = [0, 217], sizes = [4, 16], strides = [1, 1]} : vector<4x324xf32> to vector<4x16xf32>
    %215 = vector.extract_strided_slice %4 {offsets = [0, 176], sizes = [4, 16], strides = [1, 1]} : vector<4x256xf32> to vector<4x16xf32>
    %216 = arith.addf %214, %215 : vector<4x16xf32>
    %c0_121 = arith.constant 0 : index
    %c0_122 = arith.constant 0 : index
    %c176 = arith.constant 176 : index
    %217 = vector.load %arg7[%c0_121, %c0_122, %c176] : memref<1x4x256xf32, #tpu.memory_space<vmem>>, vector<1x4x16xf32>
    %218 = vector.shape_cast %217 : vector<1x4x16xf32> to vector<4x16xf32>
    %219 = vector.shape_cast %216 : vector<4x16xf32> to vector<1x4x16xf32>
    tpu.vector_store %arg7[%c0_121, %c0_122, %c176], %219 {strides = array<i32>} : memref<1x4x256xf32, #tpu.memory_space<vmem>>, vector<1x4x16xf32>,
    %220 = vector.extract_strided_slice %147 {offsets = [0, 235], sizes = [4, 16], strides = [1, 1]} : vector<4x324xf32> to vector<4x16xf32>
    %221 = vector.extract_strided_slice %4 {offsets = [0, 192], sizes = [4, 16], strides = [1, 1]} : vector<4x256xf32> to vector<4x16xf32>
    %222 = arith.addf %220, %221 : vector<4x16xf32>
    %c0_123 = arith.constant 0 : index
    %c0_124 = arith.constant 0 : index
    %c192 = arith.constant 192 : index
    %223 = vector.load %arg7[%c0_123, %c0_124, %c192] : memref<1x4x256xf32, #tpu.memory_space<vmem>>, vector<1x4x16xf32>
    %224 = vector.shape_cast %223 : vector<1x4x16xf32> to vector<4x16xf32>
    %225 = vector.shape_cast %222 : vector<4x16xf32> to vector<1x4x16xf32>
    tpu.vector_store %arg7[%c0_123, %c0_124, %c192], %225 {strides = array<i32>} : memref<1x4x256xf32, #tpu.memory_space<vmem>>, vector<1x4x16xf32>,
    %226 = vector.extract_strided_slice %147 {offsets = [0, 253], sizes = [4, 16], strides = [1, 1]} : vector<4x324xf32> to vector<4x16xf32>
    %227 = vector.extract_strided_slice %4 {offsets = [0, 208], sizes = [4, 16], strides = [1, 1]} : vector<4x256xf32> to vector<4x16xf32>
    %228 = arith.addf %226, %227 : vector<4x16xf32>
    %c0_125 = arith.constant 0 : index
    %c0_126 = arith.constant 0 : index
    %c208 = arith.constant 208 : index
    %229 = vector.load %arg7[%c0_125, %c0_126, %c208] : memref<1x4x256xf32, #tpu.memory_space<vmem>>, vector<1x4x16xf32>
    %230 = vector.shape_cast %229 : vector<1x4x16xf32> to vector<4x16xf32>
    %231 = vector.shape_cast %228 : vector<4x16xf32> to vector<1x4x16xf32>
    tpu.vector_store %arg7[%c0_125, %c0_126, %c208], %231 {strides = array<i32>} : memref<1x4x256xf32, #tpu.memory_space<vmem>>, vector<1x4x16xf32>,
    %232 = vector.extract_strided_slice %147 {offsets = [0, 271], sizes = [4, 16], strides = [1, 1]} : vector<4x324xf32> to vector<4x16xf32>
    %233 = vector.extract_strided_slice %4 {offsets = [0, 224], sizes = [4, 16], strides = [1, 1]} : vector<4x256xf32> to vector<4x16xf32>
    %234 = arith.addf %232, %233 : vector<4x16xf32>
    %c0_127 = arith.constant 0 : index
    %c0_128 = arith.constant 0 : index
    %c224 = arith.constant 224 : index
    %235 = vector.load %arg7[%c0_127, %c0_128, %c224] : memref<1x4x256xf32, #tpu.memory_space<vmem>>, vector<1x4x16xf32>
    %236 = vector.shape_cast %235 : vector<1x4x16xf32> to vector<4x16xf32>
    %237 = vector.shape_cast %234 : vector<4x16xf32> to vector<1x4x16xf32>
    tpu.vector_store %arg7[%c0_127, %c0_128, %c224], %237 {strides = array<i32>} : memref<1x4x256xf32, #tpu.memory_space<vmem>>, vector<1x4x16xf32>,
    %238 = vector.extract_strided_slice %147 {offsets = [0, 289], sizes = [4, 16], strides = [1, 1]} : vector<4x324xf32> to vector<4x16xf32>
    %239 = vector.extract_strided_slice %4 {offsets = [0, 240], sizes = [4, 16], strides = [1, 1]} : vector<4x256xf32> to vector<4x16xf32>
    %240 = arith.addf %238, %239 : vector<4x16xf32>
    %c0_129 = arith.constant 0 : index
    %c0_130 = arith.constant 0 : index
    %c240 = arith.constant 240 : index
    %241 = vector.load %arg7[%c0_129, %c0_130, %c240] : memref<1x4x256xf32, #tpu.memory_space<vmem>>, vector<1x4x16xf32>
    %242 = vector.shape_cast %241 : vector<1x4x16xf32> to vector<4x16xf32>
    %243 = vector.shape_cast %240 : vector<4x16xf32> to vector<1x4x16xf32>
    tpu.vector_store %arg7[%c0_129, %c0_130, %c240], %243 {strides = array<i32>} : memref<1x4x256xf32, #tpu.memory_space<vmem>>, vector<1x4x16xf32>,
    return
  }
  func.func @transform_0(%arg0: i32) -> (i32, i32, i32) {
    %c0_i32 = arith.constant 0 : i32
    %c0_i32_0 = arith.constant 0 : i32
    %c0_i32_1 = arith.constant 0 : i32
    return %arg0, %c0_i32, %c0_i32_0 : i32, i32, i32
  }
  func.func @transform_1(%arg0: i32) -> (i32, i32, i32) {
    %c0_i32 = arith.constant 0 : i32
    %c0_i32_0 = arith.constant 0 : i32
    %c0_i32_1 = arith.constant 0 : i32
    %c0_i32_2 = arith.constant 0 : i32
    return %c0_i32, %c0_i32_0, %c0_i32_1 : i32, i32, i32
  }
  func.func @transform_2(%arg0: i32) -> (i32, i32) {
    %c0_i32 = arith.constant 0 : i32
    %c0_i32_0 = arith.constant 0 : i32
    %c0_i32_1 = arith.constant 0 : i32
    return %c0_i32, %c0_i32_0 : i32, i32
  }
  func.func @transform_3(%arg0: i32) -> (i32, i32, i32) {
    %c0_i32 = arith.constant 0 : i32
    %c0_i32_0 = arith.constant 0 : i32
    %c0_i32_1 = arith.constant 0 : i32
    %c0_i32_2 = arith.constant 0 : i32
    return %c0_i32, %c0_i32_0, %c0_i32_1 : i32, i32, i32
  }
  func.func @transform_4(%arg0: i32) -> (i32, i32) {
    %c0_i32 = arith.constant 0 : i32
    %c0_i32_0 = arith.constant 0 : i32
    %c0_i32_1 = arith.constant 0 : i32
    return %c0_i32, %c0_i32_0 : i32, i32
  }
  func.func @transform_5(%arg0: i32) -> (i32, i32) {
    %c0_i32 = arith.constant 0 : i32
    %c0_i32_0 = arith.constant 0 : i32
    %c0_i32_1 = arith.constant 0 : i32
    return %c0_i32, %c0_i32_0 : i32, i32
  }
  func.func @transform_6(%arg0: i32) -> (i32, i32, i32) {
    %c0_i32 = arith.constant 0 : i32
    %c0_i32_0 = arith.constant 0 : i32
    %c0_i32_1 = arith.constant 0 : i32
    return %arg0, %c0_i32, %c0_i32_0 : i32, i32, i32
  }
}

</mosaic_0001>

<llo_original>
// kernel: tpu_custom_call.1
$region0: #{tpu_custom_call.1}
  #allocation0 [shape = 'u32[]', space=smem, size = 0x4, offset = 0x4, fixed_abs, tag = 'smem constant byte address 0x4 - core index']
  #allocation1 [shape = 'u32[144,128]{1,0:T(1,128)}', space=vmem, size = 0x12000, scoped, tag = 'internal scratch']
  #allocation2 [shape = 'f32[8,580]{1,0:T(8,128)}', space=vmem, size = 0x5000, scoped, tag = 'scratch operand']
  %s0 = inlined_call_operand.vmem [shape: f32[2,4,256], index: 0, kind: input, shape index: {}]
  %s1 = inlined_call_operand.vmem [shape: f32[9,16,8], index: 1, kind: input, shape index: {}]
  %s2 = inlined_call_operand.vmem [shape: f32[16,1], index: 2, kind: input, shape index: {}]
  %s3 = inlined_call_operand.vmem [shape: f32[9,16,8], index: 3, kind: input, shape index: {}]
  %s4 = inlined_call_operand.vmem [shape: f32[16,1], index: 4, kind: input, shape index: {}]
  %s5 = inlined_call_operand.vmem [shape: f32[8,580], index: 5, kind: input, shape index: {}]
  %s6 = inlined_call_operand.hbm [shape: f32[2,4,256], index: 6, kind: output, shape index: {}]
  %s7 = sld [smem:[#allocation0]]
  $region57: #{tpu_custom_call.1} parent=0
    _
  %s9 = ssub.s32 1, %s7
  %s10 = scalar_select 0, %s9, %s7
  $region1: #{tpu_custom_call.1} parent=0
    #allocation3 [shape = 'u8[8192]{0}', space=vmem, size = 0x2000, scoped, tag = 'output window, operand 0']
    #allocation4 [shape = 's32[2]{0}', space=sflag, size = 0x8, scoped, tag = 'scoped memory for tpu_custom_call.1']
    %11 = vsyncpa [#allocation4], 0
    %s12 = scalar_lea.sflag [#allocation4], 1
    %13 = vsyncpa %s12, 0
    loop: start=0, step=1, limit=4
    $region2: #{tpu_custom_call.1} parent=1 // loop_pre_header
      _
    $region3: #{tpu_custom_call.1} parent=1 // loop_header
      %s15 = sphi 0, %s19
      %p16 = scmp.ge.s32.totalorder %s15, 4
      %s25 = sphi 0, %s27
      %s28 = sphi 0, %s25
      %s29 = sphi 0, %s28
      %s45 = sphi 0, %s29
      %s49 = sphi 0, %s49
      %s51 = sphi 0, %s49
      %s52 = sphi 0, %s51
      %s66 = sphi 0, %s52
      %s70 = sphi 0, %s70
      %s72 = sphi 0, %s70
      %s73 = sphi 0, %s72
      %s87 = sphi 0, %s73
      %s91 = sphi 0, %s91
      %s93 = sphi 0, %s91
      %s94 = sphi 0, %s93
      %s108 = sphi 0, %s94
      %s112 = sphi 0, %s112
      %s114 = sphi 0, %s112
      %s115 = sphi 0, %s114
      %s129 = sphi 0, %s115
      %s133 = sphi 0, %s133
      %s135 = sphi 0, %s133
      %s136 = sphi 0, %s135
      %s150 = sphi 0, %s136
      %s156 = sphi 0, %s158
      %s159 = sphi 0, %s156
      %s160 = sphi 0, %s159
      %s176 = sphi 0, %s160
    $region4: #{tpu_custom_call.1} parent=1 // loop_header_branch
      %18 = sbr.rel (%p16) target = $region8
    $region5: #{tpu_custom_call.1} parent=1 // loop_body
      %s20 = ssub.s32 %s15, 1
      %s21 = ssub.s32 %s15, 2
      %s22 = sadd.s32 %s15, 1
      %s23 = ssub.s32 %s15, %s22
      %p24 = scmp.eq.s32.totalorder %s23, 0
      %s26 = sadd.s32 %s25, 1
      %s27 = scalar_select %p24, %s25, %s26
      %p30 = pneg %p24
      %p31 = scmp.eq.s32.totalorder %s15, 1
      %p32 = por %p30, %p31
      %p33 = scmp.ne.s32.totalorder %s25, %s28
      %p34 = scmp.eq.s32.totalorder %s15, 0
      %p35 = por %p33, %p34
      %p36 = scmp.ne.s32.totalorder %s25, %s28
      %p37 = scmp.eq.s32.totalorder %s20, 1
      %p38 = por %p36, %p37
      %p39 = scmp.ne.s32.totalorder %s28, %s29
      %p40 = scmp.eq.s32.totalorder %s20, 0
      %p41 = por %p39, %p40
      %p42 = scmp.ne.s32.totalorder %s28, %s29
      %p43 = scmp.eq.s32.totalorder %s21, 1
      %p44 = por %p42, %p43
      %p46 = scmp.ne.s32.totalorder %s29, %s45
      %p47 = scmp.eq.s32.totalorder %s21, 0
      %p48 = por %p46, %p47
      %s50 = sadd.s32 %s49, 1
      %p53 = scmp.eq.s32.totalorder %s15, 1
      %p54 = scmp.ne.s32.totalorder %s49, %s51
      %p55 = scmp.eq.s32.totalorder %s15, 0
      %p56 = por %p54, %p55
      %p57 = scmp.ne.s32.totalorder %s49, %s51
      %p58 = scmp.eq.s32.totalorder %s20, 1
      %p59 = por %p57, %p58
      %p60 = scmp.ne.s32.totalorder %s51, %s52
      %p61 = scmp.eq.s32.totalorder %s20, 0
      %p62 = por %p60, %p61
      %p63 = scmp.ne.s32.totalorder %s51, %s52
      %p64 = scmp.eq.s32.totalorder %s21, 1
      %p65 = por %p63, %p64
      %p67 = scmp.ne.s32.totalorder %s52, %s66
      %p68 = scmp.eq.s32.totalorder %s21, 0
      %p69 = por %p67, %p68
      %s71 = sadd.s32 %s70, 1
      %p74 = scmp.eq.s32.totalorder %s15, 1
      %p75 = scmp.ne.s32.totalorder %s70, %s72
      %p76 = scmp.eq.s32.totalorder %s15, 0
      %p77 = por %p75, %p76
      %p78 = scmp.ne.s32.totalorder %s70, %s72
      %p79 = scmp.eq.s32.totalorder %s20, 1
      %p80 = por %p78, %p79
      %p81 = scmp.ne.s32.totalorder %s72, %s73
      %p82 = scmp.eq.s32.totalorder %s20, 0
      %p83 = por %p81, %p82
      %p84 = scmp.ne.s32.totalorder %s72, %s73
      %p85 = scmp.eq.s32.totalorder %s21, 1
      %p86 = por %p84, %p85
      %p88 = scmp.ne.s32.totalorder %s73, %s87
      %p89 = scmp.eq.s32.totalorder %s21, 0
      %p90 = por %p88, %p89
      %s92 = sadd.s32 %s91, 1
      %p95 = scmp.eq.s32.totalorder %s15, 1
      %p96 = scmp.ne.s32.totalorder %s91, %s93
      %p97 = scmp.eq.s32.totalorder %s15, 0
      %p98 = por %p96, %p97
      %p99 = scmp.ne.s32.totalorder %s91, %s93
      %p100 = scmp.eq.s32.totalorder %s20, 1
      %p101 = por %p99, %p100
      %p102 = scmp.ne.s32.totalorder %s93, %s94
      %p103 = scmp.eq.s32.totalorder %s20, 0
      %p104 = por %p102, %p103
      %p105 = scmp.ne.s32.totalorder %s93, %s94
      %p106 = scmp.eq.s32.totalorder %s21, 1
      %p107 = por %p105, %p106
      %p109 = scmp.ne.s32.totalorder %s94, %s108
      %p110 = scmp.eq.s32.totalorder %s21, 0
      %p111 = por %p109, %p110
      %s113 = sadd.s32 %s112, 1
      %p116 = scmp.eq.s32.totalorder %s15, 1
      %p117 = scmp.ne.s32.totalorder %s112, %s114
      %p118 = scmp.eq.s32.totalorder %s15, 0
      %p119 = por %p117, %p118
      %p120 = scmp.ne.s32.totalorder %s112, %s114
      %p121 = scmp.eq.s32.totalorder %s20, 1
      %p122 = por %p120, %p121
      %p123 = scmp.ne.s32.totalorder %s114, %s115
      %p124 = scmp.eq.s32.totalorder %s20, 0
      %p125 = por %p123, %p124
      %p126 = scmp.ne.s32.totalorder %s114, %s115
      %p127 = scmp.eq.s32.totalorder %s21, 1
      %p128 = por %p126, %p127
      %p130 = scmp.ne.s32.totalorder %s115, %s129
      %p131 = scmp.eq.s32.totalorder %s21, 0
      %p132 = por %p130, %p131
      %s134 = sadd.s32 %s133, 1
      %p137 = scmp.eq.s32.totalorder %s15, 1
      %p138 = scmp.ne.s32.totalorder %s133, %s135
      %p139 = scmp.eq.s32.totalorder %s15, 0
      %p140 = por %p138, %p139
      %p141 = scmp.ne.s32.totalorder %s133, %s135
      %p142 = scmp.eq.s32.totalorder %s20, 1
      %p143 = por %p141, %p142
      %p144 = scmp.ne.s32.totalorder %s135, %s136
      %p145 = scmp.eq.s32.totalorder %s20, 0
      %p146 = por %p144, %p145
      %p147 = scmp.ne.s32.totalorder %s135, %s136
      %p148 = scmp.eq.s32.totalorder %s21, 1
      %p149 = por %p147, %p148
      %p151 = scmp.ne.s32.totalorder %s136, %s150
      %p152 = scmp.eq.s32.totalorder %s21, 0
      %p153 = por %p151, %p152
      %s154 = ssub.s32 %s15, %s22
      %p155 = scmp.eq.s32.totalorder %s154, 0
      %s157 = sadd.s32 %s156, 1
      %s158 = scalar_select %p155, %s156, %s157
      %p161 = pneg %p155
      %p162 = scmp.eq.s32.totalorder %s15, 1
      %p163 = por %p161, %p162
      %p164 = scmp.ne.s32.totalorder %s156, %s159
      %p165 = scmp.eq.s32.totalorder %s15, 0
      %p166 = por %p164, %p165
      %p167 = scmp.ne.s32.totalorder %s156, %s159
      %p168 = scmp.eq.s32.totalorder %s20, 1
      %p169 = por %p167, %p168
      %p170 = scmp.ne.s32.totalorder %s159, %s160
      %p171 = scmp.eq.s32.totalorder %s20, 0
      %p172 = por %p170, %p171
      %p173 = scmp.ne.s32.totalorder %s159, %s160
      %p174 = scmp.eq.s32.totalorder %s21, 1
      %p175 = por %p173, %p174
      %p177 = scmp.ne.s32.totalorder %s160, %s176
      %p178 = scmp.eq.s32.totalorder %s21, 0
      %p179 = por %p177, %p178
      %p180 = scmp.le.s32.totalorder 1, %s15
      %p181 = scmp.lt.s32.totalorder %s15, 3
      %p182 = pnand %p180, %p181
      %p183 = pneg %p182
      // Predicated region
      $region9: #{tpu_custom_call.1} parent=5 // pred_check
        _
      $region10: #{tpu_custom_call.1} parent=5 // pred_check_branch
        %185 = sbr.rel (%p182) target = $region12
      $region11: #{tpu_custom_call.1} parent=5 // pred_region
        %s186 = ssub.s32 %s15, 1
        // Predicated region
        $region13: #{tpu_custom_call.1} parent=11 // pred_check
          %p187 = pneg %p62
        $region14: #{tpu_custom_call.1} parent=11 // pred_check_branch
          %189 = sbr.rel (%p187) target = $region16
        $region15: #{tpu_custom_call.1} parent=11 // pred_region
          _
        $region16: #{tpu_custom_call.1} parent=11 // pred_fallthru
          _
        // Predicated region
        $region17: #{tpu_custom_call.1} parent=11 // pred_check
          %p190 = pneg %p83
        $region18: #{tpu_custom_call.1} parent=11 // pred_check_branch
          %192 = sbr.rel (%p190) target = $region20
        $region19: #{tpu_custom_call.1} parent=11 // pred_region
          _
        $region20: #{tpu_custom_call.1} parent=11 // pred_fallthru
          _
        // Predicated region
        $region21: #{tpu_custom_call.1} parent=11 // pred_check
          %p193 = pneg %p104
        $region22: #{tpu_custom_call.1} parent=11 // pred_check_branch
          %195 = sbr.rel (%p193) target = $region24
        $region23: #{tpu_custom_call.1} parent=11 // pred_region
          _
        $region24: #{tpu_custom_call.1} parent=11 // pred_fallthru
          _
        // Predicated region
        $region25: #{tpu_custom_call.1} parent=11 // pred_check
          %p196 = pneg %p125
        $region26: #{tpu_custom_call.1} parent=11 // pred_check_branch
          %198 = sbr.rel (%p196) target = $region28
        $region27: #{tpu_custom_call.1} parent=11 // pred_region
          _
        $region28: #{tpu_custom_call.1} parent=11 // pred_fallthru
          _
        // Predicated region
        $region29: #{tpu_custom_call.1} parent=11 // pred_check
          %p199 = pneg %p146
        $region30: #{tpu_custom_call.1} parent=11 // pred_check_branch
          %201 = sbr.rel (%p199) target = $region32
        $region31: #{tpu_custom_call.1} parent=11 // pred_region
          _
        $region32: #{tpu_custom_call.1} parent=11 // pred_fallthru
          _
      $region12: #{tpu_custom_call.1} parent=5 // pred_fallthru
        _
      %p202 = scmp.lt.s32.totalorder %s15, 2
      // Predicated region
      $region33: #{tpu_custom_call.1} parent=5 // pred_check
        %p203 = pneg %p202
      $region34: #{tpu_custom_call.1} parent=5 // pred_check_branch
        %205 = sbr.rel (%p203) target = $region36
      $region35: #{tpu_custom_call.1} parent=5 // pred_region
        // Predicated region
        $region37: #{tpu_custom_call.1} parent=35 // pred_check
          %p206 = pneg %p35
        $region38: #{tpu_custom_call.1} parent=35 // pred_check_branch
          %208 = sbr.rel (%p206) target = $region40
        $region39: #{tpu_custom_call.1} parent=35 // pred_region
          %p209 = scmp.lt.s32.totalorder %s15, 1
          %s210 = scalar_select %p209, %s15, 1
          %s211 = smul.addr %s210, 2
          %s212 = smul.addr %s211, 4
          %s213 = scalar_lea.vmem %s0, %s212
        $region40: #{tpu_custom_call.1} parent=35 // pred_fallthru
          _
      $region36: #{tpu_custom_call.1} parent=5 // pred_fallthru
        _
      %p214 = scmp.le.s32.totalorder 1, %s15
      %p215 = scmp.lt.s32.totalorder %s15, 3
      %p216 = pnand %p214, %p215
      %p217 = pneg %p216
      // Predicated region
      $region41: #{tpu_custom_call.1} parent=5 // pred_check
        _
      $region42: #{tpu_custom_call.1} parent=5 // pred_check_branch
        %219 = sbr.rel (%p216) target = $region44
      $region43: #{tpu_custom_call.1} parent=5 // pred_region
        %s220 = ssub.s32 %s15, 1
        %p221 = scmp.lt.s32.totalorder %s20, 1
        %s222 = scalar_select %p221, %s20, 1
        %s223 = smul.addr %s222, 2
        %s224 = smul.addr %s223, 4
        %s225 = scalar_lea.vmem %s0, %s224
        %p226 = pneg %p41
        %p227 = pneg %p38
        %p228 = pneg %p62
        %p229 = pneg %p59
        %p230 = pneg %p83
        %p231 = pneg %p80
        %p232 = pneg %p104
        %p233 = pneg %p101
        %p234 = pneg %p125
        %p235 = pneg %p122
        %p236 = pneg %p146
        %p237 = pneg %p143
        %p238 = pneg %p172
        %p239 = pneg %p169
        %s240 = sand.u32 %s159, 1
        %s241 = scalar_lea.sflag [#allocation4], %s240
        %s242 = sand.u32 %s159, 1
        %s243 = smul.addr %s242, 8
        %s244 = scalar_lea.vmem [#allocation3], %s243
        %p245 = scmp.lt.s32.totalorder %s20, 1
        %s246 = scalar_select %p245, %s20, 1
        %s247 = smul.addr %s246, 2
        %s248 = smul.addr %s247, 4
        %s249 = scalar_lea.vmem %s0, %s248
        %v250 = vld [vmem:[%s5] sm:$0xff]
        %v251 = vld [vmem:[%s5 + $0x8] sm:$0xff]
        %v252 = vld [vmem:[%s5 + $0x10] sm:$0xff]
        %v253 = vld [vmem:[%s5 + $0x18] sm:$0xff]
        %vm254 = vcmp.gt.f32.partialorder %v250, 0.5
        %vm255 = vcmp.gt.f32.partialorder %v251, 0.5
        %vm256 = vcmp.gt.f32.partialorder %v252, 0.5
        %vm257 = vcmp.gt.f32.partialorder %v253, 0.5
        %v258 = vld [vmem:[%s249] sm:$0xff]
        %260 = vrot.lane.b32.xlu0 %v258, 19
        %v261 = vpop.permute.xlu0 %260
        %vm263 = vcmask 281752
        %264 = vst.msk [vmem:[#allocation2 + $0x8] sm:$0xf] %vm263, %v261
        %265 = vrot.lane.b32.xlu0 %v258, 21
        %v266 = vpop.permute.xlu0 %265
        %vm268 = vcmask 429352
        %269 = vst.msk [vmem:[#allocation2 + $0x8] sm:$0xf] %vm268, %v266
        %270 = vrot.lane.b32.xlu0 %v258, 23
        %v271 = vpop.permute.xlu0 %270
        %vm273 = vcmask 576952
        %274 = vst.msk [vmem:[#allocation2 + $0x8] sm:$0xf] %vm273, %v271
        %275 = vrot.lane.b32.xlu0 %v258, 25
        %v276 = vpop.permute.xlu0 %275
        %vm278 = vcmask 724552
        %279 = vst.msk [vmem:[#allocation2 + $0x8] sm:$0xf] %vm278, %v276
        %280 = vrot.lane.b32.xlu0 %v258, 27
        %v281 = vpop.permute.xlu0 %280
        %vm283 = vcmask 872152
        %284 = vst.msk [vmem:[#allocation2 + $0x8] sm:$0xf] %vm283, %v281
        %285 = vrot.lane.b32.xlu0 %v258, 29
        %v286 = vpop.permute.xlu0 %285
        %vm288 = vcmask 1019752
        %289 = vst.msk [vmem:[#allocation2 + $0x8] sm:$0xf] %vm288, %v286
        %290 = vrot.lane.b32.xlu0 %v258, 31
        %v291 = vpop.permute.xlu0 %290
        %vm293 = vcmask 1044472
        %294 = vst.msk [vmem:[#allocation2 + $0x8] sm:$0xf] %vm293, %v291
        %vm295 = vcmask 117760
        %296 = vst.msk [vmem:[#allocation2 + $0x10] sm:$0xf] %vm295, %v291
        %297 = vrot.lane.b32.xlu0 %v258, 33
        %v298 = vpop.permute.xlu0 %297
        %vm300 = vcmask 265352
        %301 = vst.msk [vmem:[#allocation2 + $0x10] sm:$0xf] %vm300, %v298
        %v302 = vcombine.high %v258, %v258
        %303 = vrot.lane.b32.xlu0 %v302, 35
        %v304 = vpop.permute.xlu0 %303
        %vm306 = vcmask 412952
        %307 = vst.msk [vmem:[#allocation2 + $0x10] sm:$0xf] %vm306, %v304
        %308 = vrot.lane.b32.xlu0 %v302, 37
        %v309 = vpop.permute.xlu0 %308
        %vm311 = vcmask 560552
        %312 = vst.msk [vmem:[#allocation2 + $0x10] sm:$0xf] %vm311, %v309
        %313 = vrot.lane.b32.xlu0 %v302, 39
        %v314 = vpop.permute.xlu0 %313
        %vm316 = vcmask 708152
        %317 = vst.msk [vmem:[#allocation2 + $0x10] sm:$0xf] %vm316, %v314
        %318 = vrot.lane.b32.xlu0 %v302, 41
        %v319 = vpop.permute.xlu0 %318
        %vm321 = vcmask 855752
        %322 = vst.msk [vmem:[#allocation2 + $0x10] sm:$0xf] %vm321, %v319
        %323 = vrot.lane.b32.xlu0 %v302, 43
        %v324 = vpop.permute.xlu0 %323
        %vm326 = vcmask 1003352
        %327 = vst.msk [vmem:[#allocation2 + $0x10] sm:$0xf] %vm326, %v324
        %328 = vrot.lane.b32.xlu0 %v302, 45
        %v329 = vpop.permute.xlu0 %328
        %vm331 = vcmask 1044456
        %332 = vst.msk [vmem:[#allocation2 + $0x10] sm:$0xf] %vm331, %v329
        %vm333 = vcmask 101376
        %334 = vst.msk [vmem:[#allocation2 + $0x18] sm:$0xf] %vm333, %v329
        %335 = vrot.lane.b32.xlu0 %v302, 47
        %v336 = vpop.permute.xlu0 %335
        %vm338 = vcmask 248952
        %339 = vst.msk [vmem:[#allocation2 + $0x18] sm:$0xf] %vm338, %v336
        %340 = vrot.lane.b32.xlu0 %v302, 49
        %v341 = vpop.permute.xlu0 %340
        %vm343 = vcmask 396552
        %344 = vst.msk [vmem:[#allocation2 + $0x18] sm:$0xf] %vm343, %v341
        %v345 = vld [vmem:[#allocation2] sm:$0xff]
        %v346 = vld [vmem:[#allocation2 + $0x8] sm:$0xff]
        %v347 = vld [vmem:[#allocation2 + $0x10] sm:$0xff]
        %v348 = vld [vmem:[#allocation2 + $0x18] sm:$0xff]
        %v349 = vsel %vm254, %v345, 0.0
        %v350 = vsel %vm255, %v346, 0.0
        %v351 = vsel %vm256, %v347, 0.0
        %v352 = vsel %vm257, %v348, 0.0
        %v353 = vld [vmem:[%s2] sm:$0xff]
        %v354 = vld [vmem:[%s2 + $0x8] sm:$0xff]
        %356 = vset.pattern.permute.xlu0 0
        %357 = vperm.xlu0 %356, %v353
        %v358 = vpop.permute.xlu0 %357
        %361 = vset.pattern.permute.xlu0 0
        %362 = vperm.xlu0 %361, %v354
        %v363 = vpop.permute.xlu0 %362
        %v365 = vadd.f32 %v358, 0.0
        %v366 = vadd.f32 %v363, 0.0
        %v367 = vld [vmem:[%s1] sm:$0xff]
        %v368 = vld [vmem:[%s1 + $0x8] sm:$0xff]
        %373 = vrot.lane.b32.xlu0 %v349, 19
        %v374 = vpop.permute.xlu0 %373
        %375 = vrot.lane.b32.xlu0 %v350, 19
        %v376 = vpop.permute.xlu0 %375
        %377 = vrot.lane.b32.xlu0 %v351, 19
        %v378 = vpop.permute.xlu0 %377
        %379 = vrot.lane.b32.xlu0 %v352, 19
        %v380 = vpop.permute.xlu0 %379
        %vm381 = vcmask 154624
        %v382 = vsel %vm381, %v374, %v376
        %v383 = vsel %vm381, %v376, %v378
        %v384 = vsel %vm381, %v378, %v380
        %vm388 = vcmask 64512
        %v390 = vsel %vm388, %v367, 0
        %v393 = vsel %vm388, %v368, 0
        %395 = vmatprep.subr.mxu0 %v383
        %396 = vmatpush1.msra.mxu0 %v382
        %397 = vmatprep.subr.mxu0 0.0
        %398 = vmatpush1.msra.mxu0 0.0
        %399 = vmatprep.subr.mxu0 0.0
        %400 = vmatpush1.msra.mxu0 0.0
        %401 = vmatprep.subr.mxu0 0.0
        %402 = vmatpush1.msra.mxu0 0.0
        %403 = vmatprep.subr.mxu0 0.0
        %404 = vmatpush1.msra.mxu0 0.0
        %405 = vmatprep.subr.mxu0 0.0
        %406 = vmatpush1.msra.mxu0 0.0
        %407 = vmatprep.subr.mxu0 0.0
        %408 = vmatpush1.msra.mxu0 0.0
        %409 = vmatprep.subr.mxu0 0.0
        %410 = vmatpush1.msra.mxu0 0.0
        %411 = vmatprep.subr.mxu0 0.0
        %412 = vmatpush1.msra.mxu0 0.0
        %413 = vmatprep.subr.mxu0 0.0
        %414 = vmatpush1.msra.mxu0 0.0
        %415 = vmatprep.subr.mxu0 0.0
        %416 = vmatpush1.msra.mxu0 0.0
        %417 = vmatprep.subr.mxu0 0.0
        %418 = vmatpush1.msra.mxu0 0.0
        %419 = vmatprep.subr.mxu0 0.0
        %420 = vmatpush1.msra.mxu0 0.0
        %421 = vmatprep.subr.mxu0 0.0
        %422 = vmatpush1.msra.mxu0 0.0
        %423 = vmatprep.subr.mxu0 0.0
        %424 = vmatpush1.msra.mxu0 0.0
        %425 = vmatprep.subr.mxu0 0.0
        %426 = vmatpush1.msra.mxu0 0.0
        %427 = vmatprep.subr.mxu0 0.0
        %428 = vmatpush1.msra.mxu0 0.0
        %429 = vmatprep.subr.mxu0 0.0
        %430 = vmatpush1.msra.mxu0 0.0
        %431 = vmatprep.subr.mxu0 0.0
        %432 = vmatpush1.msra.mxu0 0.0
        %433 = vmatprep.subr.mxu0 0.0
        %434 = vmatpush1.msra.mxu0 0.0
        %435 = vmatprep.subr.mxu0 0.0
        %436 = vmatpush1.msra.mxu0 0.0
        %437 = vmatprep.subr.mxu0 0.0
        %438 = vmatpush1.msra.mxu0 0.0
        %439 = vmatprep.subr.mxu0 0.0
        %440 = vmatpush1.msra.mxu0 0.0
        %441 = vmatprep.subr.mxu0 0.0
        %442 = vmatpush1.msra.mxu0 0.0
        %443 = vmatprep.subr.mxu0 0.0
        %444 = vmatpush1.msra.mxu0 0.0
        %445 = vmatprep.subr.mxu0 0.0
        %446 = vmatpush1.msra.mxu0 0.0
        %447 = vmatprep.subr.mxu0 0.0
        %448 = vmatpush1.msra.mxu0 0.0
        %449 = vmatprep.subr.mxu0 0.0
        %450 = vmatpush1.msra.mxu0 0.0
        %451 = vmatprep.subr.mxu0 0.0
        %452 = vmatpush1.msra.mxu0 0.0
        %453 = vmatprep.subr.mxu0 0.0
        %454 = vmatpush1.msra.mxu0 0.0
        %455 = vmatprep.subr.mxu0 0.0
        %456 = vmatpush1.msra.mxu0 0.0
        %457 = vmatprep.subr.mxu0 0.0
        %458 = vmatpush1.msra.mxu0 0.0
        %459 = vmatprep.mubr.f32.mxu0 0.0
        %460 = vmatmul.mubr.f32.gmra.mrb[0].mxu0 %v390
        %v461 = vpop.f32.mrb[0].mxu0
        %v462 = vadd.f32 0.0, %v461
        %v463 = vpop.f32.mrb[0].mxu0
        %v464 = vadd.f32 0.0, %v463
        %465 = vmatprep.mubr.f32.mxu0 0.0
        %466 = vmatmul.mubr.f32.gmra.mrb[0].mxu0 %v393
        %v467 = vpop.f32.mrb[0].mxu0
        %v468 = vadd.f32 0.0, %v467
        %v469 = vpop.f32.mrb[0].mxu0
        %v470 = vadd.f32 0.0, %v469
        %471 = vdwg.mxu0
        %472 = vmatprep.subr.mxu0 0.0
        %473 = vmatpush1.msra.mxu0 %v384
        %474 = vmatprep.subr.mxu0 0.0
        %475 = vmatpush1.msra.mxu0 0.0
        %476 = vmatprep.subr.mxu0 0.0
        %477 = vmatpush1.msra.mxu0 0.0
        %478 = vmatprep.subr.mxu0 0.0
        %479 = vmatpush1.msra.mxu0 0.0
        %480 = vmatprep.subr.mxu0 0.0
        %481 = vmatpush1.msra.mxu0 0.0
        %482 = vmatprep.subr.mxu0 0.0
        %483 = vmatpush1.msra.mxu0 0.0
        %484 = vmatprep.subr.mxu0 0.0
        %485 = vmatpush1.msra.mxu0 0.0
        %486 = vmatprep.subr.mxu0 0.0
        %487 = vmatpush1.msra.mxu0 0.0
        %488 = vmatprep.subr.mxu0 0.0
        %489 = vmatpush1.msra.mxu0 0.0
        %490 = vmatprep.subr.mxu0 0.0
        %491 = vmatpush1.msra.mxu0 0.0
        %492 = vmatprep.subr.mxu0 0.0
        %493 = vmatpush1.msra.mxu0 0.0
        %494 = vmatprep.subr.mxu0 0.0
        %495 = vmatpush1.msra.mxu0 0.0
        %496 = vmatprep.subr.mxu0 0.0
        %497 = vmatpush1.msra.mxu0 0.0
        %498 = vmatprep.subr.mxu0 0.0
        %499 = vmatpush1.msra.mxu0 0.0
        %500 = vmatprep.subr.mxu0 0.0
        %501 = vmatpush1.msra.mxu0 0.0
        %502 = vmatprep.subr.mxu0 0.0
        %503 = vmatpush1.msra.mxu0 0.0
        %504 = vmatprep.subr.mxu0 0.0
        %505 = vmatpush1.msra.mxu0 0.0
        %506 = vmatprep.subr.mxu0 0.0
        %507 = vmatpush1.msra.mxu0 0.0
        %508 = vmatprep.subr.mxu0 0.0
        %509 = vmatpush1.msra.mxu0 0.0
        %510 = vmatprep.subr.mxu0 0.0
        %511 = vmatpush1.msra.mxu0 0.0
        %512 = vmatprep.subr.mxu0 0.0
        %513 = vmatpush1.msra.mxu0 0.0
        %514 = vmatprep.subr.mxu0 0.0
        %515 = vmatpush1.msra.mxu0 0.0
        %516 = vmatprep.subr.mxu0 0.0
        %517 = vmatpush1.msra.mxu0 0.0
        %518 = vmatprep.subr.mxu0 0.0
        %519 = vmatpush1.msra.mxu0 0.0
        %520 = vmatprep.subr.mxu0 0.0
        %521 = vmatpush1.msra.mxu0 0.0
        %522 = vmatprep.subr.mxu0 0.0
        %523 = vmatpush1.msra.mxu0 0.0
        %524 = vmatprep.subr.mxu0 0.0
        %525 = vmatpush1.msra.mxu0 0.0
        %526 = vmatprep.subr.mxu0 0.0
        %527 = vmatpush1.msra.mxu0 0.0
        %528 = vmatprep.subr.mxu0 0.0
        %529 = vmatpush1.msra.mxu0 0.0
        %530 = vmatprep.subr.mxu0 0.0
        %531 = vmatpush1.msra.mxu0 0.0
        %532 = vmatprep.subr.mxu0 0.0
        %533 = vmatpush1.msra.mxu0 0.0
        %534 = vmatprep.subr.mxu0 0.0
        %535 = vmatpush1.msra.mxu0 0.0
        %536 = vmatprep.mubr.f32.mxu0 0.0
        %537 = vmatmul.mubr.f32.gmra.mrb[0].mxu0 %v390
        %v538 = vpop.f32.mrb[0].mxu0
        %v539 = vadd.f32 0.0, %v538
        %v540 = vpop.f32.mrb[0].mxu0
        %541 = vmatprep.mubr.f32.mxu0 0.0
        %542 = vmatmul.mubr.f32.gmra.mrb[0].mxu0 %v393
        %v543 = vpop.f32.mrb[0].mxu0
        %v544 = vadd.f32 0.0, %v543
        %v545 = vpop.f32.mrb[0].mxu0
        %546 = vdwg.mxu0
        %v547 = vadd.f32 %v365, %v462
        %v548 = vadd.f32 %v365, %v464
        %v549 = vadd.f32 %v365, %v539
        %v550 = vadd.f32 %v366, %v468
        %v551 = vadd.f32 %v366, %v470
        %v552 = vadd.f32 %v366, %v544
        %s553 = scalar_lea.vmem %s1, 16
        %v554 = vld [vmem:[%s553] sm:$0xff]
        %v555 = vld [vmem:[%s553 + $0x8] sm:$0xff]
        %556 = vrot.lane.b32.xlu0 %v349, 18
        %v557 = vpop.permute.xlu0 %556
        %558 = vrot.lane.b32.xlu0 %v350, 18
        %v559 = vpop.permute.xlu0 %558
        %560 = vrot.lane.b32.xlu0 %v351, 18
        %v561 = vpop.permute.xlu0 %560
        %562 = vrot.lane.b32.xlu0 %v352, 18
        %v563 = vpop.permute.xlu0 %562
        %vm564 = vcmask 146432
        %v565 = vsel %vm564, %v557, %v559
        %v566 = vsel %vm564, %v559, %v561
        %v567 = vsel %vm564, %v561, %v563
        %v572 = vsel %vm388, %v554, 0
        %v575 = vsel %vm388, %v555, 0
        %577 = vmatprep.subr.mxu0 %v566
        %578 = vmatpush1.msra.mxu0 %v565
        %579 = vmatprep.subr.mxu0 0.0
        %580 = vmatpush1.msra.mxu0 0.0
        %581 = vmatprep.subr.mxu0 0.0
        %582 = vmatpush1.msra.mxu0 0.0
        %583 = vmatprep.subr.mxu0 0.0
        %584 = vmatpush1.msra.mxu0 0.0
        %585 = vmatprep.subr.mxu0 0.0
        %586 = vmatpush1.msra.mxu0 0.0
        %587 = vmatprep.subr.mxu0 0.0
        %588 = vmatpush1.msra.mxu0 0.0
        %589 = vmatprep.subr.mxu0 0.0
        %590 = vmatpush1.msra.mxu0 0.0
        %591 = vmatprep.subr.mxu0 0.0
        %592 = vmatpush1.msra.mxu0 0.0
        %593 = vmatprep.subr.mxu0 0.0
        %594 = vmatpush1.msra.mxu0 0.0
        %595 = vmatprep.subr.mxu0 0.0
        %596 = vmatpush1.msra.mxu0 0.0
        %597 = vmatprep.subr.mxu0 0.0
        %598 = vmatpush1.msra.mxu0 0.0
        %599 = vmatprep.subr.mxu0 0.0
        %600 = vmatpush1.msra.mxu0 0.0
        %601 = vmatprep.subr.mxu0 0.0
        %602 = vmatpush1.msra.mxu0 0.0
        %603 = vmatprep.subr.mxu0 0.0
        %604 = vmatpush1.msra.mxu0 0.0
        %605 = vmatprep.subr.mxu0 0.0
        %606 = vmatpush1.msra.mxu0 0.0
        %607 = vmatprep.subr.mxu0 0.0
        %608 = vmatpush1.msra.mxu0 0.0
        %609 = vmatprep.subr.mxu0 0.0
        %610 = vmatpush1.msra.mxu0 0.0
        %611 = vmatprep.subr.mxu0 0.0
        %612 = vmatpush1.msra.mxu0 0.0
        %613 = vmatprep.subr.mxu0 0.0
        %614 = vmatpush1.msra.mxu0 0.0
        %615 = vmatprep.subr.mxu0 0.0
        %616 = vmatpush1.msra.mxu0 0.0
        %617 = vmatprep.subr.mxu0 0.0
        %618 = vmatpush1.msra.mxu0 0.0
        %619 = vmatprep.subr.mxu0 0.0
        %620 = vmatpush1.msra.mxu0 0.0
        %621 = vmatprep.subr.mxu0 0.0
        %622 = vmatpush1.msra.mxu0 0.0
        %623 = vmatprep.subr.mxu0 0.0
        %624 = vmatpush1.msra.mxu0 0.0
        %625 = vmatprep.subr.mxu0 0.0
        %626 = vmatpush1.msra.mxu0 0.0
        %627 = vmatprep.subr.mxu0 0.0
        %628 = vmatpush1.msra.mxu0 0.0
        %629 = vmatprep.subr.mxu0 0.0
        %630 = vmatpush1.msra.mxu0 0.0
        %631 = vmatprep.subr.mxu0 0.0
        %632 = vmatpush1.msra.mxu0 0.0
        %633 = vmatprep.subr.mxu0 0.0
        %634 = vmatpush1.msra.mxu0 0.0
        %635 = vmatprep.subr.mxu0 0.0
        %636 = vmatpush1.msra.mxu0 0.0
        %637 = vmatprep.subr.mxu0 0.0
        %638 = vmatpush1.msra.mxu0 0.0
        %639 = vmatprep.subr.mxu0 0.0
        %640 = vmatpush1.msra.mxu0 0.0
        %641 = vmatprep.mubr.f32.mxu0 0.0
        %642 = vmatmul.mubr.f32.gmra.mrb[0].mxu0 %v572
        %v643 = vpop.f32.mrb[0].mxu0
        %v644 = vadd.f32 0.0, %v643
        %v645 = vpop.f32.mrb[0].mxu0
        %v646 = vadd.f32 0.0, %v645
        %647 = vmatprep.mubr.f32.mxu0 0.0
        %648 = vmatmul.mubr.f32.gmra.mrb[0].mxu0 %v575
        %v649 = vpop.f32.mrb[0].mxu0
        %v650 = vadd.f32 0.0, %v649
        %v651 = vpop.f32.mrb[0].mxu0
        %v652 = vadd.f32 0.0, %v651
        %653 = vdwg.mxu0
        %654 = vmatprep.subr.mxu0 0.0
        %655 = vmatpush1.msra.mxu0 %v567
        %656 = vmatprep.subr.mxu0 0.0
        %657 = vmatpush1.msra.mxu0 0.0
        %658 = vmatprep.subr.mxu0 0.0
        %659 = vmatpush1.msra.mxu0 0.0
        %660 = vmatprep.subr.mxu0 0.0
        %661 = vmatpush1.msra.mxu0 0.0
        %662 = vmatprep.subr.mxu0 0.0
        %663 = vmatpush1.msra.mxu0 0.0
        %664 = vmatprep.subr.mxu0 0.0
        %665 = vmatpush1.msra.mxu0 0.0
        %666 = vmatprep.subr.mxu0 0.0
        %667 = vmatpush1.msra.mxu0 0.0
        %668 = vmatprep.subr.mxu0 0.0
        %669 = vmatpush1.msra.mxu0 0.0
        %670 = vmatprep.subr.mxu0 0.0
        %671 = vmatpush1.msra.mxu0 0.0
        %672 = vmatprep.subr.mxu0 0.0
        %673 = vmatpush1.msra.mxu0 0.0
        %674 = vmatprep.subr.mxu0 0.0
        %675 = vmatpush1.msra.mxu0 0.0
        %676 = vmatprep.subr.mxu0 0.0
        %677 = vmatpush1.msra.mxu0 0.0
        %678 = vmatprep.subr.mxu0 0.0
        %679 = vmatpush1.msra.mxu0 0.0
        %680 = vmatprep.subr.mxu0 0.0
        %681 = vmatpush1.msra.mxu0 0.0
        %682 = vmatprep.subr.mxu0 0.0
        %683 = vmatpush1.msra.mxu0 0.0
        %684 = vmatprep.subr.mxu0 0.0
        %685 = vmatpush1.msra.mxu0 0.0
        %686 = vmatprep.subr.mxu0 0.0
        %687 = vmatpush1.msra.mxu0 0.0
        %688 = vmatprep.subr.mxu0 0.0
        %689 = vmatpush1.msra.mxu0 0.0
        %690 = vmatprep.subr.mxu0 0.0
        %691 = vmatpush1.msra.mxu0 0.0
        %692 = vmatprep.subr.mxu0 0.0
        %693 = vmatpush1.msra.mxu0 0.0
        %694 = vmatprep.subr.mxu0 0.0
        %695 = vmatpush1.msra.mxu0 0.0
        %696 = vmatprep.subr.mxu0 0.0
        %697 = vmatpush1.msra.mxu0 0.0
        %698 = vmatprep.subr.mxu0 0.0
        %699 = vmatpush1.msra.mxu0 0.0
        %700 = vmatprep.subr.mxu0 0.0
        %701 = vmatpush1.msra.mxu0 0.0
        %702 = vmatprep.subr.mxu0 0.0
        %703 = vmatpush1.msra.mxu0 0.0
        %704 = vmatprep.subr.mxu0 0.0
        %705 = vmatpush1.msra.mxu0 0.0
        %706 = vmatprep.subr.mxu0 0.0
        %707 = vmatpush1.msra.mxu0 0.0
        %708 = vmatprep.subr.mxu0 0.0
        %709 = vmatpush1.msra.mxu0 0.0
        %710 = vmatprep.subr.mxu0 0.0
        %711 = vmatpush1.msra.mxu0 0.0
        %712 = vmatprep.subr.mxu0 0.0
        %713 = vmatpush1.msra.mxu0 0.0
        %714 = vmatprep.subr.mxu0 0.0
        %715 = vmatpush1.msra.mxu0 0.0
        %716 = vmatprep.subr.mxu0 0.0
        %717 = vmatpush1.msra.mxu0 0.0
        %718 = vmatprep.mubr.f32.mxu0 0.0
        %719 = vmatmul.mubr.f32.gmra.mrb[0].mxu0 %v572
        %v720 = vpop.f32.mrb[0].mxu0
        %v721 = vadd.f32 0.0, %v720
        %v722 = vpop.f32.mrb[0].mxu0
        %723 = vmatprep.mubr.f32.mxu0 0.0
        %724 = vmatmul.mubr.f32.gmra.mrb[0].mxu0 %v575
        %v725 = vpop.f32.mrb[0].mxu0
        %v726 = vadd.f32 0.0, %v725
        %v727 = vpop.f32.mrb[0].mxu0
        %728 = vdwg.mxu0
        %v729 = vadd.f32 %v547, %v644
        %v730 = vadd.f32 %v548, %v646
        %v731 = vadd.f32 %v549, %v721
        %v732 = vadd.f32 %v550, %v650
        %v733 = vadd.f32 %v551, %v652
        %v734 = vadd.f32 %v552, %v726
        %s735 = scalar_lea.vmem %s1, 32
        %v736 = vld [vmem:[%s735] sm:$0xff]
        %v737 = vld [vmem:[%s735 + $0x8] sm:$0xff]
        %738 = vrot.lane.b32.xlu0 %v349, 17
        %v739 = vpop.permute.xlu0 %738
        %740 = vrot.lane.b32.xlu0 %v350, 17
        %v741 = vpop.permute.xlu0 %740
        %742 = vrot.lane.b32.xlu0 %v351, 17
        %v743 = vpop.permute.xlu0 %742
        %744 = vrot.lane.b32.xlu0 %v352, 17
        %v745 = vpop.permute.xlu0 %744
        %vm746 = vcmask 138240
        %v747 = vsel %vm746, %v739, %v741
        %v748 = vsel %vm746, %v741, %v743
        %v749 = vsel %vm746, %v743, %v745
        %v754 = vsel %vm388, %v736, 0
        %v757 = vsel %vm388, %v737, 0
        %759 = vmatprep.subr.mxu0 %v748
        %760 = vmatpush1.msra.mxu0 %v747
        %761 = vmatprep.subr.mxu0 0.0
        %762 = vmatpush1.msra.mxu0 0.0
        %763 = vmatprep.subr.mxu0 0.0
        %764 = vmatpush1.msra.mxu0 0.0
        %765 = vmatprep.subr.mxu0 0.0
        %766 = vmatpush1.msra.mxu0 0.0
        %767 = vmatprep.subr.mxu0 0.0
        %768 = vmatpush1.msra.mxu0 0.0
        %769 = vmatprep.subr.mxu0 0.0
        %770 = vmatpush1.msra.mxu0 0.0
        %771 = vmatprep.subr.mxu0 0.0
        %772 = vmatpush1.msra.mxu0 0.0
        %773 = vmatprep.subr.mxu0 0.0
        %774 = vmatpush1.msra.mxu0 0.0
        %775 = vmatprep.subr.mxu0 0.0
        %776 = vmatpush1.msra.mxu0 0.0
        %777 = vmatprep.subr.mxu0 0.0
        %778 = vmatpush1.msra.mxu0 0.0
        %779 = vmatprep.subr.mxu0 0.0
        %780 = vmatpush1.msra.mxu0 0.0
        %781 = vmatprep.subr.mxu0 0.0
        %782 = vmatpush1.msra.mxu0 0.0
        %783 = vmatprep.subr.mxu0 0.0
        %784 = vmatpush1.msra.mxu0 0.0
        %785 = vmatprep.subr.mxu0 0.0
        %786 = vmatpush1.msra.mxu0 0.0
        %787 = vmatprep.subr.mxu0 0.0
        %788 = vmatpush1.msra.mxu0 0.0
        %789 = vmatprep.subr.mxu0 0.0
        %790 = vmatpush1.msra.mxu0 0.0
        %791 = vmatprep.subr.mxu0 0.0
        %792 = vmatpush1.msra.mxu0 0.0
        %793 = vmatprep.subr.mxu0 0.0
        %794 = vmatpush1.msra.mxu0 0.0
        %795 = vmatprep.subr.mxu0 0.0
        %796 = vmatpush1.msra.mxu0 0.0
        %797 = vmatprep.subr.mxu0 0.0
        %798 = vmatpush1.msra.mxu0 0.0
        %799 = vmatprep.subr.mxu0 0.0
        %800 = vmatpush1.msra.mxu0 0.0
        %801 = vmatprep.subr.mxu0 0.0
        %802 = vmatpush1.msra.mxu0 0.0
        %803 = vmatprep.subr.mxu0 0.0
        %804 = vmatpush1.msra.mxu0 0.0
        %805 = vmatprep.subr.mxu0 0.0
        %806 = vmatpush1.msra.mxu0 0.0
        %807 = vmatprep.subr.mxu0 0.0
        %808 = vmatpush1.msra.mxu0 0.0
        %809 = vmatprep.subr.mxu0 0.0
        %810 = vmatpush1.msra.mxu0 0.0
        %811 = vmatprep.subr.mxu0 0.0
        %812 = vmatpush1.msra.mxu0 0.0
        %813 = vmatprep.subr.mxu0 0.0
        %814 = vmatpush1.msra.mxu0 0.0
        %815 = vmatprep.subr.mxu0 0.0
        %816 = vmatpush1.msra.mxu0 0.0
        %817 = vmatprep.subr.mxu0 0.0
        %818 = vmatpush1.msra.mxu0 0.0
        %819 = vmatprep.subr.mxu0 0.0
        %820 = vmatpush1.msra.mxu0 0.0
        %821 = vmatprep.subr.mxu0 0.0
        %822 = vmatpush1.msra.mxu0 0.0
        %823 = vmatprep.mubr.f32.mxu0 0.0
        %824 = vmatmul.mubr.f32.gmra.mrb[0].mxu0 %v754
        %v825 = vpop.f32.mrb[0].mxu0
        %v826 = vadd.f32 0.0, %v825
        %v827 = vpop.f32.mrb[0].mxu0
        %v828 = vadd.f32 0.0, %v827
        %829 = vmatprep.mubr.f32.mxu0 0.0
        %830 = vmatmul.mubr.f32.gmra.mrb[0].mxu0 %v757
        %v831 = vpop.f32.mrb[0].mxu0
        %v832 = vadd.f32 0.0, %v831
        %v833 = vpop.f32.mrb[0].mxu0
        %v834 = vadd.f32 0.0, %v833
        %835 = vdwg.mxu0
        %836 = vmatprep.subr.mxu0 0.0
        %837 = vmatpush1.msra.mxu0 %v749
        %838 = vmatprep.subr.mxu0 0.0
        %839 = vmatpush1.msra.mxu0 0.0
        %840 = vmatprep.subr.mxu0 0.0
        %841 = vmatpush1.msra.mxu0 0.0
        %842 = vmatprep.subr.mxu0 0.0
        %843 = vmatpush1.msra.mxu0 0.0
        %844 = vmatprep.subr.mxu0 0.0
        %845 = vmatpush1.msra.mxu0 0.0
        %846 = vmatprep.subr.mxu0 0.0
        %847 = vmatpush1.msra.mxu0 0.0
        %848 = vmatprep.subr.mxu0 0.0
        %849 = vmatpush1.msra.mxu0 0.0
        %850 = vmatprep.subr.mxu0 0.0
        %851 = vmatpush1.msra.mxu0 0.0
        %852 = vmatprep.subr.mxu0 0.0
        %853 = vmatpush1.msra.mxu0 0.0
        %854 = vmatprep.subr.mxu0 0.0
        %855 = vmatpush1.msra.mxu0 0.0
        %856 = vmatprep.subr.mxu0 0.0
        %857 = vmatpush1.msra.mxu0 0.0
        %858 = vmatprep.subr.mxu0 0.0
        %859 = vmatpush1.msra.mxu0 0.0
        %860 = vmatprep.subr.mxu0 0.0
        %861 = vmatpush1.msra.mxu0 0.0
        %862 = vmatprep.subr.mxu0 0.0
        %863 = vmatpush1.msra.mxu0 0.0
        %864 = vmatprep.subr.mxu0 0.0
        %865 = vmatpush1.msra.mxu0 0.0
        %866 = vmatprep.subr.mxu0 0.0
        %867 = vmatpush1.msra.mxu0 0.0
        %868 = vmatprep.subr.mxu0 0.0
        %869 = vmatpush1.msra.mxu0 0.0
        %870 = vmatprep.subr.mxu0 0.0
        %871 = vmatpush1.msra.mxu0 0.0
        %872 = vmatprep.subr.mxu0 0.0
        %873 = vmatpush1.msra.mxu0 0.0
        %874 = vmatprep.subr.mxu0 0.0
        %875 = vmatpush1.msra.mxu0 0.0
        %876 = vmatprep.subr.mxu0 0.0
        %877 = vmatpush1.msra.mxu0 0.0
        %878 = vmatprep.subr.mxu0 0.0
        %879 = vmatpush1.msra.mxu0 0.0
        %880 = vmatprep.subr.mxu0 0.0
        %881 = vmatpush1.msra.mxu0 0.0
        %882 = vmatprep.subr.mxu0 0.0
        %883 = vmatpush1.msra.mxu0 0.0
        %884 = vmatprep.subr.mxu0 0.0
        %885 = vmatpush1.msra.mxu0 0.0
        %886 = vmatprep.subr.mxu0 0.0
        %887 = vmatpush1.msra.mxu0 0.0
        %888 = vmatprep.subr.mxu0 0.0
        %889 = vmatpush1.msra.mxu0 0.0
        %890 = vmatprep.subr.mxu0 0.0
        %891 = vmatpush1.msra.mxu0 0.0
        %892 = vmatprep.subr.mxu0 0.0
        %893 = vmatpush1.msra.mxu0 0.0
        %894 = vmatprep.subr.mxu0 0.0
        %895 = vmatpush1.msra.mxu0 0.0
        %896 = vmatprep.subr.mxu0 0.0
        %897 = vmatpush1.msra.mxu0 0.0
        %898 = vmatprep.subr.mxu0 0.0
        %899 = vmatpush1.msra.mxu0 0.0
        %900 = vmatprep.mubr.f32.mxu0 0.0
        %901 = vmatmul.mubr.f32.gmra.mrb[0].mxu0 %v754
        %v902 = vpop.f32.mrb[0].mxu0
        %v903 = vadd.f32 0.0, %v902
        %v904 = vpop.f32.mrb[0].mxu0
        %905 = vmatprep.mubr.f32.mxu0 0.0
        %906 = vmatmul.mubr.f32.gmra.mrb[0].mxu0 %v757
        %v907 = vpop.f32.mrb[0].mxu0
        %v908 = vadd.f32 0.0, %v907
        %v909 = vpop.f32.mrb[0].mxu0
        %910 = vdwg.mxu0
        %v911 = vadd.f32 %v729, %v826
        %v912 = vadd.f32 %v730, %v828
        %v913 = vadd.f32 %v731, %v903
        %v914 = vadd.f32 %v732, %v832
        %v915 = vadd.f32 %v733, %v834
        %v916 = vadd.f32 %v734, %v908
        %s917 = scalar_lea.vmem %s1, 48
        %v918 = vld [vmem:[%s917] sm:$0xff]
        %v919 = vld [vmem:[%s917 + $0x8] sm:$0xff]
        %920 = vrot.lane.b32.xlu0 %v349, 1
        %v921 = vpop.permute.xlu0 %920
        %922 = vrot.lane.b32.xlu0 %v350, 1
        %v923 = vpop.permute.xlu0 %922
        %924 = vrot.lane.b32.xlu0 %v351, 1
        %v925 = vpop.permute.xlu0 %924
        %926 = vrot.lane.b32.xlu0 %v352, 1
        %v927 = vpop.permute.xlu0 %926
        %vm928 = vcmask 7168
        %v929 = vsel %vm928, %v921, %v923
        %v930 = vsel %vm928, %v923, %v925
        %v931 = vsel %vm928, %v925, %v927
        %v936 = vsel %vm388, %v918, 0
        %v939 = vsel %vm388, %v919, 0
        %941 = vmatprep.subr.mxu0 %v930
        %942 = vmatpush1.msra.mxu0 %v929
        %943 = vmatprep.subr.mxu0 0.0
        %944 = vmatpush1.msra.mxu0 0.0
        %945 = vmatprep.subr.mxu0 0.0
        %946 = vmatpush1.msra.mxu0 0.0
        %947 = vmatprep.subr.mxu0 0.0
        %948 = vmatpush1.msra.mxu0 0.0
        %949 = vmatprep.subr.mxu0 0.0
        %950 = vmatpush1.msra.mxu0 0.0
        %951 = vmatprep.subr.mxu0 0.0
        %952 = vmatpush1.msra.mxu0 0.0
        %953 = vmatprep.subr.mxu0 0.0
        %954 = vmatpush1.msra.mxu0 0.0
        %955 = vmatprep.subr.mxu0 0.0
        %956 = vmatpush1.msra.mxu0 0.0
        %957 = vmatprep.subr.mxu0 0.0
        %958 = vmatpush1.msra.mxu0 0.0
        %959 = vmatprep.subr.mxu0 0.0
        %960 = vmatpush1.msra.mxu0 0.0
        %961 = vmatprep.subr.mxu0 0.0
        %962 = vmatpush1.msra.mxu0 0.0
        %963 = vmatprep.subr.mxu0 0.0
        %964 = vmatpush1.msra.mxu0 0.0
        %965 = vmatprep.subr.mxu0 0.0
        %966 = vmatpush1.msra.mxu0 0.0
        %967 = vmatprep.subr.mxu0 0.0
        %968 = vmatpush1.msra.mxu0 0.0
        %969 = vmatprep.subr.mxu0 0.0
        %970 = vmatpush1.msra.mxu0 0.0
        %971 = vmatprep.subr.mxu0 0.0
        %972 = vmatpush1.msra.mxu0 0.0
        %973 = vmatprep.subr.mxu0 0.0
        %974 = vmatpush1.msra.mxu0 0.0
        %975 = vmatprep.subr.mxu0 0.0
        %976 = vmatpush1.msra.mxu0 0.0
        %977 = vmatprep.subr.mxu0 0.0
        %978 = vmatpush1.msra.mxu0 0.0
        %979 = vmatprep.subr.mxu0 0.0
        %980 = vmatpush1.msra.mxu0 0.0
        %981 = vmatprep.subr.mxu0 0.0
        %982 = vmatpush1.msra.mxu0 0.0
        %983 = vmatprep.subr.mxu0 0.0
        %984 = vmatpush1.msra.mxu0 0.0
        %985 = vmatprep.subr.mxu0 0.0
        %986 = vmatpush1.msra.mxu0 0.0
        %987 = vmatprep.subr.mxu0 0.0
        %988 = vmatpush1.msra.mxu0 0.0
        %989 = vmatprep.subr.mxu0 0.0
        %990 = vmatpush1.msra.mxu0 0.0
        %991 = vmatprep.subr.mxu0 0.0
        %992 = vmatpush1.msra.mxu0 0.0
        %993 = vmatprep.subr.mxu0 0.0
        %994 = vmatpush1.msra.mxu0 0.0
        %995 = vmatprep.subr.mxu0 0.0
        %996 = vmatpush1.msra.mxu0 0.0
        %997 = vmatprep.subr.mxu0 0.0
        %998 = vmatpush1.msra.mxu0 0.0
        %999 = vmatprep.subr.mxu0 0.0
        %1000 = vmatpush1.msra.mxu0 0.0
        %1001 = vmatprep.subr.mxu0 0.0
        %1002 = vmatpush1.msra.mxu0 0.0
        %1003 = vmatprep.subr.mxu0 0.0
        %1004 = vmatpush1.msra.mxu0 0.0
        %1005 = vmatprep.mubr.f32.mxu0 0.0
        %1006 = vmatmul.mubr.f32.gmra.mrb[0].mxu0 %v936
        %v1007 = vpop.f32.mrb[0].mxu0
        %v1008 = vadd.f32 0.0, %v1007
        %v1009 = vpop.f32.mrb[0].mxu0
        %v1010 = vadd.f32 0.0, %v1009
        %1011 = vmatprep.mubr.f32.mxu0 0.0
        %1012 = vmatmul.mubr.f32.gmra.mrb[0].mxu0 %v939
        %v1013 = vpop.f32.mrb[0].mxu0
        %v1014 = vadd.f32 0.0, %v1013
        %v1015 = vpop.f32.mrb[0].mxu0
        %v1016 = vadd.f32 0.0, %v1015
        %1017 = vdwg.mxu0
        %1018 = vmatprep.subr.mxu0 0.0
        %1019 = vmatpush1.msra.mxu0 %v931
        %1020 = vmatprep.subr.mxu0 0.0
        %1021 = vmatpush1.msra.mxu0 0.0
        %1022 = vmatprep.subr.mxu0 0.0
        %1023 = vmatpush1.msra.mxu0 0.0
        %1024 = vmatprep.subr.mxu0 0.0
        %1025 = vmatpush1.msra.mxu0 0.0
        %1026 = vmatprep.subr.mxu0 0.0
        %1027 = vmatpush1.msra.mxu0 0.0
        %1028 = vmatprep.subr.mxu0 0.0
        %1029 = vmatpush1.msra.mxu0 0.0
        %1030 = vmatprep.subr.mxu0 0.0
        %1031 = vmatpush1.msra.mxu0 0.0
        %1032 = vmatprep.subr.mxu0 0.0
        %1033 = vmatpush1.msra.mxu0 0.0
        %1034 = vmatprep.subr.mxu0 0.0
        %1035 = vmatpush1.msra.mxu0 0.0
        %1036 = vmatprep.subr.mxu0 0.0
        %1037 = vmatpush1.msra.mxu0 0.0
        %1038 = vmatprep.subr.mxu0 0.0
        %1039 = vmatpush1.msra.mxu0 0.0
        %1040 = vmatprep.subr.mxu0 0.0
        %1041 = vmatpush1.msra.mxu0 0.0
        %1042 = vmatprep.subr.mxu0 0.0
        %1043 = vmatpush1.msra.mxu0 0.0
        %1044 = vmatprep.subr.mxu0 0.0
        %1045 = vmatpush1.msra.mxu0 0.0
        %1046 = vmatprep.subr.mxu0 0.0
        %1047 = vmatpush1.msra.mxu0 0.0
        %1048 = vmatprep.subr.mxu0 0.0
        %1049 = vmatpush1.msra.mxu0 0.0
        %1050 = vmatprep.subr.mxu0 0.0
        %1051 = vmatpush1.msra.mxu0 0.0
        %1052 = vmatprep.subr.mxu0 0.0
        %1053 = vmatpush1.msra.mxu0 0.0
        %1054 = vmatprep.subr.mxu0 0.0
        %1055 = vmatpush1.msra.mxu0 0.0
        %1056 = vmatprep.subr.mxu0 0.0
        %1057 = vmatpush1.msra.mxu0 0.0
        %1058 = vmatprep.subr.mxu0 0.0
        %1059 = vmatpush1.msra.mxu0 0.0
        %1060 = vmatprep.subr.mxu0 0.0
        %1061 = vmatpush1.msra.mxu0 0.0
        %1062 = vmatprep.subr.mxu0 0.0
        %1063 = vmatpush1.msra.mxu0 0.0
        %1064 = vmatprep.subr.mxu0 0.0
        %1065 = vmatpush1.msra.mxu0 0.0
        %1066 = vmatprep.subr.mxu0 0.0
        %1067 = vmatpush1.msra.mxu0 0.0
        %1068 = vmatprep.subr.mxu0 0.0
        %1069 = vmatpush1.msra.mxu0 0.0
        %1070 = vmatprep.subr.mxu0 0.0
        %1071 = vmatpush1.msra.mxu0 0.0
        %1072 = vmatprep.subr.mxu0 0.0
        %1073 = vmatpush1.msra.mxu0 0.0
        %1074 = vmatprep.subr.mxu0 0.0
        %1075 = vmatpush1.msra.mxu0 0.0
        %1076 = vmatprep.subr.mxu0 0.0
        %1077 = vmatpush1.msra.mxu0 0.0
        %1078 = vmatprep.subr.mxu0 0.0
        %1079 = vmatpush1.msra.mxu0 0.0
        %1080 = vmatprep.subr.mxu0 0.0
        %1081 = vmatpush1.msra.mxu0 0.0
        %1082 = vmatprep.mubr.f32.mxu0 0.0
        %1083 = vmatmul.mubr.f32.gmra.mrb[0].mxu0 %v936
        %v1084 = vpop.f32.mrb[0].mxu0
        %v1085 = vadd.f32 0.0, %v1084
        %v1086 = vpop.f32.mrb[0].mxu0
        %1087 = vmatprep.mubr.f32.mxu0 0.0
        %1088 = vmatmul.mubr.f32.gmra.mrb[0].mxu0 %v939
        %v1089 = vpop.f32.mrb[0].mxu0
        %v1090 = vadd.f32 0.0, %v1089
        %v1091 = vpop.f32.mrb[0].mxu0
        %1092 = vdwg.mxu0
        %v1093 = vadd.f32 %v911, %v1008
        %v1094 = vadd.f32 %v912, %v1010
        %v1095 = vadd.f32 %v913, %v1085
        %v1096 = vadd.f32 %v914, %v1014
        %v1097 = vadd.f32 %v915, %v1016
        %v1098 = vadd.f32 %v916, %v1090
        %s1099 = scalar_lea.vmem %s1, 64
        %v1100 = vld [vmem:[%s1099] sm:$0xff]
        %v1101 = vld [vmem:[%s1099 + $0x8] sm:$0xff]
        %v1103 = vsel %vm388, %v1100, 0
        %v1106 = vsel %vm388, %v1101, 0
        %1108 = vmatprep.subr.mxu0 %v351
        %1109 = vmatpush1.msra.mxu0 %v350
        %1110 = vmatprep.subr.mxu0 0.0
        %1111 = vmatpush1.msra.mxu0 0.0
        %1112 = vmatprep.subr.mxu0 0.0
        %1113 = vmatpush1.msra.mxu0 0.0
        %1114 = vmatprep.subr.mxu0 0.0
        %1115 = vmatpush1.msra.mxu0 0.0
        %1116 = vmatprep.subr.mxu0 0.0
        %1117 = vmatpush1.msra.mxu0 0.0
        %1118 = vmatprep.subr.mxu0 0.0
        %1119 = vmatpush1.msra.mxu0 0.0
        %1120 = vmatprep.subr.mxu0 0.0
        %1121 = vmatpush1.msra.mxu0 0.0
        %1122 = vmatprep.subr.mxu0 0.0
        %1123 = vmatpush1.msra.mxu0 0.0
        %1124 = vmatprep.subr.mxu0 0.0
        %1125 = vmatpush1.msra.mxu0 0.0
        %1126 = vmatprep.subr.mxu0 0.0
        %1127 = vmatpush1.msra.mxu0 0.0
        %1128 = vmatprep.subr.mxu0 0.0
        %1129 = vmatpush1.msra.mxu0 0.0
        %1130 = vmatprep.subr.mxu0 0.0
        %1131 = vmatpush1.msra.mxu0 0.0
        %1132 = vmatprep.subr.mxu0 0.0
        %1133 = vmatpush1.msra.mxu0 0.0
        %1134 = vmatprep.subr.mxu0 0.0
        %1135 = vmatpush1.msra.mxu0 0.0
        %1136 = vmatprep.subr.mxu0 0.0
        %1137 = vmatpush1.msra.mxu0 0.0
        %1138 = vmatprep.subr.mxu0 0.0
        %1139 = vmatpush1.msra.mxu0 0.0
        %1140 = vmatprep.subr.mxu0 0.0
        %1141 = vmatpush1.msra.mxu0 0.0
        %1142 = vmatprep.subr.mxu0 0.0
        %1143 = vmatpush1.msra.mxu0 0.0
        %1144 = vmatprep.subr.mxu0 0.0
        %1145 = vmatpush1.msra.mxu0 0.0
        %1146 = vmatprep.subr.mxu0 0.0
        %1147 = vmatpush1.msra.mxu0 0.0
        %1148 = vmatprep.subr.mxu0 0.0
        %1149 = vmatpush1.msra.mxu0 0.0
        %1150 = vmatprep.subr.mxu0 0.0
        %1151 = vmatpush1.msra.mxu0 0.0
        %1152 = vmatprep.subr.mxu0 0.0
        %1153 = vmatpush1.msra.mxu0 0.0
        %1154 = vmatprep.subr.mxu0 0.0
        %1155 = vmatpush1.msra.mxu0 0.0
        %1156 = vmatprep.subr.mxu0 0.0
        %1157 = vmatpush1.msra.mxu0 0.0
        %1158 = vmatprep.subr.mxu0 0.0
        %1159 = vmatpush1.msra.mxu0 0.0
        %1160 = vmatprep.subr.mxu0 0.0
        %1161 = vmatpush1.msra.mxu0 0.0
        %1162 = vmatprep.subr.mxu0 0.0
        %1163 = vmatpush1.msra.mxu0 0.0
        %1164 = vmatprep.subr.mxu0 0.0
        %1165 = vmatpush1.msra.mxu0 0.0
        %1166 = vmatprep.subr.mxu0 0.0
        %1167 = vmatpush1.msra.mxu0 0.0
        %1168 = vmatprep.subr.mxu0 0.0
        %1169 = vmatpush1.msra.mxu0 0.0
        %1170 = vmatprep.subr.mxu0 0.0
        %1171 = vmatpush1.msra.mxu0 0.0
        %1172 = vmatprep.mubr.f32.mxu0 0.0
        %1173 = vmatmul.mubr.f32.gmra.mrb[0].mxu0 %v1103
        %v1174 = vpop.f32.mrb[0].mxu0
        %v1175 = vadd.f32 0.0, %v1174
        %v1176 = vpop.f32.mrb[0].mxu0
        %v1177 = vadd.f32 0.0, %v1176
        %1178 = vmatprep.mubr.f32.mxu0 0.0
        %1179 = vmatmul.mubr.f32.gmra.mrb[0].mxu0 %v1106
        %v1180 = vpop.f32.mrb[0].mxu0
        %v1181 = vadd.f32 0.0, %v1180
        %v1182 = vpop.f32.mrb[0].mxu0
        %v1183 = vadd.f32 0.0, %v1182
        %1184 = vdwg.mxu0
        %1185 = vmatprep.subr.mxu0 0.0
        %1186 = vmatpush1.msra.mxu0 %v352
        %1187 = vmatprep.subr.mxu0 0.0
        %1188 = vmatpush1.msra.mxu0 0.0
        %1189 = vmatprep.subr.mxu0 0.0
        %1190 = vmatpush1.msra.mxu0 0.0
        %1191 = vmatprep.subr.mxu0 0.0
        %1192 = vmatpush1.msra.mxu0 0.0
        %1193 = vmatprep.subr.mxu0 0.0
        %1194 = vmatpush1.msra.mxu0 0.0
        %1195 = vmatprep.subr.mxu0 0.0
        %1196 = vmatpush1.msra.mxu0 0.0
        %1197 = vmatprep.subr.mxu0 0.0
        %1198 = vmatpush1.msra.mxu0 0.0
        %1199 = vmatprep.subr.mxu0 0.0
        %1200 = vmatpush1.msra.mxu0 0.0
        %1201 = vmatprep.subr.mxu0 0.0
        %1202 = vmatpush1.msra.mxu0 0.0
        %1203 = vmatprep.subr.mxu0 0.0
        %1204 = vmatpush1.msra.mxu0 0.0
        %1205 = vmatprep.subr.mxu0 0.0
        %1206 = vmatpush1.msra.mxu0 0.0
        %1207 = vmatprep.subr.mxu0 0.0
        %1208 = vmatpush1.msra.mxu0 0.0
        %1209 = vmatprep.subr.mxu0 0.0
        %1210 = vmatpush1.msra.mxu0 0.0
        %1211 = vmatprep.subr.mxu0 0.0
        %1212 = vmatpush1.msra.mxu0 0.0
        %1213 = vmatprep.subr.mxu0 0.0
        %1214 = vmatpush1.msra.mxu0 0.0
        %1215 = vmatprep.subr.mxu0 0.0
        %1216 = vmatpush1.msra.mxu0 0.0
        %1217 = vmatprep.subr.mxu0 0.0
        %1218 = vmatpush1.msra.mxu0 0.0
        %1219 = vmatprep.subr.mxu0 0.0
        %1220 = vmatpush1.msra.mxu0 0.0
        %1221 = vmatprep.subr.mxu0 0.0
        %1222 = vmatpush1.msra.mxu0 0.0
        %1223 = vmatprep.subr.mxu0 0.0
        %1224 = vmatpush1.msra.mxu0 0.0
        %1225 = vmatprep.subr.mxu0 0.0
        %1226 = vmatpush1.msra.mxu0 0.0
        %1227 = vmatprep.subr.mxu0 0.0
        %1228 = vmatpush1.msra.mxu0 0.0
        %1229 = vmatprep.subr.mxu0 0.0
        %1230 = vmatpush1.msra.mxu0 0.0
        %1231 = vmatprep.subr.mxu0 0.0
        %1232 = vmatpush1.msra.mxu0 0.0
        %1233 = vmatprep.subr.mxu0 0.0
        %1234 = vmatpush1.msra.mxu0 0.0
        %1235 = vmatprep.subr.mxu0 0.0
        %1236 = vmatpush1.msra.mxu0 0.0
        %1237 = vmatprep.subr.mxu0 0.0
        %1238 = vmatpush1.msra.mxu0 0.0
        %1239 = vmatprep.subr.mxu0 0.0
        %1240 = vmatpush1.msra.mxu0 0.0
        %1241 = vmatprep.subr.mxu0 0.0
        %1242 = vmatpush1.msra.mxu0 0.0
        %1243 = vmatprep.subr.mxu0 0.0
        %1244 = vmatpush1.msra.mxu0 0.0
        %1245 = vmatprep.subr.mxu0 0.0
        %1246 = vmatpush1.msra.mxu0 0.0
        %1247 = vmatprep.subr.mxu0 0.0
        %1248 = vmatpush1.msra.mxu0 0.0
        %1249 = vmatprep.mubr.f32.mxu0 0.0
        %1250 = vmatmul.mubr.f32.gmra.mrb[0].mxu0 %v1103
        %v1251 = vpop.f32.mrb[0].mxu0
        %v1252 = vadd.f32 0.0, %v1251
        %v1253 = vpop.f32.mrb[0].mxu0
        %1254 = vmatprep.mubr.f32.mxu0 0.0
        %1255 = vmatmul.mubr.f32.gmra.mrb[0].mxu0 %v1106
        %v1256 = vpop.f32.mrb[0].mxu0
        %v1257 = vadd.f32 0.0, %v1256
        %v1258 = vpop.f32.mrb[0].mxu0
        %1259 = vdwg.mxu0
        %v1260 = vadd.f32 %v1093, %v1175
        %v1261 = vadd.f32 %v1094, %v1177
        %v1262 = vadd.f32 %v1095, %v1252
        %v1263 = vadd.f32 %v1096, %v1181
        %v1264 = vadd.f32 %v1097, %v1183
        %v1265 = vadd.f32 %v1098, %v1257
        %s1266 = scalar_lea.vmem %s1, 80
        %v1267 = vld [vmem:[%s1266] sm:$0xff]
        %v1268 = vld [vmem:[%s1266 + $0x8] sm:$0xff]
        %1269 = vrot.lane.b32.xlu0 %v350, 127
        %v1270 = vpop.permute.xlu0 %1269
        %1271 = vrot.lane.b32.xlu0 %v351, 127
        %v1272 = vpop.permute.xlu0 %1271
        %1273 = vrot.lane.b32.xlu0 %v352, 127
        %v1274 = vpop.permute.xlu0 %1273
        %vm1275 = vcmask 1039360
        %v1276 = vsel %vm1275, %v1270, %v1272
        %v1277 = vsel %vm1275, %v1272, %v1274
        %v1282 = vsel %vm388, %v1267, 0
        %v1285 = vsel %vm388, %v1268, 0
        %1287 = vmatprep.subr.mxu0 %v1277
        %1288 = vmatpush1.msra.mxu0 %v1276
        %1289 = vmatprep.subr.mxu0 0.0
        %1290 = vmatpush1.msra.mxu0 0.0
        %1291 = vmatprep.subr.mxu0 0.0
        %1292 = vmatpush1.msra.mxu0 0.0
        %1293 = vmatprep.subr.mxu0 0.0
        %1294 = vmatpush1.msra.mxu0 0.0
        %1295 = vmatprep.subr.mxu0 0.0
        %1296 = vmatpush1.msra.mxu0 0.0
        %1297 = vmatprep.subr.mxu0 0.0
        %1298 = vmatpush1.msra.mxu0 0.0
        %1299 = vmatprep.subr.mxu0 0.0
        %1300 = vmatpush1.msra.mxu0 0.0
        %1301 = vmatprep.subr.mxu0 0.0
        %1302 = vmatpush1.msra.mxu0 0.0
        %1303 = vmatprep.subr.mxu0 0.0
        %1304 = vmatpush1.msra.mxu0 0.0
        %1305 = vmatprep.subr.mxu0 0.0
        %1306 = vmatpush1.msra.mxu0 0.0
        %1307 = vmatprep.subr.mxu0 0.0
        %1308 = vmatpush1.msra.mxu0 0.0
        %1309 = vmatprep.subr.mxu0 0.0
        %1310 = vmatpush1.msra.mxu0 0.0
        %1311 = vmatprep.subr.mxu0 0.0
        %1312 = vmatpush1.msra.mxu0 0.0
        %1313 = vmatprep.subr.mxu0 0.0
        %1314 = vmatpush1.msra.mxu0 0.0
        %1315 = vmatprep.subr.mxu0 0.0
        %1316 = vmatpush1.msra.mxu0 0.0
        %1317 = vmatprep.subr.mxu0 0.0
        %1318 = vmatpush1.msra.mxu0 0.0
        %1319 = vmatprep.subr.mxu0 0.0
        %1320 = vmatpush1.msra.mxu0 0.0
        %1321 = vmatprep.subr.mxu0 0.0
        %1322 = vmatpush1.msra.mxu0 0.0
        %1323 = vmatprep.subr.mxu0 0.0
        %1324 = vmatpush1.msra.mxu0 0.0
        %1325 = vmatprep.subr.mxu0 0.0
        %1326 = vmatpush1.msra.mxu0 0.0
        %1327 = vmatprep.subr.mxu0 0.0
        %1328 = vmatpush1.msra.mxu0 0.0
        %1329 = vmatprep.subr.mxu0 0.0
        %1330 = vmatpush1.msra.mxu0 0.0
        %1331 = vmatprep.subr.mxu0 0.0
        %1332 = vmatpush1.msra.mxu0 0.0
        %1333 = vmatprep.subr.mxu0 0.0
        %1334 = vmatpush1.msra.mxu0 0.0
        %1335 = vmatprep.subr.mxu0 0.0
        %1336 = vmatpush1.msra.mxu0 0.0
        %1337 = vmatprep.subr.mxu0 0.0
        %1338 = vmatpush1.msra.mxu0 0.0
        %1339 = vmatprep.subr.mxu0 0.0
        %1340 = vmatpush1.msra.mxu0 0.0
        %1341 = vmatprep.subr.mxu0 0.0
        %1342 = vmatpush1.msra.mxu0 0.0
        %1343 = vmatprep.subr.mxu0 0.0
        %1344 = vmatpush1.msra.mxu0 0.0
        %1345 = vmatprep.subr.mxu0 0.0
        %1346 = vmatpush1.msra.mxu0 0.0
        %1347 = vmatprep.subr.mxu0 0.0
        %1348 = vmatpush1.msra.mxu0 0.0
        %1349 = vmatprep.subr.mxu0 0.0
        %1350 = vmatpush1.msra.mxu0 0.0
        %1351 = vmatprep.mubr.f32.mxu0 0.0
        %1352 = vmatmul.mubr.f32.gmra.mrb[0].mxu0 %v1282
        %v1353 = vpop.f32.mrb[0].mxu0
        %v1354 = vadd.f32 0.0, %v1353
        %v1355 = vpop.f32.mrb[0].mxu0
        %v1356 = vadd.f32 0.0, %v1355
        %1357 = vmatprep.mubr.f32.mxu0 0.0
        %1358 = vmatmul.mubr.f32.gmra.mrb[0].mxu0 %v1285
        %v1359 = vpop.f32.mrb[0].mxu0
        %v1360 = vadd.f32 0.0, %v1359
        %v1361 = vpop.f32.mrb[0].mxu0
        %v1362 = vadd.f32 0.0, %v1361
        %1363 = vdwg.mxu0
        %1364 = vmatprep.subr.mxu0 0.0
        %1365 = vmatpush1.msra.mxu0 %v1274
        %1366 = vmatprep.subr.mxu0 0.0
        %1367 = vmatpush1.msra.mxu0 0.0
        %1368 = vmatprep.subr.mxu0 0.0
        %1369 = vmatpush1.msra.mxu0 0.0
        %1370 = vmatprep.subr.mxu0 0.0
        %1371 = vmatpush1.msra.mxu0 0.0
        %1372 = vmatprep.subr.mxu0 0.0
        %1373 = vmatpush1.msra.mxu0 0.0
        %1374 = vmatprep.subr.mxu0 0.0
        %1375 = vmatpush1.msra.mxu0 0.0
        %1376 = vmatprep.subr.mxu0 0.0
        %1377 = vmatpush1.msra.mxu0 0.0
        %1378 = vmatprep.subr.mxu0 0.0
        %1379 = vmatpush1.msra.mxu0 0.0
        %1380 = vmatprep.subr.mxu0 0.0
        %1381 = vmatpush1.msra.mxu0 0.0
        %1382 = vmatprep.subr.mxu0 0.0
        %1383 = vmatpush1.msra.mxu0 0.0
        %1384 = vmatprep.subr.mxu0 0.0
        %1385 = vmatpush1.msra.mxu0 0.0
        %1386 = vmatprep.subr.mxu0 0.0
        %1387 = vmatpush1.msra.mxu0 0.0
        %1388 = vmatprep.subr.mxu0 0.0
        %1389 = vmatpush1.msra.mxu0 0.0
        %1390 = vmatprep.subr.mxu0 0.0
        %1391 = vmatpush1.msra.mxu0 0.0
        %1392 = vmatprep.subr.mxu0 0.0
        %1393 = vmatpush1.msra.mxu0 0.0
        %1394 = vmatprep.subr.mxu0 0.0
        %1395 = vmatpush1.msra.mxu0 0.0
        %1396 = vmatprep.subr.mxu0 0.0
        %1397 = vmatpush1.msra.mxu0 0.0
        %1398 = vmatprep.subr.mxu0 0.0
        %1399 = vmatpush1.msra.mxu0 0.0
        %1400 = vmatprep.subr.mxu0 0.0
        %1401 = vmatpush1.msra.mxu0 0.0
        %1402 = vmatprep.subr.mxu0 0.0
        %1403 = vmatpush1.msra.mxu0 0.0
        %1404 = vmatprep.subr.mxu0 0.0
        %1405 = vmatpush1.msra.mxu0 0.0
        %1406 = vmatprep.subr.mxu0 0.0
        %1407 = vmatpush1.msra.mxu0 0.0
        %1408 = vmatprep.subr.mxu0 0.0
        %1409 = vmatpush1.msra.mxu0 0.0
        %1410 = vmatprep.subr.mxu0 0.0
        %1411 = vmatpush1.msra.mxu0 0.0
        %1412 = vmatprep.subr.mxu0 0.0
        %1413 = vmatpush1.msra.mxu0 0.0
        %1414 = vmatprep.subr.mxu0 0.0
        %1415 = vmatpush1.msra.mxu0 0.0
        %1416 = vmatprep.subr.mxu0 0.0
        %1417 = vmatpush1.msra.mxu0 0.0
        %1418 = vmatprep.subr.mxu0 0.0
        %1419 = vmatpush1.msra.mxu0 0.0
        %1420 = vmatprep.subr.mxu0 0.0
        %1421 = vmatpush1.msra.mxu0 0.0
        %1422 = vmatprep.subr.mxu0 0.0
        %1423 = vmatpush1.msra.mxu0 0.0
        %1424 = vmatprep.subr.mxu0 0.0
        %1425 = vmatpush1.msra.mxu0 0.0
        %1426 = vmatprep.subr.mxu0 0.0
        %1427 = vmatpush1.msra.mxu0 0.0
        %1428 = vmatprep.mubr.f32.mxu0 0.0
        %1429 = vmatmul.mubr.f32.gmra.mrb[0].mxu0 %v1282
        %v1430 = vpop.f32.mrb[0].mxu0
        %v1431 = vadd.f32 0.0, %v1430
        %v1432 = vpop.f32.mrb[0].mxu0
        %1433 = vmatprep.mubr.f32.mxu0 0.0
        %1434 = vmatmul.mubr.f32.gmra.mrb[0].mxu0 %v1285
        %v1435 = vpop.f32.mrb[0].mxu0
        %v1436 = vadd.f32 0.0, %v1435
        %v1437 = vpop.f32.mrb[0].mxu0
        %1438 = vdwg.mxu0
        %v1439 = vadd.f32 %v1260, %v1354
        %v1440 = vadd.f32 %v1261, %v1356
        %v1441 = vadd.f32 %v1262, %v1431
        %v1442 = vadd.f32 %v1263, %v1360
        %v1443 = vadd.f32 %v1264, %v1362
        %v1444 = vadd.f32 %v1265, %v1436
        %s1445 = scalar_lea.vmem %s1, 96
        %v1446 = vld [vmem:[%s1445] sm:$0xff]
        %v1447 = vld [vmem:[%s1445 + $0x8] sm:$0xff]
        %1448 = vrot.lane.b32.xlu0 %v350, 111
        %v1449 = vpop.permute.xlu0 %1448
        %1450 = vrot.lane.b32.xlu0 %v351, 111
        %v1451 = vpop.permute.xlu0 %1450
        %1452 = vrot.lane.b32.xlu0 %v352, 111
        %v1453 = vpop.permute.xlu0 %1452
        %vm1454 = vcmask 908288
        %v1455 = vsel %vm1454, %v1449, %v1451
        %v1456 = vsel %vm1454, %v1451, %v1453
        %v1461 = vsel %vm388, %v1446, 0
        %v1464 = vsel %vm388, %v1447, 0
        %1466 = vmatprep.subr.mxu0 %v1456
        %1467 = vmatpush1.msra.mxu0 %v1455
        %1468 = vmatprep.subr.mxu0 0.0
        %1469 = vmatpush1.msra.mxu0 0.0
        %1470 = vmatprep.subr.mxu0 0.0
        %1471 = vmatpush1.msra.mxu0 0.0
        %1472 = vmatprep.subr.mxu0 0.0
        %1473 = vmatpush1.msra.mxu0 0.0
        %1474 = vmatprep.subr.mxu0 0.0
        %1475 = vmatpush1.msra.mxu0 0.0
        %1476 = vmatprep.subr.mxu0 0.0
        %1477 = vmatpush1.msra.mxu0 0.0
        %1478 = vmatprep.subr.mxu0 0.0
        %1479 = vmatpush1.msra.mxu0 0.0
        %1480 = vmatprep.subr.mxu0 0.0
        %1481 = vmatpush1.msra.mxu0 0.0
        %1482 = vmatprep.subr.mxu0 0.0
        %1483 = vmatpush1.msra.mxu0 0.0
        %1484 = vmatprep.subr.mxu0 0.0
        %1485 = vmatpush1.msra.mxu0 0.0
        %1486 = vmatprep.subr.mxu0 0.0
        %1487 = vmatpush1.msra.mxu0 0.0
        %1488 = vmatprep.subr.mxu0 0.0
        %1489 = vmatpush1.msra.mxu0 0.0
        %1490 = vmatprep.subr.mxu0 0.0
        %1491 = vmatpush1.msra.mxu0 0.0
        %1492 = vmatprep.subr.mxu0 0.0
        %1493 = vmatpush1.msra.mxu0 0.0
        %1494 = vmatprep.subr.mxu0 0.0
        %1495 = vmatpush1.msra.mxu0 0.0
        %1496 = vmatprep.subr.mxu0 0.0
        %1497 = vmatpush1.msra.mxu0 0.0
        %1498 = vmatprep.subr.mxu0 0.0
        %1499 = vmatpush1.msra.mxu0 0.0
        %1500 = vmatprep.subr.mxu0 0.0
        %1501 = vmatpush1.msra.mxu0 0.0
        %1502 = vmatprep.subr.mxu0 0.0
        %1503 = vmatpush1.msra.mxu0 0.0
        %1504 = vmatprep.subr.mxu0 0.0
        %1505 = vmatpush1.msra.mxu0 0.0
        %1506 = vmatprep.subr.mxu0 0.0
        %1507 = vmatpush1.msra.mxu0 0.0
        %1508 = vmatprep.subr.mxu0 0.0
        %1509 = vmatpush1.msra.mxu0 0.0
        %1510 = vmatprep.subr.mxu0 0.0
        %1511 = vmatpush1.msra.mxu0 0.0
        %1512 = vmatprep.subr.mxu0 0.0
        %1513 = vmatpush1.msra.mxu0 0.0
        %1514 = vmatprep.subr.mxu0 0.0
        %1515 = vmatpush1.msra.mxu0 0.0
        %1516 = vmatprep.subr.mxu0 0.0
        %1517 = vmatpush1.msra.mxu0 0.0
        %1518 = vmatprep.subr.mxu0 0.0
        %1519 = vmatpush1.msra.mxu0 0.0
        %1520 = vmatprep.subr.mxu0 0.0
        %1521 = vmatpush1.msra.mxu0 0.0
        %1522 = vmatprep.subr.mxu0 0.0
        %1523 = vmatpush1.msra.mxu0 0.0
        %1524 = vmatprep.subr.mxu0 0.0
        %1525 = vmatpush1.msra.mxu0 0.0
        %1526 = vmatprep.subr.mxu0 0.0
        %1527 = vmatpush1.msra.mxu0 0.0
        %1528 = vmatprep.subr.mxu0 0.0
        %1529 = vmatpush1.msra.mxu0 0.0
        %1530 = vmatprep.mubr.f32.mxu0 0.0
        %1531 = vmatmul.mubr.f32.gmra.mrb[0].mxu0 %v1461
        %v1532 = vpop.f32.mrb[0].mxu0
        %v1533 = vadd.f32 0.0, %v1532
        %v1534 = vpop.f32.mrb[0].mxu0
        %v1535 = vadd.f32 0.0, %v1534
        %1536 = vmatprep.mubr.f32.mxu0 0.0
        %1537 = vmatmul.mubr.f32.gmra.mrb[0].mxu0 %v1464
        %v1538 = vpop.f32.mrb[0].mxu0
        %v1539 = vadd.f32 0.0, %v1538
        %v1540 = vpop.f32.mrb[0].mxu0
        %v1541 = vadd.f32 0.0, %v1540
        %1542 = vdwg.mxu0
        %1543 = vmatprep.subr.mxu0 0.0
        %1544 = vmatpush1.msra.mxu0 %v1453
        %1545 = vmatprep.subr.mxu0 0.0
        %1546 = vmatpush1.msra.mxu0 0.0
        %1547 = vmatprep.subr.mxu0 0.0
        %1548 = vmatpush1.msra.mxu0 0.0
        %1549 = vmatprep.subr.mxu0 0.0
        %1550 = vmatpush1.msra.mxu0 0.0
        %1551 = vmatprep.subr.mxu0 0.0
        %1552 = vmatpush1.msra.mxu0 0.0
        %1553 = vmatprep.subr.mxu0 0.0
        %1554 = vmatpush1.msra.mxu0 0.0
        %1555 = vmatprep.subr.mxu0 0.0
        %1556 = vmatpush1.msra.mxu0 0.0
        %1557 = vmatprep.subr.mxu0 0.0
        %1558 = vmatpush1.msra.mxu0 0.0
        %1559 = vmatprep.subr.mxu0 0.0
        %1560 = vmatpush1.msra.mxu0 0.0
        %1561 = vmatprep.subr.mxu0 0.0
        %1562 = vmatpush1.msra.mxu0 0.0
        %1563 = vmatprep.subr.mxu0 0.0
        %1564 = vmatpush1.msra.mxu0 0.0
        %1565 = vmatprep.subr.mxu0 0.0
        %1566 = vmatpush1.msra.mxu0 0.0
        %1567 = vmatprep.subr.mxu0 0.0
        %1568 = vmatpush1.msra.mxu0 0.0
        %1569 = vmatprep.subr.mxu0 0.0
        %1570 = vmatpush1.msra.mxu0 0.0
        %1571 = vmatprep.subr.mxu0 0.0
        %1572 = vmatpush1.msra.mxu0 0.0
        %1573 = vmatprep.subr.mxu0 0.0
        %1574 = vmatpush1.msra.mxu0 0.0
        %1575 = vmatprep.subr.mxu0 0.0
        %1576 = vmatpush1.msra.mxu0 0.0
        %1577 = vmatprep.subr.mxu0 0.0
        %1578 = vmatpush1.msra.mxu0 0.0
        %1579 = vmatprep.subr.mxu0 0.0
        %1580 = vmatpush1.msra.mxu0 0.0
        %1581 = vmatprep.subr.mxu0 0.0
        %1582 = vmatpush1.msra.mxu0 0.0
        %1583 = vmatprep.subr.mxu0 0.0
        %1584 = vmatpush1.msra.mxu0 0.0
        %1585 = vmatprep.subr.mxu0 0.0
        %1586 = vmatpush1.msra.mxu0 0.0
        %1587 = vmatprep.subr.mxu0 0.0
        %1588 = vmatpush1.msra.mxu0 0.0
        %1589 = vmatprep.subr.mxu0 0.0
        %1590 = vmatpush1.msra.mxu0 0.0
        %1591 = vmatprep.subr.mxu0 0.0
        %1592 = vmatpush1.msra.mxu0 0.0
        %1593 = vmatprep.subr.mxu0 0.0
        %1594 = vmatpush1.msra.mxu0 0.0
        %1595 = vmatprep.subr.mxu0 0.0
        %1596 = vmatpush1.msra.mxu0 0.0
        %1597 = vmatprep.subr.mxu0 0.0
        %1598 = vmatpush1.msra.mxu0 0.0
        %1599 = vmatprep.subr.mxu0 0.0
        %1600 = vmatpush1.msra.mxu0 0.0
        %1601 = vmatprep.subr.mxu0 0.0
        %1602 = vmatpush1.msra.mxu0 0.0
        %1603 = vmatprep.subr.mxu0 0.0
        %1604 = vmatpush1.msra.mxu0 0.0
        %1605 = vmatprep.subr.mxu0 0.0
        %1606 = vmatpush1.msra.mxu0 0.0
        %1607 = vmatprep.mubr.f32.mxu0 0.0
        %1608 = vmatmul.mubr.f32.gmra.mrb[0].mxu0 %v1461
        %v1609 = vpop.f32.mrb[0].mxu0
        %v1610 = vadd.f32 0.0, %v1609
        %v1611 = vpop.f32.mrb[0].mxu0
        %1612 = vmatprep.mubr.f32.mxu0 0.0
        %1613 = vmatmul.mubr.f32.gmra.mrb[0].mxu0 %v1464
        %v1614 = vpop.f32.mrb[0].mxu0
        %v1615 = vadd.f32 0.0, %v1614
        %v1616 = vpop.f32.mrb[0].mxu0
        %1617 = vdwg.mxu0
        %v1618 = vadd.f32 %v1439, %v1533
        %v1619 = vadd.f32 %v1440, %v1535
        %v1620 = vadd.f32 %v1441, %v1610
        %v1621 = vadd.f32 %v1442, %v1539
        %v1622 = vadd.f32 %v1443, %v1541
        %v1623 = vadd.f32 %v1444, %v1615
        %s1624 = scalar_lea.vmem %s1, 112
        %v1625 = vld [vmem:[%s1624] sm:$0xff]
        %v1626 = vld [vmem:[%s1624 + $0x8] sm:$0xff]
        %1627 = vrot.lane.b32.xlu0 %v350, 110
        %v1628 = vpop.permute.xlu0 %1627
        %1629 = vrot.lane.b32.xlu0 %v351, 110
        %v1630 = vpop.permute.xlu0 %1629
        %1631 = vrot.lane.b32.xlu0 %v352, 110
        %v1632 = vpop.permute.xlu0 %1631
        %vm1633 = vcmask 900096
        %v1634 = vsel %vm1633, %v1628, %v1630
        %v1635 = vsel %vm1633, %v1630, %v1632
        %v1640 = vsel %vm388, %v1625, 0
        %v1643 = vsel %vm388, %v1626, 0
        %1645 = vmatprep.subr.mxu0 %v1635
        %1646 = vmatpush1.msra.mxu0 %v1634
        %1647 = vmatprep.subr.mxu0 0.0
        %1648 = vmatpush1.msra.mxu0 0.0
        %1649 = vmatprep.subr.mxu0 0.0
        %1650 = vmatpush1.msra.mxu0 0.0
        %1651 = vmatprep.subr.mxu0 0.0
        %1652 = vmatpush1.msra.mxu0 0.0
        %1653 = vmatprep.subr.mxu0 0.0
        %1654 = vmatpush1.msra.mxu0 0.0
        %1655 = vmatprep.subr.mxu0 0.0
        %1656 = vmatpush1.msra.mxu0 0.0
        %1657 = vmatprep.subr.mxu0 0.0
        %1658 = vmatpush1.msra.mxu0 0.0
        %1659 = vmatprep.subr.mxu0 0.0
        %1660 = vmatpush1.msra.mxu0 0.0
        %1661 = vmatprep.subr.mxu0 0.0
        %1662 = vmatpush1.msra.mxu0 0.0
        %1663 = vmatprep.subr.mxu0 0.0
        %1664 = vmatpush1.msra.mxu0 0.0
        %1665 = vmatprep.subr.mxu0 0.0
        %1666 = vmatpush1.msra.mxu0 0.0
        %1667 = vmatprep.subr.mxu0 0.0
        %1668 = vmatpush1.msra.mxu0 0.0
        %1669 = vmatprep.subr.mxu0 0.0
        %1670 = vmatpush1.msra.mxu0 0.0
        %1671 = vmatprep.subr.mxu0 0.0
        %1672 = vmatpush1.msra.mxu0 0.0
        %1673 = vmatprep.subr.mxu0 0.0
        %1674 = vmatpush1.msra.mxu0 0.0
        %1675 = vmatprep.subr.mxu0 0.0
        %1676 = vmatpush1.msra.mxu0 0.0
        %1677 = vmatprep.subr.mxu0 0.0
        %1678 = vmatpush1.msra.mxu0 0.0
        %1679 = vmatprep.subr.mxu0 0.0
        %1680 = vmatpush1.msra.mxu0 0.0
        %1681 = vmatprep.subr.mxu0 0.0
        %1682 = vmatpush1.msra.mxu0 0.0
        %1683 = vmatprep.subr.mxu0 0.0
        %1684 = vmatpush1.msra.mxu0 0.0
        %1685 = vmatprep.subr.mxu0 0.0
        %1686 = vmatpush1.msra.mxu0 0.0
        %1687 = vmatprep.subr.mxu0 0.0
        %1688 = vmatpush1.msra.mxu0 0.0
        %1689 = vmatprep.subr.mxu0 0.0
        %1690 = vmatpush1.msra.mxu0 0.0
        %1691 = vmatprep.subr.mxu0 0.0
        %1692 = vmatpush1.msra.mxu0 0.0
        %1693 = vmatprep.subr.mxu0 0.0
        %1694 = vmatpush1.msra.mxu0 0.0
        %1695 = vmatprep.subr.mxu0 0.0
        %1696 = vmatpush1.msra.mxu0 0.0
        %1697 = vmatprep.subr.mxu0 0.0
        %1698 = vmatpush1.msra.mxu0 0.0
        %1699 = vmatprep.subr.mxu0 0.0
        %1700 = vmatpush1.msra.mxu0 0.0
        %1701 = vmatprep.subr.mxu0 0.0
        %1702 = vmatpush1.msra.mxu0 0.0
        %1703 = vmatprep.subr.mxu0 0.0
        %1704 = vmatpush1.msra.mxu0 0.0
        %1705 = vmatprep.subr.mxu0 0.0
        %1706 = vmatpush1.msra.mxu0 0.0
        %1707 = vmatprep.subr.mxu0 0.0
        %1708 = vmatpush1.msra.mxu0 0.0
        %1709 = vmatprep.mubr.f32.mxu0 0.0
        %1710 = vmatmul.mubr.f32.gmra.mrb[0].mxu0 %v1640
        %v1711 = vpop.f32.mrb[0].mxu0
        %v1712 = vadd.f32 0.0, %v1711
        %v1713 = vpop.f32.mrb[0].mxu0
        %v1714 = vadd.f32 0.0, %v1713
        %1715 = vmatprep.mubr.f32.mxu0 0.0
        %1716 = vmatmul.mubr.f32.gmra.mrb[0].mxu0 %v1643
        %v1717 = vpop.f32.mrb[0].mxu0
        %v1718 = vadd.f32 0.0, %v1717
        %v1719 = vpop.f32.mrb[0].mxu0
        %v1720 = vadd.f32 0.0, %v1719
        %1721 = vdwg.mxu0
        %1722 = vmatprep.subr.mxu0 0.0
        %1723 = vmatpush1.msra.mxu0 %v1632
        %1724 = vmatprep.subr.mxu0 0.0
        %1725 = vmatpush1.msra.mxu0 0.0
        %1726 = vmatprep.subr.mxu0 0.0
        %1727 = vmatpush1.msra.mxu0 0.0
        %1728 = vmatprep.subr.mxu0 0.0
        %1729 = vmatpush1.msra.mxu0 0.0
        %1730 = vmatprep.subr.mxu0 0.0
        %1731 = vmatpush1.msra.mxu0 0.0
        %1732 = vmatprep.subr.mxu0 0.0
        %1733 = vmatpush1.msra.mxu0 0.0
        %1734 = vmatprep.subr.mxu0 0.0
        %1735 = vmatpush1.msra.mxu0 0.0
        %1736 = vmatprep.subr.mxu0 0.0
        %1737 = vmatpush1.msra.mxu0 0.0
        %1738 = vmatprep.subr.mxu0 0.0
        %1739 = vmatpush1.msra.mxu0 0.0
        %1740 = vmatprep.subr.mxu0 0.0
        %1741 = vmatpush1.msra.mxu0 0.0
        %1742 = vmatprep.subr.mxu0 0.0
        %1743 = vmatpush1.msra.mxu0 0.0
        %1744 = vmatprep.subr.mxu0 0.0
        %1745 = vmatpush1.msra.mxu0 0.0
        %1746 = vmatprep.subr.mxu0 0.0
        %1747 = vmatpush1.msra.mxu0 0.0
        %1748 = vmatprep.subr.mxu0 0.0
        %1749 = vmatpush1.msra.mxu0 0.0
        %1750 = vmatprep.subr.mxu0 0.0
        %1751 = vmatpush1.msra.mxu0 0.0
        %1752 = vmatprep.subr.mxu0 0.0
        %1753 = vmatpush1.msra.mxu0 0.0
        %1754 = vmatprep.subr.mxu0 0.0
        %1755 = vmatpush1.msra.mxu0 0.0
        %1756 = vmatprep.subr.mxu0 0.0
        %1757 = vmatpush1.msra.mxu0 0.0
        %1758 = vmatprep.subr.mxu0 0.0
        %1759 = vmatpush1.msra.mxu0 0.0
        %1760 = vmatprep.subr.mxu0 0.0
        %1761 = vmatpush1.msra.mxu0 0.0
        %1762 = vmatprep.subr.mxu0 0.0
        %1763 = vmatpush1.msra.mxu0 0.0
        %1764 = vmatprep.subr.mxu0 0.0
        %1765 = vmatpush1.msra.mxu0 0.0
        %1766 = vmatprep.subr.mxu0 0.0
        %1767 = vmatpush1.msra.mxu0 0.0
        %1768 = vmatprep.subr.mxu0 0.0
        %1769 = vmatpush1.msra.mxu0 0.0
        %1770 = vmatprep.subr.mxu0 0.0
        %1771 = vmatpush1.msra.mxu0 0.0
        %1772 = vmatprep.subr.mxu0 0.0
        %1773 = vmatpush1.msra.mxu0 0.0
        %1774 = vmatprep.subr.mxu0 0.0
        %1775 = vmatpush1.msra.mxu0 0.0
        %1776 = vmatprep.subr.mxu0 0.0
        %1777 = vmatpush1.msra.mxu0 0.0
        %1778 = vmatprep.subr.mxu0 0.0
        %1779 = vmatpush1.msra.mxu0 0.0
        %1780 = vmatprep.subr.mxu0 0.0
        %1781 = vmatpush1.msra.mxu0 0.0
        %1782 = vmatprep.subr.mxu0 0.0
        %1783 = vmatpush1.msra.mxu0 0.0
        %1784 = vmatprep.subr.mxu0 0.0
        %1785 = vmatpush1.msra.mxu0 0.0
        %1786 = vmatprep.mubr.f32.mxu0 0.0
        %1787 = vmatmul.mubr.f32.gmra.mrb[0].mxu0 %v1640
        %v1788 = vpop.f32.mrb[0].mxu0
        %v1789 = vadd.f32 0.0, %v1788
        %v1790 = vpop.f32.mrb[0].mxu0
        %1791 = vmatprep.mubr.f32.mxu0 0.0
        %1792 = vmatmul.mubr.f32.gmra.mrb[0].mxu0 %v1643
        %v1793 = vpop.f32.mrb[0].mxu0
        %v1794 = vadd.f32 0.0, %v1793
        %v1795 = vpop.f32.mrb[0].mxu0
        %1796 = vdwg.mxu0
        %v1797 = vadd.f32 %v1618, %v1712
        %v1798 = vadd.f32 %v1619, %v1714
        %v1799 = vadd.f32 %v1620, %v1789
        %v1800 = vadd.f32 %v1621, %v1718
        %v1801 = vadd.f32 %v1622, %v1720
        %v1802 = vadd.f32 %v1623, %v1794
        %s1803 = scalar_lea.vmem %s1, 128
        %v1804 = vld [vmem:[%s1803] sm:$0xff]
        %v1805 = vld [vmem:[%s1803 + $0x8] sm:$0xff]
        %1806 = vrot.lane.b32.xlu0 %v350, 109
        %v1807 = vpop.permute.xlu0 %1806
        %1808 = vrot.lane.b32.xlu0 %v351, 109
        %v1809 = vpop.permute.xlu0 %1808
        %1810 = vrot.lane.b32.xlu0 %v352, 109
        %v1811 = vpop.permute.xlu0 %1810
        %vm1812 = vcmask 891904
        %v1813 = vsel %vm1812, %v1807, %v1809
        %v1814 = vsel %vm1812, %v1809, %v1811
        %v1819 = vsel %vm388, %v1804, 0
        %v1822 = vsel %vm388, %v1805, 0
        %1824 = vmatprep.subr.mxu0 %v1814
        %1825 = vmatpush1.msra.mxu0 %v1813
        %1826 = vmatprep.subr.mxu0 0.0
        %1827 = vmatpush1.msra.mxu0 0.0
        %1828 = vmatprep.subr.mxu0 0.0
        %1829 = vmatpush1.msra.mxu0 0.0
        %1830 = vmatprep.subr.mxu0 0.0
        %1831 = vmatpush1.msra.mxu0 0.0
        %1832 = vmatprep.subr.mxu0 0.0
        %1833 = vmatpush1.msra.mxu0 0.0
        %1834 = vmatprep.subr.mxu0 0.0
        %1835 = vmatpush1.msra.mxu0 0.0
        %1836 = vmatprep.subr.mxu0 0.0
        %1837 = vmatpush1.msra.mxu0 0.0
        %1838 = vmatprep.subr.mxu0 0.0
        %1839 = vmatpush1.msra.mxu0 0.0
        %1840 = vmatprep.subr.mxu0 0.0
        %1841 = vmatpush1.msra.mxu0 0.0
        %1842 = vmatprep.subr.mxu0 0.0
        %1843 = vmatpush1.msra.mxu0 0.0
        %1844 = vmatprep.subr.mxu0 0.0
        %1845 = vmatpush1.msra.mxu0 0.0
        %1846 = vmatprep.subr.mxu0 0.0
        %1847 = vmatpush1.msra.mxu0 0.0
        %1848 = vmatprep.subr.mxu0 0.0
        %1849 = vmatpush1.msra.mxu0 0.0
        %1850 = vmatprep.subr.mxu0 0.0
        %1851 = vmatpush1.msra.mxu0 0.0
        %1852 = vmatprep.subr.mxu0 0.0
        %1853 = vmatpush1.msra.mxu0 0.0
        %1854 = vmatprep.subr.mxu0 0.0
        %1855 = vmatpush1.msra.mxu0 0.0
        %1856 = vmatprep.subr.mxu0 0.0
        %1857 = vmatpush1.msra.mxu0 0.0
        %1858 = vmatprep.subr.mxu0 0.0
        %1859 = vmatpush1.msra.mxu0 0.0
        %1860 = vmatprep.subr.mxu0 0.0
        %1861 = vmatpush1.msra.mxu0 0.0
        %1862 = vmatprep.subr.mxu0 0.0
        %1863 = vmatpush1.msra.mxu0 0.0
        %1864 = vmatprep.subr.mxu0 0.0
        %1865 = vmatpush1.msra.mxu0 0.0
        %1866 = vmatprep.subr.mxu0 0.0
        %1867 = vmatpush1.msra.mxu0 0.0
        %1868 = vmatprep.subr.mxu0 0.0
        %1869 = vmatpush1.msra.mxu0 0.0
        %1870 = vmatprep.subr.mxu0 0.0
        %1871 = vmatpush1.msra.mxu0 0.0
        %1872 = vmatprep.subr.mxu0 0.0
        %1873 = vmatpush1.msra.mxu0 0.0
        %1874 = vmatprep.subr.mxu0 0.0
        %1875 = vmatpush1.msra.mxu0 0.0
        %1876 = vmatprep.subr.mxu0 0.0
        %1877 = vmatpush1.msra.mxu0 0.0
        %1878 = vmatprep.subr.mxu0 0.0
        %1879 = vmatpush1.msra.mxu0 0.0
        %1880 = vmatprep.subr.mxu0 0.0
        %1881 = vmatpush1.msra.mxu0 0.0
        %1882 = vmatprep.subr.mxu0 0.0
        %1883 = vmatpush1.msra.mxu0 0.0
        %1884 = vmatprep.subr.mxu0 0.0
        %1885 = vmatpush1.msra.mxu0 0.0
        %1886 = vmatprep.subr.mxu0 0.0
        %1887 = vmatpush1.msra.mxu0 0.0
        %1888 = vmatprep.mubr.f32.mxu0 0.0
        %1889 = vmatmul.mubr.f32.gmra.mrb[0].mxu0 %v1819
        %v1890 = vpop.f32.mrb[0].mxu0
        %v1891 = vadd.f32 0.0, %v1890
        %v1892 = vpop.f32.mrb[0].mxu0
        %v1893 = vadd.f32 0.0, %v1892
        %1894 = vmatprep.mubr.f32.mxu0 0.0
        %1895 = vmatmul.mubr.f32.gmra.mrb[0].mxu0 %v1822
        %v1896 = vpop.f32.mrb[0].mxu0
        %v1897 = vadd.f32 0.0, %v1896
        %v1898 = vpop.f32.mrb[0].mxu0
        %v1899 = vadd.f32 0.0, %v1898
        %1900 = vdwg.mxu0
        %1901 = vmatprep.subr.mxu0 0.0
        %1902 = vmatpush1.msra.mxu0 %v1811
        %1903 = vmatprep.subr.mxu0 0.0
        %1904 = vmatpush1.msra.mxu0 0.0
        %1905 = vmatprep.subr.mxu0 0.0
        %1906 = vmatpush1.msra.mxu0 0.0
        %1907 = vmatprep.subr.mxu0 0.0
        %1908 = vmatpush1.msra.mxu0 0.0
        %1909 = vmatprep.subr.mxu0 0.0
        %1910 = vmatpush1.msra.mxu0 0.0
        %1911 = vmatprep.subr.mxu0 0.0
        %1912 = vmatpush1.msra.mxu0 0.0
        %1913 = vmatprep.subr.mxu0 0.0
        %1914 = vmatpush1.msra.mxu0 0.0
        %1915 = vmatprep.subr.mxu0 0.0
        %1916 = vmatpush1.msra.mxu0 0.0
        %1917 = vmatprep.subr.mxu0 0.0
        %1918 = vmatpush1.msra.mxu0 0.0
        %1919 = vmatprep.subr.mxu0 0.0
        %1920 = vmatpush1.msra.mxu0 0.0
        %1921 = vmatprep.subr.mxu0 0.0
        %1922 = vmatpush1.msra.mxu0 0.0
        %1923 = vmatprep.subr.mxu0 0.0
        %1924 = vmatpush1.msra.mxu0 0.0
        %1925 = vmatprep.subr.mxu0 0.0
        %1926 = vmatpush1.msra.mxu0 0.0
        %1927 = vmatprep.subr.mxu0 0.0
        %1928 = vmatpush1.msra.mxu0 0.0
        %1929 = vmatprep.subr.mxu0 0.0
        %1930 = vmatpush1.msra.mxu0 0.0
        %1931 = vmatprep.subr.mxu0 0.0
        %1932 = vmatpush1.msra.mxu0 0.0
        %1933 = vmatprep.subr.mxu0 0.0
        %1934 = vmatpush1.msra.mxu0 0.0
        %1935 = vmatprep.subr.mxu0 0.0
        %1936 = vmatpush1.msra.mxu0 0.0
        %1937 = vmatprep.subr.mxu0 0.0
        %1938 = vmatpush1.msra.mxu0 0.0
        %1939 = vmatprep.subr.mxu0 0.0
        %1940 = vmatpush1.msra.mxu0 0.0
        %1941 = vmatprep.subr.mxu0 0.0
        %1942 = vmatpush1.msra.mxu0 0.0
        %1943 = vmatprep.subr.mxu0 0.0
        %1944 = vmatpush1.msra.mxu0 0.0
        %1945 = vmatprep.subr.mxu0 0.0
        %1946 = vmatpush1.msra.mxu0 0.0
        %1947 = vmatprep.subr.mxu0 0.0
        %1948 = vmatpush1.msra.mxu0 0.0
        %1949 = vmatprep.subr.mxu0 0.0
        %1950 = vmatpush1.msra.mxu0 0.0
        %1951 = vmatprep.subr.mxu0 0.0
        %1952 = vmatpush1.msra.mxu0 0.0
        %1953 = vmatprep.subr.mxu0 0.0
        %1954 = vmatpush1.msra.mxu0 0.0
        %1955 = vmatprep.subr.mxu0 0.0
        %1956 = vmatpush1.msra.mxu0 0.0
        %1957 = vmatprep.subr.mxu0 0.0
        %1958 = vmatpush1.msra.mxu0 0.0
        %1959 = vmatprep.subr.mxu0 0.0
        %1960 = vmatpush1.msra.mxu0 0.0
        %1961 = vmatprep.subr.mxu0 0.0
        %1962 = vmatpush1.msra.mxu0 0.0
        %1963 = vmatprep.subr.mxu0 0.0
        %1964 = vmatpush1.msra.mxu0 0.0
        %1965 = vmatprep.mubr.f32.mxu0 0.0
        %1966 = vmatmul.mubr.f32.gmra.mrb[0].mxu0 %v1819
        %v1967 = vpop.f32.mrb[0].mxu0
        %v1968 = vadd.f32 0.0, %v1967
        %v1969 = vpop.f32.mrb[0].mxu0
        %1970 = vmatprep.mubr.f32.mxu0 0.0
        %1971 = vmatmul.mubr.f32.gmra.mrb[0].mxu0 %v1822
        %v1972 = vpop.f32.mrb[0].mxu0
        %v1973 = vadd.f32 0.0, %v1972
        %v1974 = vpop.f32.mrb[0].mxu0
        %1975 = vdwg.mxu0
        %v1976 = vadd.f32 %v1797, %v1891
        %v1977 = vadd.f32 %v1798, %v1893
        %v1978 = vadd.f32 %v1799, %v1968
        %v1979 = vadd.f32 %v1800, %v1897
        %v1980 = vadd.f32 %v1801, %v1899
        %v1981 = vadd.f32 %v1802, %v1973
        %v1982 = vmax.f32 %v1976, %v1979
        %v1983 = vmax.f32 %v1977, %v1980
        %v1984 = vmax.f32 %v1978, %v1981
        %1985 = vst [vmem:[#allocation2 + $0x8] sm:$0xf] %v1982
        %1986 = vst [vmem:[#allocation2 + $0x10] sm:$0xf] %v1983
        %vm1987 = vcmask 551936
        %1988 = vst.msk [vmem:[#allocation2 + $0x18] sm:$0xf] %vm1987, %v1984
        %v1989 = vld [vmem:[#allocation2] sm:$0xff]
        %v1990 = vld [vmem:[#allocation2 + $0x8] sm:$0xff]
        %v1991 = vld [vmem:[#allocation2 + $0x10] sm:$0xff]
        %v1992 = vld [vmem:[#allocation2 + $0x18] sm:$0xff]
        %v1993 = vsel %vm254, %v1989, 0.0
        %v1994 = vsel %vm255, %v1990, 0.0
        %v1995 = vsel %vm256, %v1991, 0.0
        %v1996 = vsel %vm257, %v1992, 0.0
        %v1997 = vld [vmem:[%s4] sm:$0xff]
        %v1998 = vld [vmem:[%s4 + $0x8] sm:$0xff]
        %2000 = vset.pattern.permute.xlu0 0
        %2001 = vperm.xlu0 %2000, %v1997
        %v2002 = vpop.permute.xlu0 %2001
        %2005 = vset.pattern.permute.xlu0 0
        %2006 = vperm.xlu0 %2005, %v1998
        %v2007 = vpop.permute.xlu0 %2006
        %v2009 = vadd.f32 %v2002, 0.0
        %v2010 = vadd.f32 %v2007, 0.0
        %v2011 = vld [vmem:[%s3] sm:$0xff]
        %v2012 = vld [vmem:[%s3 + $0x8] sm:$0xff]
        %2017 = vrot.lane.b32.xlu0 %v1993, 19
        %v2018 = vpop.permute.xlu0 %2017
        %2019 = vrot.lane.b32.xlu0 %v1994, 19
        %v2020 = vpop.permute.xlu0 %2019
        %2021 = vrot.lane.b32.xlu0 %v1995, 19
        %v2022 = vpop.permute.xlu0 %2021
        %2023 = vrot.lane.b32.xlu0 %v1996, 19
        %v2024 = vpop.permute.xlu0 %2023
        %v2025 = vsel %vm381, %v2018, %v2020
        %v2026 = vsel %vm381, %v2020, %v2022
        %v2027 = vsel %vm381, %v2022, %v2024
        %v2032 = vsel %vm388, %v2011, 0
        %v2035 = vsel %vm388, %v2012, 0
        %2037 = vmatprep.subr.mxu0 %v2026
        %2038 = vmatpush1.msra.mxu0 %v2025
        %2039 = vmatprep.subr.mxu0 0.0
        %2040 = vmatpush1.msra.mxu0 0.0
        %2041 = vmatprep.subr.mxu0 0.0
        %2042 = vmatpush1.msra.mxu0 0.0
        %2043 = vmatprep.subr.mxu0 0.0
        %2044 = vmatpush1.msra.mxu0 0.0
        %2045 = vmatprep.subr.mxu0 0.0
        %2046 = vmatpush1.msra.mxu0 0.0
        %2047 = vmatprep.subr.mxu0 0.0
        %2048 = vmatpush1.msra.mxu0 0.0
        %2049 = vmatprep.subr.mxu0 0.0
        %2050 = vmatpush1.msra.mxu0 0.0
        %2051 = vmatprep.subr.mxu0 0.0
        %2052 = vmatpush1.msra.mxu0 0.0
        %2053 = vmatprep.subr.mxu0 0.0
        %2054 = vmatpush1.msra.mxu0 0.0
        %2055 = vmatprep.subr.mxu0 0.0
        %2056 = vmatpush1.msra.mxu0 0.0
        %2057 = vmatprep.subr.mxu0 0.0
        %2058 = vmatpush1.msra.mxu0 0.0
        %2059 = vmatprep.subr.mxu0 0.0
        %2060 = vmatpush1.msra.mxu0 0.0
        %2061 = vmatprep.subr.mxu0 0.0
        %2062 = vmatpush1.msra.mxu0 0.0
        %2063 = vmatprep.subr.mxu0 0.0
        %2064 = vmatpush1.msra.mxu0 0.0
        %2065 = vmatprep.subr.mxu0 0.0
        %2066 = vmatpush1.msra.mxu0 0.0
        %2067 = vmatprep.subr.mxu0 0.0
        %2068 = vmatpush1.msra.mxu0 0.0
        %2069 = vmatprep.subr.mxu0 0.0
        %2070 = vmatpush1.msra.mxu0 0.0
        %2071 = vmatprep.subr.mxu0 0.0
        %2072 = vmatpush1.msra.mxu0 0.0
        %2073 = vmatprep.subr.mxu0 0.0
        %2074 = vmatpush1.msra.mxu0 0.0
        %2075 = vmatprep.subr.mxu0 0.0
        %2076 = vmatpush1.msra.mxu0 0.0
        %2077 = vmatprep.subr.mxu0 0.0
        %2078 = vmatpush1.msra.mxu0 0.0
        %2079 = vmatprep.subr.mxu0 0.0
        %2080 = vmatpush1.msra.mxu0 0.0
        %2081 = vmatprep.subr.mxu0 0.0
        %2082 = vmatpush1.msra.mxu0 0.0
        %2083 = vmatprep.subr.mxu0 0.0
        %2084 = vmatpush1.msra.mxu0 0.0
        %2085 = vmatprep.subr.mxu0 0.0
        %2086 = vmatpush1.msra.mxu0 0.0
        %2087 = vmatprep.subr.mxu0 0.0
        %2088 = vmatpush1.msra.mxu0 0.0
        %2089 = vmatprep.subr.mxu0 0.0
        %2090 = vmatpush1.msra.mxu0 0.0
        %2091 = vmatprep.subr.mxu0 0.0
        %2092 = vmatpush1.msra.mxu0 0.0
        %2093 = vmatprep.subr.mxu0 0.0
        %2094 = vmatpush1.msra.mxu0 0.0
        %2095 = vmatprep.subr.mxu0 0.0
        %2096 = vmatpush1.msra.mxu0 0.0
        %2097 = vmatprep.subr.mxu0 0.0
        %2098 = vmatpush1.msra.mxu0 0.0
        %2099 = vmatprep.subr.mxu0 0.0
        %2100 = vmatpush1.msra.mxu0 0.0
        %2101 = vmatprep.mubr.f32.mxu0 0.0
        %2102 = vmatmul.mubr.f32.gmra.mrb[0].mxu0 %v2032
        %v2103 = vpop.f32.mrb[0].mxu0
        %v2104 = vadd.f32 0.0, %v2103
        %v2105 = vpop.f32.mrb[0].mxu0
        %v2106 = vadd.f32 0.0, %v2105
        %2107 = vmatprep.mubr.f32.mxu0 0.0
        %2108 = vmatmul.mubr.f32.gmra.mrb[0].mxu0 %v2035
        %v2109 = vpop.f32.mrb[0].mxu0
        %v2110 = vadd.f32 0.0, %v2109
        %v2111 = vpop.f32.mrb[0].mxu0
        %v2112 = vadd.f32 0.0, %v2111
        %2113 = vdwg.mxu0
        %2114 = vmatprep.subr.mxu0 0.0
        %2115 = vmatpush1.msra.mxu0 %v2027
        %2116 = vmatprep.subr.mxu0 0.0
        %2117 = vmatpush1.msra.mxu0 0.0
        %2118 = vmatprep.subr.mxu0 0.0
        %2119 = vmatpush1.msra.mxu0 0.0
        %2120 = vmatprep.subr.mxu0 0.0
        %2121 = vmatpush1.msra.mxu0 0.0
        %2122 = vmatprep.subr.mxu0 0.0
        %2123 = vmatpush1.msra.mxu0 0.0
        %2124 = vmatprep.subr.mxu0 0.0
        %2125 = vmatpush1.msra.mxu0 0.0
        %2126 = vmatprep.subr.mxu0 0.0
        %2127 = vmatpush1.msra.mxu0 0.0
        %2128 = vmatprep.subr.mxu0 0.0
        %2129 = vmatpush1.msra.mxu0 0.0
        %2130 = vmatprep.subr.mxu0 0.0
        %2131 = vmatpush1.msra.mxu0 0.0
        %2132 = vmatprep.subr.mxu0 0.0
        %2133 = vmatpush1.msra.mxu0 0.0
        %2134 = vmatprep.subr.mxu0 0.0
        %2135 = vmatpush1.msra.mxu0 0.0
        %2136 = vmatprep.subr.mxu0 0.0
        %2137 = vmatpush1.msra.mxu0 0.0
        %2138 = vmatprep.subr.mxu0 0.0
        %2139 = vmatpush1.msra.mxu0 0.0
        %2140 = vmatprep.subr.mxu0 0.0
        %2141 = vmatpush1.msra.mxu0 0.0
        %2142 = vmatprep.subr.mxu0 0.0
        %2143 = vmatpush1.msra.mxu0 0.0
        %2144 = vmatprep.subr.mxu0 0.0
        %2145 = vmatpush1.msra.mxu0 0.0
        %2146 = vmatprep.subr.mxu0 0.0
        %2147 = vmatpush1.msra.mxu0 0.0
        %2148 = vmatprep.subr.mxu0 0.0
        %2149 = vmatpush1.msra.mxu0 0.0
        %2150 = vmatprep.subr.mxu0 0.0
        %2151 = vmatpush1.msra.mxu0 0.0
        %2152 = vmatprep.subr.mxu0 0.0
        %2153 = vmatpush1.msra.mxu0 0.0
        %2154 = vmatprep.subr.mxu0 0.0
        %2155 = vmatpush1.msra.mxu0 0.0
        %2156 = vmatprep.subr.mxu0 0.0
        %2157 = vmatpush1.msra.mxu0 0.0
        %2158 = vmatprep.subr.mxu0 0.0
        %2159 = vmatpush1.msra.mxu0 0.0
        %2160 = vmatprep.subr.mxu0 0.0
        %2161 = vmatpush1.msra.mxu0 0.0
        %2162 = vmatprep.subr.mxu0 0.0
        %2163 = vmatpush1.msra.mxu0 0.0
        %2164 = vmatprep.subr.mxu0 0.0
        %2165 = vmatpush1.msra.mxu0 0.0
        %2166 = vmatprep.subr.mxu0 0.0
        %2167 = vmatpush1.msra.mxu0 0.0
        %2168 = vmatprep.subr.mxu0 0.0
        %2169 = vmatpush1.msra.mxu0 0.0
        %2170 = vmatprep.subr.mxu0 0.0
        %2171 = vmatpush1.msra.mxu0 0.0
        %2172 = vmatprep.subr.mxu0 0.0
        %2173 = vmatpush1.msra.mxu0 0.0
        %2174 = vmatprep.subr.mxu0 0.0
        %2175 = vmatpush1.msra.mxu0 0.0
        %2176 = vmatprep.subr.mxu0 0.0
        %2177 = vmatpush1.msra.mxu0 0.0
        %2178 = vmatprep.mubr.f32.mxu0 0.0
        %2179 = vmatmul.mubr.f32.gmra.mrb[0].mxu0 %v2032
        %v2180 = vpop.f32.mrb[0].mxu0
        %v2181 = vadd.f32 0.0, %v2180
        %v2182 = vpop.f32.mrb[0].mxu0
        %2183 = vmatprep.mubr.f32.mxu0 0.0
        %2184 = vmatmul.mubr.f32.gmra.mrb[0].mxu0 %v2035
        %v2185 = vpop.f32.mrb[0].mxu0
        %v2186 = vadd.f32 0.0, %v2185
        %v2187 = vpop.f32.mrb[0].mxu0
        %2188 = vdwg.mxu0
        %v2189 = vadd.f32 %v2009, %v2104
        %v2190 = vadd.f32 %v2009, %v2106
        %v2191 = vadd.f32 %v2009, %v2181
        %v2192 = vadd.f32 %v2010, %v2110
        %v2193 = vadd.f32 %v2010, %v2112
        %v2194 = vadd.f32 %v2010, %v2186
        %s2195 = scalar_lea.vmem %s3, 16
        %v2196 = vld [vmem:[%s2195] sm:$0xff]
        %v2197 = vld [vmem:[%s2195 + $0x8] sm:$0xff]
        %2198 = vrot.lane.b32.xlu0 %v1993, 18
        %v2199 = vpop.permute.xlu0 %2198
        %2200 = vrot.lane.b32.xlu0 %v1994, 18
        %v2201 = vpop.permute.xlu0 %2200
        %2202 = vrot.lane.b32.xlu0 %v1995, 18
        %v2203 = vpop.permute.xlu0 %2202
        %2204 = vrot.lane.b32.xlu0 %v1996, 18
        %v2205 = vpop.permute.xlu0 %2204
        %v2206 = vsel %vm564, %v2199, %v2201
        %v2207 = vsel %vm564, %v2201, %v2203
        %v2208 = vsel %vm564, %v2203, %v2205
        %v2213 = vsel %vm388, %v2196, 0
        %v2216 = vsel %vm388, %v2197, 0
        %2218 = vmatprep.subr.mxu0 %v2207
        %2219 = vmatpush1.msra.mxu0 %v2206
        %2220 = vmatprep.subr.mxu0 0.0
        %2221 = vmatpush1.msra.mxu0 0.0
        %2222 = vmatprep.subr.mxu0 0.0
        %2223 = vmatpush1.msra.mxu0 0.0
        %2224 = vmatprep.subr.mxu0 0.0
        %2225 = vmatpush1.msra.mxu0 0.0
        %2226 = vmatprep.subr.mxu0 0.0
        %2227 = vmatpush1.msra.mxu0 0.0
        %2228 = vmatprep.subr.mxu0 0.0
        %2229 = vmatpush1.msra.mxu0 0.0
        %2230 = vmatprep.subr.mxu0 0.0
        %2231 = vmatpush1.msra.mxu0 0.0
        %2232 = vmatprep.subr.mxu0 0.0
        %2233 = vmatpush1.msra.mxu0 0.0
        %2234 = vmatprep.subr.mxu0 0.0
        %2235 = vmatpush1.msra.mxu0 0.0
        %2236 = vmatprep.subr.mxu0 0.0
        %2237 = vmatpush1.msra.mxu0 0.0
        %2238 = vmatprep.subr.mxu0 0.0
        %2239 = vmatpush1.msra.mxu0 0.0
        %2240 = vmatprep.subr.mxu0 0.0
        %2241 = vmatpush1.msra.mxu0 0.0
        %2242 = vmatprep.subr.mxu0 0.0
        %2243 = vmatpush1.msra.mxu0 0.0
        %2244 = vmatprep.subr.mxu0 0.0
        %2245 = vmatpush1.msra.mxu0 0.0
        %2246 = vmatprep.subr.mxu0 0.0
        %2247 = vmatpush1.msra.mxu0 0.0
        %2248 = vmatprep.subr.mxu0 0.0
        %2249 = vmatpush1.msra.mxu0 0.0
        %2250 = vmatprep.subr.mxu0 0.0
        %2251 = vmatpush1.msra.mxu0 0.0
        %2252 = vmatprep.subr.mxu0 0.0
        %2253 = vmatpush1.msra.mxu0 0.0
        %2254 = vmatprep.subr.mxu0 0.0
        %2255 = vmatpush1.msra.mxu0 0.0
        %2256 = vmatprep.subr.mxu0 0.0
        %2257 = vmatpush1.msra.mxu0 0.0
        %2258 = vmatprep.subr.mxu0 0.0
        %2259 = vmatpush1.msra.mxu0 0.0
        %2260 = vmatprep.subr.mxu0 0.0
        %2261 = vmatpush1.msra.mxu0 0.0
        %2262 = vmatprep.subr.mxu0 0.0
        %2263 = vmatpush1.msra.mxu0 0.0
        %2264 = vmatprep.subr.mxu0 0.0
        %2265 = vmatpush1.msra.mxu0 0.0
        %2266 = vmatprep.subr.mxu0 0.0
        %2267 = vmatpush1.msra.mxu0 0.0
        %2268 = vmatprep.subr.mxu0 0.0
        %2269 = vmatpush1.msra.mxu0 0.0
        %2270 = vmatprep.subr.mxu0 0.0
        %2271 = vmatpush1.msra.mxu0 0.0
        %2272 = vmatprep.subr.mxu0 0.0
        %2273 = vmatpush1.msra.mxu0 0.0
        %2274 = vmatprep.subr.mxu0 0.0
        %2275 = vmatpush1.msra.mxu0 0.0
        %2276 = vmatprep.subr.mxu0 0.0
        %2277 = vmatpush1.msra.mxu0 0.0
        %2278 = vmatprep.subr.mxu0 0.0
        %2279 = vmatpush1.msra.mxu0 0.0
        %2280 = vmatprep.subr.mxu0 0.0
        %2281 = vmatpush1.msra.mxu0 0.0
        %2282 = vmatprep.mubr.f32.mxu0 0.0
        %2283 = vmatmul.mubr.f32.gmra.mrb[0].mxu0 %v2213
        %v2284 = vpop.f32.mrb[0].mxu0
        %v2285 = vadd.f32 0.0, %v2284
        %v2286 = vpop.f32.mrb[0].mxu0
        %v2287 = vadd.f32 0.0, %v2286
        %2288 = vmatprep.mubr.f32.mxu0 0.0
        %2289 = vmatmul.mubr.f32.gmra.mrb[0].mxu0 %v2216
        %v2290 = vpop.f32.mrb[0].mxu0
        %v2291 = vadd.f32 0.0, %v2290
        %v2292 = vpop.f32.mrb[0].mxu0
        %v2293 = vadd.f32 0.0, %v2292
        %2294 = vdwg.mxu0
        %2295 = vmatprep.subr.mxu0 0.0
        %2296 = vmatpush1.msra.mxu0 %v2208
        %2297 = vmatprep.subr.mxu0 0.0
        %2298 = vmatpush1.msra.mxu0 0.0
        %2299 = vmatprep.subr.mxu0 0.0
        %2300 = vmatpush1.msra.mxu0 0.0
        %2301 = vmatprep.subr.mxu0 0.0
        %2302 = vmatpush1.msra.mxu0 0.0
        %2303 = vmatprep.subr.mxu0 0.0
        %2304 = vmatpush1.msra.mxu0 0.0
        %2305 = vmatprep.subr.mxu0 0.0
        %2306 = vmatpush1.msra.mxu0 0.0
        %2307 = vmatprep.subr.mxu0 0.0
        %2308 = vmatpush1.msra.mxu0 0.0
        %2309 = vmatprep.subr.mxu0 0.0
        %2310 = vmatpush1.msra.mxu0 0.0
        %2311 = vmatprep.subr.mxu0 0.0
        %2312 = vmatpush1.msra.mxu0 0.0
        %2313 = vmatprep.subr.mxu0 0.0
        %2314 = vmatpush1.msra.mxu0 0.0
        %2315 = vmatprep.subr.mxu0 0.0
        %2316 = vmatpush1.msra.mxu0 0.0
        %2317 = vmatprep.subr.mxu0 0.0
        %2318 = vmatpush1.msra.mxu0 0.0
        %2319 = vmatprep.subr.mxu0 0.0
        %2320 = vmatpush1.msra.mxu0 0.0
        %2321 = vmatprep.subr.mxu0 0.0
        %2322 = vmatpush1.msra.mxu0 0.0
        %2323 = vmatprep.subr.mxu0 0.0
        %2324 = vmatpush1.msra.mxu0 0.0
        %2325 = vmatprep.subr.mxu0 0.0
        %2326 = vmatpush1.msra.mxu0 0.0
        %2327 = vmatprep.subr.mxu0 0.0
        %2328 = vmatpush1.msra.mxu0 0.0
        %2329 = vmatprep.subr.mxu0 0.0
        %2330 = vmatpush1.msra.mxu0 0.0
        %2331 = vmatprep.subr.mxu0 0.0
        %2332 = vmatpush1.msra.mxu0 0.0
        %2333 = vmatprep.subr.mxu0 0.0
        %2334 = vmatpush1.msra.mxu0 0.0
        %2335 = vmatprep.subr.mxu0 0.0
        %2336 = vmatpush1.msra.mxu0 0.0
        %2337 = vmatprep.subr.mxu0 0.0
        %2338 = vmatpush1.msra.mxu0 0.0
        %2339 = vmatprep.subr.mxu0 0.0
        %2340 = vmatpush1.msra.mxu0 0.0
        %2341 = vmatprep.subr.mxu0 0.0
        %2342 = vmatpush1.msra.mxu0 0.0
        %2343 = vmatprep.subr.mxu0 0.0
        %2344 = vmatpush1.msra.mxu0 0.0
        %2345 = vmatprep.subr.mxu0 0.0
        %2346 = vmatpush1.msra.mxu0 0.0
        %2347 = vmatprep.subr.mxu0 0.0
        %2348 = vmatpush1.msra.mxu0 0.0
        %2349 = vmatprep.subr.mxu0 0.0
        %2350 = vmatpush1.msra.mxu0 0.0
        %2351 = vmatprep.subr.mxu0 0.0
        %2352 = vmatpush1.msra.mxu0 0.0
        %2353 = vmatprep.subr.mxu0 0.0
        %2354 = vmatpush1.msra.mxu0 0.0
        %2355 = vmatprep.subr.mxu0 0.0
        %2356 = vmatpush1.msra.mxu0 0.0
        %2357 = vmatprep.subr.mxu0 0.0
        %2358 = vmatpush1.msra.mxu0 0.0
        %2359 = vmatprep.mubr.f32.mxu0 0.0
        %2360 = vmatmul.mubr.f32.gmra.mrb[0].mxu0 %v2213
        %v2361 = vpop.f32.mrb[0].mxu0
        %v2362 = vadd.f32 0.0, %v2361
        %v2363 = vpop.f32.mrb[0].mxu0
        %2364 = vmatprep.mubr.f32.mxu0 0.0
        %2365 = vmatmul.mubr.f32.gmra.mrb[0].mxu0 %v2216
        %v2366 = vpop.f32.mrb[0].mxu0
        %v2367 = vadd.f32 0.0, %v2366
        %v2368 = vpop.f32.mrb[0].mxu0
        %2369 = vdwg.mxu0
        %v2370 = vadd.f32 %v2189, %v2285
        %v2371 = vadd.f32 %v2190, %v2287
        %v2372 = vadd.f32 %v2191, %v2362
        %v2373 = vadd.f32 %v2192, %v2291
        %v2374 = vadd.f32 %v2193, %v2293
        %v2375 = vadd.f32 %v2194, %v2367
        %s2376 = scalar_lea.vmem %s3, 32
        %v2377 = vld [vmem:[%s2376] sm:$0xff]
        %v2378 = vld [vmem:[%s2376 + $0x8] sm:$0xff]
        %2379 = vrot.lane.b32.xlu0 %v1993, 17
        %v2380 = vpop.permute.xlu0 %2379
        %2381 = vrot.lane.b32.xlu0 %v1994, 17
        %v2382 = vpop.permute.xlu0 %2381
        %2383 = vrot.lane.b32.xlu0 %v1995, 17
        %v2384 = vpop.permute.xlu0 %2383
        %2385 = vrot.lane.b32.xlu0 %v1996, 17
        %v2386 = vpop.permute.xlu0 %2385
        %v2387 = vsel %vm746, %v2380, %v2382
        %v2388 = vsel %vm746, %v2382, %v2384
        %v2389 = vsel %vm746, %v2384, %v2386
        %v2394 = vsel %vm388, %v2377, 0
        %v2397 = vsel %vm388, %v2378, 0
        %2399 = vmatprep.subr.mxu0 %v2388
        %2400 = vmatpush1.msra.mxu0 %v2387
        %2401 = vmatprep.subr.mxu0 0.0
        %2402 = vmatpush1.msra.mxu0 0.0
        %2403 = vmatprep.subr.mxu0 0.0
        %2404 = vmatpush1.msra.mxu0 0.0
        %2405 = vmatprep.subr.mxu0 0.0
        %2406 = vmatpush1.msra.mxu0 0.0
        %2407 = vmatprep.subr.mxu0 0.0
        %2408 = vmatpush1.msra.mxu0 0.0
        %2409 = vmatprep.subr.mxu0 0.0
        %2410 = vmatpush1.msra.mxu0 0.0
        %2411 = vmatprep.subr.mxu0 0.0
        %2412 = vmatpush1.msra.mxu0 0.0
        %2413 = vmatprep.subr.mxu0 0.0
        %2414 = vmatpush1.msra.mxu0 0.0
        %2415 = vmatprep.subr.mxu0 0.0
        %2416 = vmatpush1.msra.mxu0 0.0
        %2417 = vmatprep.subr.mxu0 0.0
        %2418 = vmatpush1.msra.mxu0 0.0
        %2419 = vmatprep.subr.mxu0 0.0
        %2420 = vmatpush1.msra.mxu0 0.0
        %2421 = vmatprep.subr.mxu0 0.0
        %2422 = vmatpush1.msra.mxu0 0.0
        %2423 = vmatprep.subr.mxu0 0.0
        %2424 = vmatpush1.msra.mxu0 0.0
        %2425 = vmatprep.subr.mxu0 0.0
        %2426 = vmatpush1.msra.mxu0 0.0
        %2427 = vmatprep.subr.mxu0 0.0
        %2428 = vmatpush1.msra.mxu0 0.0
        %2429 = vmatprep.subr.mxu0 0.0
        %2430 = vmatpush1.msra.mxu0 0.0
        %2431 = vmatprep.subr.mxu0 0.0
        %2432 = vmatpush1.msra.mxu0 0.0
        %2433 = vmatprep.subr.mxu0 0.0
        %2434 = vmatpush1.msra.mxu0 0.0
        %2435 = vmatprep.subr.mxu0 0.0
        %2436 = vmatpush1.msra.mxu0 0.0
        %2437 = vmatprep.subr.mxu0 0.0
        %2438 = vmatpush1.msra.mxu0 0.0
        %2439 = vmatprep.subr.mxu0 0.0
        %2440 = vmatpush1.msra.mxu0 0.0
        %2441 = vmatprep.subr.mxu0 0.0
        %2442 = vmatpush1.msra.mxu0 0.0
        %2443 = vmatprep.subr.mxu0 0.0
        %2444 = vmatpush1.msra.mxu0 0.0
        %2445 = vmatprep.subr.mxu0 0.0
        %2446 = vmatpush1.msra.mxu0 0.0
        %2447 = vmatprep.subr.mxu0 0.0
        %2448 = vmatpush1.msra.mxu0 0.0
        %2449 = vmatprep.subr.mxu0 0.0
        %2450 = vmatpush1.msra.mxu0 0.0
        %2451 = vmatprep.subr.mxu0 0.0
        %2452 = vmatpush1.msra.mxu0 0.0
        %2453 = vmatprep.subr.mxu0 0.0
        %2454 = vmatpush1.msra.mxu0 0.0
        %2455 = vmatprep.subr.mxu0 0.0
        %2456 = vmatpush1.msra.mxu0 0.0
        %2457 = vmatprep.subr.mxu0 0.0
        %2458 = vmatpush1.msra.mxu0 0.0
        %2459 = vmatprep.subr.mxu0 0.0
        %2460 = vmatpush1.msra.mxu0 0.0
        %2461 = vmatprep.subr.mxu0 0.0
        %2462 = vmatpush1.msra.mxu0 0.0
        %2463 = vmatprep.mubr.f32.mxu0 0.0
        %2464 = vmatmul.mubr.f32.gmra.mrb[0].mxu0 %v2394
        %v2465 = vpop.f32.mrb[0].mxu0
        %v2466 = vadd.f32 0.0, %v2465
        %v2467 = vpop.f32.mrb[0].mxu0
        %v2468 = vadd.f32 0.0, %v2467
        %2469 = vmatprep.mubr.f32.mxu0 0.0
        %2470 = vmatmul.mubr.f32.gmra.mrb[0].mxu0 %v2397
        %v2471 = vpop.f32.mrb[0].mxu0
        %v2472 = vadd.f32 0.0, %v2471
        %v2473 = vpop.f32.mrb[0].mxu0
        %v2474 = vadd.f32 0.0, %v2473
        %2475 = vdwg.mxu0
        %2476 = vmatprep.subr.mxu0 0.0
        %2477 = vmatpush1.msra.mxu0 %v2389
        %2478 = vmatprep.subr.mxu0 0.0
        %2479 = vmatpush1.msra.mxu0 0.0
        %2480 = vmatprep.subr.mxu0 0.0
        %2481 = vmatpush1.msra.mxu0 0.0
        %2482 = vmatprep.subr.mxu0 0.0
        %2483 = vmatpush1.msra.mxu0 0.0
        %2484 = vmatprep.subr.mxu0 0.0
        %2485 = vmatpush1.msra.mxu0 0.0
        %2486 = vmatprep.subr.mxu0 0.0
        %2487 = vmatpush1.msra.mxu0 0.0
        %2488 = vmatprep.subr.mxu0 0.0
        %2489 = vmatpush1.msra.mxu0 0.0
        %2490 = vmatprep.subr.mxu0 0.0
        %2491 = vmatpush1.msra.mxu0 0.0
        %2492 = vmatprep.subr.mxu0 0.0
        %2493 = vmatpush1.msra.mxu0 0.0
        %2494 = vmatprep.subr.mxu0 0.0
        %2495 = vmatpush1.msra.mxu0 0.0
        %2496 = vmatprep.subr.mxu0 0.0
        %2497 = vmatpush1.msra.mxu0 0.0
        %2498 = vmatprep.subr.mxu0 0.0
        %2499 = vmatpush1.msra.mxu0 0.0
        %2500 = vmatprep.subr.mxu0 0.0
        %2501 = vmatpush1.msra.mxu0 0.0
        %2502 = vmatprep.subr.mxu0 0.0
        %2503 = vmatpush1.msra.mxu0 0.0
        %2504 = vmatprep.subr.mxu0 0.0
        %2505 = vmatpush1.msra.mxu0 0.0
        %2506 = vmatprep.subr.mxu0 0.0
        %2507 = vmatpush1.msra.mxu0 0.0
        %2508 = vmatprep.subr.mxu0 0.0
        %2509 = vmatpush1.msra.mxu0 0.0
        %2510 = vmatprep.subr.mxu0 0.0
        %2511 = vmatpush1.msra.mxu0 0.0
        %2512 = vmatprep.subr.mxu0 0.0
        %2513 = vmatpush1.msra.mxu0 0.0
        %2514 = vmatprep.subr.mxu0 0.0
        %2515 = vmatpush1.msra.mxu0 0.0
        %2516 = vmatprep.subr.mxu0 0.0
        %2517 = vmatpush1.msra.mxu0 0.0
        %2518 = vmatprep.subr.mxu0 0.0
        %2519 = vmatpush1.msra.mxu0 0.0
        %2520 = vmatprep.subr.mxu0 0.0
        %2521 = vmatpush1.msra.mxu0 0.0
        %2522 = vmatprep.subr.mxu0 0.0
        %2523 = vmatpush1.msra.mxu0 0.0
        %2524 = vmatprep.subr.mxu0 0.0
        %2525 = vmatpush1.msra.mxu0 0.0
        %2526 = vmatprep.subr.mxu0 0.0
        %2527 = vmatpush1.msra.mxu0 0.0
        %2528 = vmatprep.subr.mxu0 0.0
        %2529 = vmatpush1.msra.mxu0 0.0
        %2530 = vmatprep.subr.mxu0 0.0
        %2531 = vmatpush1.msra.mxu0 0.0
        %2532 = vmatprep.subr.mxu0 0.0
        %2533 = vmatpush1.msra.mxu0 0.0
        %2534 = vmatprep.subr.mxu0 0.0
        %2535 = vmatpush1.msra.mxu0 0.0
        %2536 = vmatprep.subr.mxu0 0.0
        %2537 = vmatpush1.msra.mxu0 0.0
        %2538 = vmatprep.subr.mxu0 0.0
        %2539 = vmatpush1.msra.mxu0 0.0
        %2540 = vmatprep.mubr.f32.mxu0 0.0
        %2541 = vmatmul.mubr.f32.gmra.mrb[0].mxu0 %v2394
        %v2542 = vpop.f32.mrb[0].mxu0
        %v2543 = vadd.f32 0.0, %v2542
        %v2544 = vpop.f32.mrb[0].mxu0
        %2545 = vmatprep.mubr.f32.mxu0 0.0
        %2546 = vmatmul.mubr.f32.gmra.mrb[0].mxu0 %v2397
        %v2547 = vpop.f32.mrb[0].mxu0
        %v2548 = vadd.f32 0.0, %v2547
        %v2549 = vpop.f32.mrb[0].mxu0
        %2550 = vdwg.mxu0
        %v2551 = vadd.f32 %v2370, %v2466
        %v2552 = vadd.f32 %v2371, %v2468
        %v2553 = vadd.f32 %v2372, %v2543
        %v2554 = vadd.f32 %v2373, %v2472
        %v2555 = vadd.f32 %v2374, %v2474
        %v2556 = vadd.f32 %v2375, %v2548
        %s2557 = scalar_lea.vmem %s3, 48
        %v2558 = vld [vmem:[%s2557] sm:$0xff]
        %v2559 = vld [vmem:[%s2557 + $0x8] sm:$0xff]
        %2560 = vrot.lane.b32.xlu0 %v1993, 1
        %v2561 = vpop.permute.xlu0 %2560
        %2562 = vrot.lane.b32.xlu0 %v1994, 1
        %v2563 = vpop.permute.xlu0 %2562
        %2564 = vrot.lane.b32.xlu0 %v1995, 1
        %v2565 = vpop.permute.xlu0 %2564
        %2566 = vrot.lane.b32.xlu0 %v1996, 1
        %v2567 = vpop.permute.xlu0 %2566
        %v2568 = vsel %vm928, %v2561, %v2563
        %v2569 = vsel %vm928, %v2563, %v2565
        %v2570 = vsel %vm928, %v2565, %v2567
        %v2575 = vsel %vm388, %v2558, 0
        %v2578 = vsel %vm388, %v2559, 0
        %2580 = vmatprep.subr.mxu0 %v2569
        %2581 = vmatpush1.msra.mxu0 %v2568
        %2582 = vmatprep.subr.mxu0 0.0
        %2583 = vmatpush1.msra.mxu0 0.0
        %2584 = vmatprep.subr.mxu0 0.0
        %2585 = vmatpush1.msra.mxu0 0.0
        %2586 = vmatprep.subr.mxu0 0.0
        %2587 = vmatpush1.msra.mxu0 0.0
        %2588 = vmatprep.subr.mxu0 0.0
        %2589 = vmatpush1.msra.mxu0 0.0
        %2590 = vmatprep.subr.mxu0 0.0
        %2591 = vmatpush1.msra.mxu0 0.0
        %2592 = vmatprep.subr.mxu0 0.0
        %2593 = vmatpush1.msra.mxu0 0.0
        %2594 = vmatprep.subr.mxu0 0.0
        %2595 = vmatpush1.msra.mxu0 0.0
        %2596 = vmatprep.subr.mxu0 0.0
        %2597 = vmatpush1.msra.mxu0 0.0
        %2598 = vmatprep.subr.mxu0 0.0
        %2599 = vmatpush1.msra.mxu0 0.0
        %2600 = vmatprep.subr.mxu0 0.0
        %2601 = vmatpush1.msra.mxu0 0.0
        %2602 = vmatprep.subr.mxu0 0.0
        %2603 = vmatpush1.msra.mxu0 0.0
        %2604 = vmatprep.subr.mxu0 0.0
        %2605 = vmatpush1.msra.mxu0 0.0
        %2606 = vmatprep.subr.mxu0 0.0
        %2607 = vmatpush1.msra.mxu0 0.0
        %2608 = vmatprep.subr.mxu0 0.0
        %2609 = vmatpush1.msra.mxu0 0.0
        %2610 = vmatprep.subr.mxu0 0.0
        %2611 = vmatpush1.msra.mxu0 0.0
        %2612 = vmatprep.subr.mxu0 0.0
        %2613 = vmatpush1.msra.mxu0 0.0
        %2614 = vmatprep.subr.mxu0 0.0
        %2615 = vmatpush1.msra.mxu0 0.0
        %2616 = vmatprep.subr.mxu0 0.0
        %2617 = vmatpush1.msra.mxu0 0.0
        %2618 = vmatprep.subr.mxu0 0.0
        %2619 = vmatpush1.msra.mxu0 0.0
        %2620 = vmatprep.subr.mxu0 0.0
        %2621 = vmatpush1.msra.mxu0 0.0
        %2622 = vmatprep.subr.mxu0 0.0
        %2623 = vmatpush1.msra.mxu0 0.0
        %2624 = vmatprep.subr.mxu0 0.0
        %2625 = vmatpush1.msra.mxu0 0.0
        %2626 = vmatprep.subr.mxu0 0.0
        %2627 = vmatpush1.msra.mxu0 0.0
        %2628 = vmatprep.subr.mxu0 0.0
        %2629 = vmatpush1.msra.mxu0 0.0
        %2630 = vmatprep.subr.mxu0 0.0
        %2631 = vmatpush1.msra.mxu0 0.0
        %2632 = vmatprep.subr.mxu0 0.0
        %2633 = vmatpush1.msra.mxu0 0.0
        %2634 = vmatprep.subr.mxu0 0.0
        %2635 = vmatpush1.msra.mxu0 0.0
        %2636 = vmatprep.subr.mxu0 0.0
        %2637 = vmatpush1.msra.mxu0 0.0
        %2638 = vmatprep.subr.mxu0 0.0
        %2639 = vmatpush1.msra.mxu0 0.0
        %2640 = vmatprep.subr.mxu0 0.0
        %2641 = vmatpush1.msra.mxu0 0.0
        %2642 = vmatprep.subr.mxu0 0.0
        %2643 = vmatpush1.msra.mxu0 0.0
        %2644 = vmatprep.mubr.f32.mxu0 0.0
        %2645 = vmatmul.mubr.f32.gmra.mrb[0].mxu0 %v2575
        %v2646 = vpop.f32.mrb[0].mxu0
        %v2647 = vadd.f32 0.0, %v2646
        %v2648 = vpop.f32.mrb[0].mxu0
        %v2649 = vadd.f32 0.0, %v2648
        %2650 = vmatprep.mubr.f32.mxu0 0.0
        %2651 = vmatmul.mubr.f32.gmra.mrb[0].mxu0 %v2578
        %v2652 = vpop.f32.mrb[0].mxu0
        %v2653 = vadd.f32 0.0, %v2652
        %v2654 = vpop.f32.mrb[0].mxu0
        %v2655 = vadd.f32 0.0, %v2654
        %2656 = vdwg.mxu0
        %2657 = vmatprep.subr.mxu0 0.0
        %2658 = vmatpush1.msra.mxu0 %v2570
        %2659 = vmatprep.subr.mxu0 0.0
        %2660 = vmatpush1.msra.mxu0 0.0
        %2661 = vmatprep.subr.mxu0 0.0
        %2662 = vmatpush1.msra.mxu0 0.0
        %2663 = vmatprep.subr.mxu0 0.0
        %2664 = vmatpush1.msra.mxu0 0.0
        %2665 = vmatprep.subr.mxu0 0.0
        %2666 = vmatpush1.msra.mxu0 0.0
        %2667 = vmatprep.subr.mxu0 0.0
        %2668 = vmatpush1.msra.mxu0 0.0
        %2669 = vmatprep.subr.mxu0 0.0
        %2670 = vmatpush1.msra.mxu0 0.0
        %2671 = vmatprep.subr.mxu0 0.0
        %2672 = vmatpush1.msra.mxu0 0.0
        %2673 = vmatprep.subr.mxu0 0.0
        %2674 = vmatpush1.msra.mxu0 0.0
        %2675 = vmatprep.subr.mxu0 0.0
        %2676 = vmatpush1.msra.mxu0 0.0
        %2677 = vmatprep.subr.mxu0 0.0
        %2678 = vmatpush1.msra.mxu0 0.0
        %2679 = vmatprep.subr.mxu0 0.0
        %2680 = vmatpush1.msra.mxu0 0.0
        %2681 = vmatprep.subr.mxu0 0.0
        %2682 = vmatpush1.msra.mxu0 0.0
        %2683 = vmatprep.subr.mxu0 0.0
        %2684 = vmatpush1.msra.mxu0 0.0
        %2685 = vmatprep.subr.mxu0 0.0
        %2686 = vmatpush1.msra.mxu0 0.0
        %2687 = vmatprep.subr.mxu0 0.0
        %2688 = vmatpush1.msra.mxu0 0.0
        %2689 = vmatprep.subr.mxu0 0.0
        %2690 = vmatpush1.msra.mxu0 0.0
        %2691 = vmatprep.subr.mxu0 0.0
        %2692 = vmatpush1.msra.mxu0 0.0
        %2693 = vmatprep.subr.mxu0 0.0
        %2694 = vmatpush1.msra.mxu0 0.0
        %2695 = vmatprep.subr.mxu0 0.0
        %2696 = vmatpush1.msra.mxu0 0.0
        %2697 = vmatprep.subr.mxu0 0.0
        %2698 = vmatpush1.msra.mxu0 0.0
        %2699 = vmatprep.subr.mxu0 0.0
        %2700 = vmatpush1.msra.mxu0 0.0
        %2701 = vmatprep.subr.mxu0 0.0
        %2702 = vmatpush1.msra.mxu0 0.0
        %2703 = vmatprep.subr.mxu0 0.0
        %2704 = vmatpush1.msra.mxu0 0.0
        %2705 = vmatprep.subr.mxu0 0.0
        %2706 = vmatpush1.msra.mxu0 0.0
        %2707 = vmatprep.subr.mxu0 0.0
        %2708 = vmatpush1.msra.mxu0 0.0
        %2709 = vmatprep.subr.mxu0 0.0
        %2710 = vmatpush1.msra.mxu0 0.0
        %2711 = vmatprep.subr.mxu0 0.0
        %2712 = vmatpush1.msra.mxu0 0.0
        %2713 = vmatprep.subr.mxu0 0.0
        %2714 = vmatpush1.msra.mxu0 0.0
        %2715 = vmatprep.subr.mxu0 0.0
        %2716 = vmatpush1.msra.mxu0 0.0
        %2717 = vmatprep.subr.mxu0 0.0
        %2718 = vmatpush1.msra.mxu0 0.0
        %2719 = vmatprep.subr.mxu0 0.0
        %2720 = vmatpush1.msra.mxu0 0.0
        %2721 = vmatprep.mubr.f32.mxu0 0.0
        %2722 = vmatmul.mubr.f32.gmra.mrb[0].mxu0 %v2575
        %v2723 = vpop.f32.mrb[0].mxu0
        %v2724 = vadd.f32 0.0, %v2723
        %v2725 = vpop.f32.mrb[0].mxu0
        %2726 = vmatprep.mubr.f32.mxu0 0.0
        %2727 = vmatmul.mubr.f32.gmra.mrb[0].mxu0 %v2578
        %v2728 = vpop.f32.mrb[0].mxu0
        %v2729 = vadd.f32 0.0, %v2728
        %v2730 = vpop.f32.mrb[0].mxu0
        %2731 = vdwg.mxu0
        %v2732 = vadd.f32 %v2551, %v2647
        %v2733 = vadd.f32 %v2552, %v2649
        %v2734 = vadd.f32 %v2553, %v2724
        %v2735 = vadd.f32 %v2554, %v2653
        %v2736 = vadd.f32 %v2555, %v2655
        %v2737 = vadd.f32 %v2556, %v2729
        %s2738 = scalar_lea.vmem %s3, 64
        %v2739 = vld [vmem:[%s2738] sm:$0xff]
        %v2740 = vld [vmem:[%s2738 + $0x8] sm:$0xff]
        %v2742 = vsel %vm388, %v2739, 0
        %v2745 = vsel %vm388, %v2740, 0
        %2747 = vmatprep.subr.mxu0 %v1995
        %2748 = vmatpush1.msra.mxu0 %v1994
        %2749 = vmatprep.subr.mxu0 0.0
        %2750 = vmatpush1.msra.mxu0 0.0
        %2751 = vmatprep.subr.mxu0 0.0
        %2752 = vmatpush1.msra.mxu0 0.0
        %2753 = vmatprep.subr.mxu0 0.0
        %2754 = vmatpush1.msra.mxu0 0.0
        %2755 = vmatprep.subr.mxu0 0.0
        %2756 = vmatpush1.msra.mxu0 0.0
        %2757 = vmatprep.subr.mxu0 0.0
        %2758 = vmatpush1.msra.mxu0 0.0
        %2759 = vmatprep.subr.mxu0 0.0
        %2760 = vmatpush1.msra.mxu0 0.0
        %2761 = vmatprep.subr.mxu0 0.0
        %2762 = vmatpush1.msra.mxu0 0.0
        %2763 = vmatprep.subr.mxu0 0.0
        %2764 = vmatpush1.msra.mxu0 0.0
        %2765 = vmatprep.subr.mxu0 0.0
        %2766 = vmatpush1.msra.mxu0 0.0
        %2767 = vmatprep.subr.mxu0 0.0
        %2768 = vmatpush1.msra.mxu0 0.0
        %2769 = vmatprep.subr.mxu0 0.0
        %2770 = vmatpush1.msra.mxu0 0.0
        %2771 = vmatprep.subr.mxu0 0.0
        %2772 = vmatpush1.msra.mxu0 0.0
        %2773 = vmatprep.subr.mxu0 0.0
        %2774 = vmatpush1.msra.mxu0 0.0
        %2775 = vmatprep.subr.mxu0 0.0
        %2776 = vmatpush1.msra.mxu0 0.0
        %2777 = vmatprep.subr.mxu0 0.0
        %2778 = vmatpush1.msra.mxu0 0.0
        %2779 = vmatprep.subr.mxu0 0.0
        %2780 = vmatpush1.msra.mxu0 0.0
        %2781 = vmatprep.subr.mxu0 0.0
        %2782 = vmatpush1.msra.mxu0 0.0
        %2783 = vmatprep.subr.mxu0 0.0
        %2784 = vmatpush1.msra.mxu0 0.0
        %2785 = vmatprep.subr.mxu0 0.0
        %2786 = vmatpush1.msra.mxu0 0.0
        %2787 = vmatprep.subr.mxu0 0.0
        %2788 = vmatpush1.msra.mxu0 0.0
        %2789 = vmatprep.subr.mxu0 0.0
        %2790 = vmatpush1.msra.mxu0 0.0
        %2791 = vmatprep.subr.mxu0 0.0
        %2792 = vmatpush1.msra.mxu0 0.0
        %2793 = vmatprep.subr.mxu0 0.0
        %2794 = vmatpush1.msra.mxu0 0.0
        %2795 = vmatprep.subr.mxu0 0.0
        %2796 = vmatpush1.msra.mxu0 0.0
        %2797 = vmatprep.subr.mxu0 0.0
        %2798 = vmatpush1.msra.mxu0 0.0
        %2799 = vmatprep.subr.mxu0 0.0
        %2800 = vmatpush1.msra.mxu0 0.0
        %2801 = vmatprep.subr.mxu0 0.0
        %2802 = vmatpush1.msra.mxu0 0.0
        %2803 = vmatprep.subr.mxu0 0.0
        %2804 = vmatpush1.msra.mxu0 0.0
        %2805 = vmatprep.subr.mxu0 0.0
        %2806 = vmatpush1.msra.mxu0 0.0
        %2807 = vmatprep.subr.mxu0 0.0
        %2808 = vmatpush1.msra.mxu0 0.0
        %2809 = vmatprep.subr.mxu0 0.0
        %2810 = vmatpush1.msra.mxu0 0.0
        %2811 = vmatprep.mubr.f32.mxu0 0.0
        %2812 = vmatmul.mubr.f32.gmra.mrb[0].mxu0 %v2742
        %v2813 = vpop.f32.mrb[0].mxu0
        %v2814 = vadd.f32 0.0, %v2813
        %v2815 = vpop.f32.mrb[0].mxu0
        %v2816 = vadd.f32 0.0, %v2815
        %2817 = vmatprep.mubr.f32.mxu0 0.0
        %2818 = vmatmul.mubr.f32.gmra.mrb[0].mxu0 %v2745
        %v2819 = vpop.f32.mrb[0].mxu0
        %v2820 = vadd.f32 0.0, %v2819
        %v2821 = vpop.f32.mrb[0].mxu0
        %v2822 = vadd.f32 0.0, %v2821
        %2823 = vdwg.mxu0
        %2824 = vmatprep.subr.mxu0 0.0
        %2825 = vmatpush1.msra.mxu0 %v1996
        %2826 = vmatprep.subr.mxu0 0.0
        %2827 = vmatpush1.msra.mxu0 0.0
        %2828 = vmatprep.subr.mxu0 0.0
        %2829 = vmatpush1.msra.mxu0 0.0
        %2830 = vmatprep.subr.mxu0 0.0
        %2831 = vmatpush1.msra.mxu0 0.0
        %2832 = vmatprep.subr.mxu0 0.0
        %2833 = vmatpush1.msra.mxu0 0.0
        %2834 = vmatprep.subr.mxu0 0.0
        %2835 = vmatpush1.msra.mxu0 0.0
        %2836 = vmatprep.subr.mxu0 0.0
        %2837 = vmatpush1.msra.mxu0 0.0
        %2838 = vmatprep.subr.mxu0 0.0
        %2839 = vmatpush1.msra.mxu0 0.0
        %2840 = vmatprep.subr.mxu0 0.0
        %2841 = vmatpush1.msra.mxu0 0.0
        %2842 = vmatprep.subr.mxu0 0.0
        %2843 = vmatpush1.msra.mxu0 0.0
        %2844 = vmatprep.subr.mxu0 0.0
        %2845 = vmatpush1.msra.mxu0 0.0
        %2846 = vmatprep.subr.mxu0 0.0
        %2847 = vmatpush1.msra.mxu0 0.0
        %2848 = vmatprep.subr.mxu0 0.0
        %2849 = vmatpush1.msra.mxu0 0.0
        %2850 = vmatprep.subr.mxu0 0.0
        %2851 = vmatpush1.msra.mxu0 0.0
        %2852 = vmatprep.subr.mxu0 0.0
        %2853 = vmatpush1.msra.mxu0 0.0
        %2854 = vmatprep.subr.mxu0 0.0
        %2855 = vmatpush1.msra.mxu0 0.0
        %2856 = vmatprep.subr.mxu0 0.0
        %2857 = vmatpush1.msra.mxu0 0.0
        %2858 = vmatprep.subr.mxu0 0.0
        %2859 = vmatpush1.msra.mxu0 0.0
        %2860 = vmatprep.subr.mxu0 0.0
        %2861 = vmatpush1.msra.mxu0 0.0
        %2862 = vmatprep.subr.mxu0 0.0
        %2863 = vmatpush1.msra.mxu0 0.0
        %2864 = vmatprep.subr.mxu0 0.0
        %2865 = vmatpush1.msra.mxu0 0.0
        %2866 = vmatprep.subr.mxu0 0.0
        %2867 = vmatpush1.msra.mxu0 0.0
        %2868 = vmatprep.subr.mxu0 0.0
        %2869 = vmatpush1.msra.mxu0 0.0
        %2870 = vmatprep.subr.mxu0 0.0
        %2871 = vmatpush1.msra.mxu0 0.0
        %2872 = vmatprep.subr.mxu0 0.0
        %2873 = vmatpush1.msra.mxu0 0.0
        %2874 = vmatprep.subr.mxu0 0.0
        %2875 = vmatpush1.msra.mxu0 0.0
        %2876 = vmatprep.subr.mxu0 0.0
        %2877 = vmatpush1.msra.mxu0 0.0
        %2878 = vmatprep.subr.mxu0 0.0
        %2879 = vmatpush1.msra.mxu0 0.0
        %2880 = vmatprep.subr.mxu0 0.0
        %2881 = vmatpush1.msra.mxu0 0.0
        %2882 = vmatprep.subr.mxu0 0.0
        %2883 = vmatpush1.msra.mxu0 0.0
        %2884 = vmatprep.subr.mxu0 0.0
        %2885 = vmatpush1.msra.mxu0 0.0
        %2886 = vmatprep.subr.mxu0 0.0
        %2887 = vmatpush1.msra.mxu0 0.0
        %2888 = vmatprep.mubr.f32.mxu0 0.0
        %2889 = vmatmul.mubr.f32.gmra.mrb[0].mxu0 %v2742
        %v2890 = vpop.f32.mrb[0].mxu0
        %v2891 = vadd.f32 0.0, %v2890
        %v2892 = vpop.f32.mrb[0].mxu0
        %2893 = vmatprep.mubr.f32.mxu0 0.0
        %2894 = vmatmul.mubr.f32.gmra.mrb[0].mxu0 %v2745
        %v2895 = vpop.f32.mrb[0].mxu0
        %v2896 = vadd.f32 0.0, %v2895
        %v2897 = vpop.f32.mrb[0].mxu0
        %2898 = vdwg.mxu0
        %v2899 = vadd.f32 %v2732, %v2814
        %v2900 = vadd.f32 %v2733, %v2816
        %v2901 = vadd.f32 %v2734, %v2891
        %v2902 = vadd.f32 %v2735, %v2820
        %v2903 = vadd.f32 %v2736, %v2822
        %v2904 = vadd.f32 %v2737, %v2896
        %s2905 = scalar_lea.vmem %s3, 80
        %v2906 = vld [vmem:[%s2905] sm:$0xff]
        %v2907 = vld [vmem:[%s2905 + $0x8] sm:$0xff]
        %2908 = vrot.lane.b32.xlu0 %v1994, 127
        %v2909 = vpop.permute.xlu0 %2908
        %2910 = vrot.lane.b32.xlu0 %v1995, 127
        %v2911 = vpop.permute.xlu0 %2910
        %2912 = vrot.lane.b32.xlu0 %v1996, 127
        %v2913 = vpop.permute.xlu0 %2912
        %v2914 = vsel %vm1275, %v2909, %v2911
        %v2915 = vsel %vm1275, %v2911, %v2913
        %v2920 = vsel %vm388, %v2906, 0
        %v2923 = vsel %vm388, %v2907, 0
        %2925 = vmatprep.subr.mxu0 %v2915
        %2926 = vmatpush1.msra.mxu0 %v2914
        %2927 = vmatprep.subr.mxu0 0.0
        %2928 = vmatpush1.msra.mxu0 0.0
        %2929 = vmatprep.subr.mxu0 0.0
        %2930 = vmatpush1.msra.mxu0 0.0
        %2931 = vmatprep.subr.mxu0 0.0
        %2932 = vmatpush1.msra.mxu0 0.0
        %2933 = vmatprep.subr.mxu0 0.0
        %2934 = vmatpush1.msra.mxu0 0.0
        %2935 = vmatprep.subr.mxu0 0.0
        %2936 = vmatpush1.msra.mxu0 0.0
        %2937 = vmatprep.subr.mxu0 0.0
        %2938 = vmatpush1.msra.mxu0 0.0
        %2939 = vmatprep.subr.mxu0 0.0
        %2940 = vmatpush1.msra.mxu0 0.0
        %2941 = vmatprep.subr.mxu0 0.0
        %2942 = vmatpush1.msra.mxu0 0.0
        %2943 = vmatprep.subr.mxu0 0.0
        %2944 = vmatpush1.msra.mxu0 0.0
        %2945 = vmatprep.subr.mxu0 0.0
        %2946 = vmatpush1.msra.mxu0 0.0
        %2947 = vmatprep.subr.mxu0 0.0
        %2948 = vmatpush1.msra.mxu0 0.0
        %2949 = vmatprep.subr.mxu0 0.0
        %2950 = vmatpush1.msra.mxu0 0.0
        %2951 = vmatprep.subr.mxu0 0.0
        %2952 = vmatpush1.msra.mxu0 0.0
        %2953 = vmatprep.subr.mxu0 0.0
        %2954 = vmatpush1.msra.mxu0 0.0
        %2955 = vmatprep.subr.mxu0 0.0
        %2956 = vmatpush1.msra.mxu0 0.0
        %2957 = vmatprep.subr.mxu0 0.0
        %2958 = vmatpush1.msra.mxu0 0.0
        %2959 = vmatprep.subr.mxu0 0.0
        %2960 = vmatpush1.msra.mxu0 0.0
        %2961 = vmatprep.subr.mxu0 0.0
        %2962 = vmatpush1.msra.mxu0 0.0
        %2963 = vmatprep.subr.mxu0 0.0
        %2964 = vmatpush1.msra.mxu0 0.0
        %2965 = vmatprep.subr.mxu0 0.0
        %2966 = vmatpush1.msra.mxu0 0.0
        %2967 = vmatprep.subr.mxu0 0.0
        %2968 = vmatpush1.msra.mxu0 0.0
        %2969 = vmatprep.subr.mxu0 0.0
        %2970 = vmatpush1.msra.mxu0 0.0
        %2971 = vmatprep.subr.mxu0 0.0
        %2972 = vmatpush1.msra.mxu0 0.0
        %2973 = vmatprep.subr.mxu0 0.0
        %2974 = vmatpush1.msra.mxu0 0.0
        %2975 = vmatprep.subr.mxu0 0.0
        %2976 = vmatpush1.msra.mxu0 0.0
        %2977 = vmatprep.subr.mxu0 0.0
        %2978 = vmatpush1.msra.mxu0 0.0
        %2979 = vmatprep.subr.mxu0 0.0
        %2980 = vmatpush1.msra.mxu0 0.0
        %2981 = vmatprep.subr.mxu0 0.0
        %2982 = vmatpush1.msra.mxu0 0.0
        %2983 = vmatprep.subr.mxu0 0.0
        %2984 = vmatpush1.msra.mxu0 0.0
        %2985 = vmatprep.subr.mxu0 0.0
        %2986 = vmatpush1.msra.mxu0 0.0
        %2987 = vmatprep.subr.mxu0 0.0
        %2988 = vmatpush1.msra.mxu0 0.0
        %2989 = vmatprep.mubr.f32.mxu0 0.0
        %2990 = vmatmul.mubr.f32.gmra.mrb[0].mxu0 %v2920
        %v2991 = vpop.f32.mrb[0].mxu0
        %v2992 = vadd.f32 0.0, %v2991
        %v2993 = vpop.f32.mrb[0].mxu0
        %v2994 = vadd.f32 0.0, %v2993
        %2995 = vmatprep.mubr.f32.mxu0 0.0
        %2996 = vmatmul.mubr.f32.gmra.mrb[0].mxu0 %v2923
        %v2997 = vpop.f32.mrb[0].mxu0
        %v2998 = vadd.f32 0.0, %v2997
        %v2999 = vpop.f32.mrb[0].mxu0
        %v3000 = vadd.f32 0.0, %v2999
        %3001 = vdwg.mxu0
        %3002 = vmatprep.subr.mxu0 0.0
        %3003 = vmatpush1.msra.mxu0 %v2913
        %3004 = vmatprep.subr.mxu0 0.0
        %3005 = vmatpush1.msra.mxu0 0.0
        %3006 = vmatprep.subr.mxu0 0.0
        %3007 = vmatpush1.msra.mxu0 0.0
        %3008 = vmatprep.subr.mxu0 0.0
        %3009 = vmatpush1.msra.mxu0 0.0
        %3010 = vmatprep.subr.mxu0 0.0
        %3011 = vmatpush1.msra.mxu0 0.0
        %3012 = vmatprep.subr.mxu0 0.0
        %3013 = vmatpush1.msra.mxu0 0.0
        %3014 = vmatprep.subr.mxu0 0.0
        %3015 = vmatpush1.msra.mxu0 0.0
        %3016 = vmatprep.subr.mxu0 0.0
        %3017 = vmatpush1.msra.mxu0 0.0
        %3018 = vmatprep.subr.mxu0 0.0
        %3019 = vmatpush1.msra.mxu0 0.0
        %3020 = vmatprep.subr.mxu0 0.0
        %3021 = vmatpush1.msra.mxu0 0.0
        %3022 = vmatprep.subr.mxu0 0.0
        %3023 = vmatpush1.msra.mxu0 0.0
        %3024 = vmatprep.subr.mxu0 0.0
        %3025 = vmatpush1.msra.mxu0 0.0
        %3026 = vmatprep.subr.mxu0 0.0
        %3027 = vmatpush1.msra.mxu0 0.0
        %3028 = vmatprep.subr.mxu0 0.0
        %3029 = vmatpush1.msra.mxu0 0.0
        %3030 = vmatprep.subr.mxu0 0.0
        %3031 = vmatpush1.msra.mxu0 0.0
        %3032 = vmatprep.subr.mxu0 0.0
        %3033 = vmatpush1.msra.mxu0 0.0
        %3034 = vmatprep.subr.mxu0 0.0
        %3035 = vmatpush1.msra.mxu0 0.0
        %3036 = vmatprep.subr.mxu0 0.0
        %3037 = vmatpush1.msra.mxu0 0.0
        %3038 = vmatprep.subr.mxu0 0.0
        %3039 = vmatpush1.msra.mxu0 0.0
        %3040 = vmatprep.subr.mxu0 0.0
        %3041 = vmatpush1.msra.mxu0 0.0
        %3042 = vmatprep.subr.mxu0 0.0
        %3043 = vmatpush1.msra.mxu0 0.0
        %3044 = vmatprep.subr.mxu0 0.0
        %3045 = vmatpush1.msra.mxu0 0.0
        %3046 = vmatprep.subr.mxu0 0.0
        %3047 = vmatpush1.msra.mxu0 0.0
        %3048 = vmatprep.subr.mxu0 0.0
        %3049 = vmatpush1.msra.mxu0 0.0
        %3050 = vmatprep.subr.mxu0 0.0
        %3051 = vmatpush1.msra.mxu0 0.0
        %3052 = vmatprep.subr.mxu0 0.0
        %3053 = vmatpush1.msra.mxu0 0.0
        %3054 = vmatprep.subr.mxu0 0.0
        %3055 = vmatpush1.msra.mxu0 0.0
        %3056 = vmatprep.subr.mxu0 0.0
        %3057 = vmatpush1.msra.mxu0 0.0
        %3058 = vmatprep.subr.mxu0 0.0
        %3059 = vmatpush1.msra.mxu0 0.0
        %3060 = vmatprep.subr.mxu0 0.0
        %3061 = vmatpush1.msra.mxu0 0.0
        %3062 = vmatprep.subr.mxu0 0.0
        %3063 = vmatpush1.msra.mxu0 0.0
        %3064 = vmatprep.subr.mxu0 0.0
        %3065 = vmatpush1.msra.mxu0 0.0
        %3066 = vmatprep.mubr.f32.mxu0 0.0
        %3067 = vmatmul.mubr.f32.gmra.mrb[0].mxu0 %v2920
        %v3068 = vpop.f32.mrb[0].mxu0
        %v3069 = vadd.f32 0.0, %v3068
        %v3070 = vpop.f32.mrb[0].mxu0
        %3071 = vmatprep.mubr.f32.mxu0 0.0
        %3072 = vmatmul.mubr.f32.gmra.mrb[0].mxu0 %v2923
        %v3073 = vpop.f32.mrb[0].mxu0
        %v3074 = vadd.f32 0.0, %v3073
        %v3075 = vpop.f32.mrb[0].mxu0
        %3076 = vdwg.mxu0
        %v3077 = vadd.f32 %v2899, %v2992
        %v3078 = vadd.f32 %v2900, %v2994
        %v3079 = vadd.f32 %v2901, %v3069
        %v3080 = vadd.f32 %v2902, %v2998
        %v3081 = vadd.f32 %v2903, %v3000
        %v3082 = vadd.f32 %v2904, %v3074
        %s3083 = scalar_lea.vmem %s3, 96
        %v3084 = vld [vmem:[%s3083] sm:$0xff]
        %v3085 = vld [vmem:[%s3083 + $0x8] sm:$0xff]
        %3086 = vrot.lane.b32.xlu0 %v1994, 111
        %v3087 = vpop.permute.xlu0 %3086
        %3088 = vrot.lane.b32.xlu0 %v1995, 111
        %v3089 = vpop.permute.xlu0 %3088
        %3090 = vrot.lane.b32.xlu0 %v1996, 111
        %v3091 = vpop.permute.xlu0 %3090
        %v3092 = vsel %vm1454, %v3087, %v3089
        %v3093 = vsel %vm1454, %v3089, %v3091
        %v3098 = vsel %vm388, %v3084, 0
        %v3101 = vsel %vm388, %v3085, 0
        %3103 = vmatprep.subr.mxu0 %v3093
        %3104 = vmatpush1.msra.mxu0 %v3092
        %3105 = vmatprep.subr.mxu0 0.0
        %3106 = vmatpush1.msra.mxu0 0.0
        %3107 = vmatprep.subr.mxu0 0.0
        %3108 = vmatpush1.msra.mxu0 0.0
        %3109 = vmatprep.subr.mxu0 0.0
        %3110 = vmatpush1.msra.mxu0 0.0
        %3111 = vmatprep.subr.mxu0 0.0
        %3112 = vmatpush1.msra.mxu0 0.0
        %3113 = vmatprep.subr.mxu0 0.0
        %3114 = vmatpush1.msra.mxu0 0.0
        %3115 = vmatprep.subr.mxu0 0.0
        %3116 = vmatpush1.msra.mxu0 0.0
        %3117 = vmatprep.subr.mxu0 0.0
        %3118 = vmatpush1.msra.mxu0 0.0
        %3119 = vmatprep.subr.mxu0 0.0
        %3120 = vmatpush1.msra.mxu0 0.0
        %3121 = vmatprep.subr.mxu0 0.0
        %3122 = vmatpush1.msra.mxu0 0.0
        %3123 = vmatprep.subr.mxu0 0.0
        %3124 = vmatpush1.msra.mxu0 0.0
        %3125 = vmatprep.subr.mxu0 0.0
        %3126 = vmatpush1.msra.mxu0 0.0
        %3127 = vmatprep.subr.mxu0 0.0
        %3128 = vmatpush1.msra.mxu0 0.0
        %3129 = vmatprep.subr.mxu0 0.0
        %3130 = vmatpush1.msra.mxu0 0.0
        %3131 = vmatprep.subr.mxu0 0.0
        %3132 = vmatpush1.msra.mxu0 0.0
        %3133 = vmatprep.subr.mxu0 0.0
        %3134 = vmatpush1.msra.mxu0 0.0
        %3135 = vmatprep.subr.mxu0 0.0
        %3136 = vmatpush1.msra.mxu0 0.0
        %3137 = vmatprep.subr.mxu0 0.0
        %3138 = vmatpush1.msra.mxu0 0.0
        %3139 = vmatprep.subr.mxu0 0.0
        %3140 = vmatpush1.msra.mxu0 0.0
        %3141 = vmatprep.subr.mxu0 0.0
        %3142 = vmatpush1.msra.mxu0 0.0
        %3143 = vmatprep.subr.mxu0 0.0
        %3144 = vmatpush1.msra.mxu0 0.0
        %3145 = vmatprep.subr.mxu0 0.0
        %3146 = vmatpush1.msra.mxu0 0.0
        %3147 = vmatprep.subr.mxu0 0.0
        %3148 = vmatpush1.msra.mxu0 0.0
        %3149 = vmatprep.subr.mxu0 0.0
        %3150 = vmatpush1.msra.mxu0 0.0
        %3151 = vmatprep.subr.mxu0 0.0
        %3152 = vmatpush1.msra.mxu0 0.0
        %3153 = vmatprep.subr.mxu0 0.0
        %3154 = vmatpush1.msra.mxu0 0.0
        %3155 = vmatprep.subr.mxu0 0.0
        %3156 = vmatpush1.msra.mxu0 0.0
        %3157 = vmatprep.subr.mxu0 0.0
        %3158 = vmatpush1.msra.mxu0 0.0
        %3159 = vmatprep.subr.mxu0 0.0
        %3160 = vmatpush1.msra.mxu0 0.0
        %3161 = vmatprep.subr.mxu0 0.0
        %3162 = vmatpush1.msra.mxu0 0.0
        %3163 = vmatprep.subr.mxu0 0.0
        %3164 = vmatpush1.msra.mxu0 0.0
        %3165 = vmatprep.subr.mxu0 0.0
        %3166 = vmatpush1.msra.mxu0 0.0
        %3167 = vmatprep.mubr.f32.mxu0 0.0
        %3168 = vmatmul.mubr.f32.gmra.mrb[0].mxu0 %v3098
        %v3169 = vpop.f32.mrb[0].mxu0
        %v3170 = vadd.f32 0.0, %v3169
        %v3171 = vpop.f32.mrb[0].mxu0
        %v3172 = vadd.f32 0.0, %v3171
        %3173 = vmatprep.mubr.f32.mxu0 0.0
        %3174 = vmatmul.mubr.f32.gmra.mrb[0].mxu0 %v3101
        %v3175 = vpop.f32.mrb[0].mxu0
        %v3176 = vadd.f32 0.0, %v3175
        %v3177 = vpop.f32.mrb[0].mxu0
        %v3178 = vadd.f32 0.0, %v3177
        %3179 = vdwg.mxu0
        %3180 = vmatprep.subr.mxu0 0.0
        %3181 = vmatpush1.msra.mxu0 %v3091
        %3182 = vmatprep.subr.mxu0 0.0
        %3183 = vmatpush1.msra.mxu0 0.0
        %3184 = vmatprep.subr.mxu0 0.0
        %3185 = vmatpush1.msra.mxu0 0.0
        %3186 = vmatprep.subr.mxu0 0.0
        %3187 = vmatpush1.msra.mxu0 0.0
        %3188 = vmatprep.subr.mxu0 0.0
        %3189 = vmatpush1.msra.mxu0 0.0
        %3190 = vmatprep.subr.mxu0 0.0
        %3191 = vmatpush1.msra.mxu0 0.0
        %3192 = vmatprep.subr.mxu0 0.0
        %3193 = vmatpush1.msra.mxu0 0.0
        %3194 = vmatprep.subr.mxu0 0.0
        %3195 = vmatpush1.msra.mxu0 0.0
        %3196 = vmatprep.subr.mxu0 0.0
        %3197 = vmatpush1.msra.mxu0 0.0
        %3198 = vmatprep.subr.mxu0 0.0
        %3199 = vmatpush1.msra.mxu0 0.0
        %3200 = vmatprep.subr.mxu0 0.0
        %3201 = vmatpush1.msra.mxu0 0.0
        %3202 = vmatprep.subr.mxu0 0.0
        %3203 = vmatpush1.msra.mxu0 0.0
        %3204 = vmatprep.subr.mxu0 0.0
        %3205 = vmatpush1.msra.mxu0 0.0
        %3206 = vmatprep.subr.mxu0 0.0
        %3207 = vmatpush1.msra.mxu0 0.0
        %3208 = vmatprep.subr.mxu0 0.0
        %3209 = vmatpush1.msra.mxu0 0.0
        %3210 = vmatprep.subr.mxu0 0.0
        %3211 = vmatpush1.msra.mxu0 0.0
        %3212 = vmatprep.subr.mxu0 0.0
        %3213 = vmatpush1.msra.mxu0 0.0
        %3214 = vmatprep.subr.mxu0 0.0
        %3215 = vmatpush1.msra.mxu0 0.0
        %3216 = vmatprep.subr.mxu0 0.0
        %3217 = vmatpush1.msra.mxu0 0.0
        %3218 = vmatprep.subr.mxu0 0.0
        %3219 = vmatpush1.msra.mxu0 0.0
        %3220 = vmatprep.subr.mxu0 0.0
        %3221 = vmatpush1.msra.mxu0 0.0
        %3222 = vmatprep.subr.mxu0 0.0
        %3223 = vmatpush1.msra.mxu0 0.0
        %3224 = vmatprep.subr.mxu0 0.0
        %3225 = vmatpush1.msra.mxu0 0.0
        %3226 = vmatprep.subr.mxu0 0.0
        %3227 = vmatpush1.msra.mxu0 0.0
        %3228 = vmatprep.subr.mxu0 0.0
        %3229 = vmatpush1.msra.mxu0 0.0
        %3230 = vmatprep.subr.mxu0 0.0
        %3231 = vmatpush1.msra.mxu0 0.0
        %3232 = vmatprep.subr.mxu0 0.0
        %3233 = vmatpush1.msra.mxu0 0.0
        %3234 = vmatprep.subr.mxu0 0.0
        %3235 = vmatpush1.msra.mxu0 0.0
        %3236 = vmatprep.subr.mxu0 0.0
        %3237 = vmatpush1.msra.mxu0 0.0
        %3238 = vmatprep.subr.mxu0 0.0
        %3239 = vmatpush1.msra.mxu0 0.0
        %3240 = vmatprep.subr.mxu0 0.0
        %3241 = vmatpush1.msra.mxu0 0.0
        %3242 = vmatprep.subr.mxu0 0.0
        %3243 = vmatpush1.msra.mxu0 0.0
        %3244 = vmatprep.mubr.f32.mxu0 0.0
        %3245 = vmatmul.mubr.f32.gmra.mrb[0].mxu0 %v3098
        %v3246 = vpop.f32.mrb[0].mxu0
        %v3247 = vadd.f32 0.0, %v3246
        %v3248 = vpop.f32.mrb[0].mxu0
        %3249 = vmatprep.mubr.f32.mxu0 0.0
        %3250 = vmatmul.mubr.f32.gmra.mrb[0].mxu0 %v3101
        %v3251 = vpop.f32.mrb[0].mxu0
        %v3252 = vadd.f32 0.0, %v3251
        %v3253 = vpop.f32.mrb[0].mxu0
        %3254 = vdwg.mxu0
        %v3255 = vadd.f32 %v3077, %v3170
        %v3256 = vadd.f32 %v3078, %v3172
        %v3257 = vadd.f32 %v3079, %v3247
        %v3258 = vadd.f32 %v3080, %v3176
        %v3259 = vadd.f32 %v3081, %v3178
        %v3260 = vadd.f32 %v3082, %v3252
        %s3261 = scalar_lea.vmem %s3, 112
        %v3262 = vld [vmem:[%s3261] sm:$0xff]
        %v3263 = vld [vmem:[%s3261 + $0x8] sm:$0xff]
        %3264 = vrot.lane.b32.xlu0 %v1994, 110
        %v3265 = vpop.permute.xlu0 %3264
        %3266 = vrot.lane.b32.xlu0 %v1995, 110
        %v3267 = vpop.permute.xlu0 %3266
        %3268 = vrot.lane.b32.xlu0 %v1996, 110
        %v3269 = vpop.permute.xlu0 %3268
        %v3270 = vsel %vm1633, %v3265, %v3267
        %v3271 = vsel %vm1633, %v3267, %v3269
        %v3276 = vsel %vm388, %v3262, 0
        %v3279 = vsel %vm388, %v3263, 0
        %3281 = vmatprep.subr.mxu0 %v3271
        %3282 = vmatpush1.msra.mxu0 %v3270
        %3283 = vmatprep.subr.mxu0 0.0
        %3284 = vmatpush1.msra.mxu0 0.0
        %3285 = vmatprep.subr.mxu0 0.0
        %3286 = vmatpush1.msra.mxu0 0.0
        %3287 = vmatprep.subr.mxu0 0.0
        %3288 = vmatpush1.msra.mxu0 0.0
        %3289 = vmatprep.subr.mxu0 0.0
        %3290 = vmatpush1.msra.mxu0 0.0
        %3291 = vmatprep.subr.mxu0 0.0
        %3292 = vmatpush1.msra.mxu0 0.0
        %3293 = vmatprep.subr.mxu0 0.0
        %3294 = vmatpush1.msra.mxu0 0.0
        %3295 = vmatprep.subr.mxu0 0.0
        %3296 = vmatpush1.msra.mxu0 0.0
        %3297 = vmatprep.subr.mxu0 0.0
        %3298 = vmatpush1.msra.mxu0 0.0
        %3299 = vmatprep.subr.mxu0 0.0
        %3300 = vmatpush1.msra.mxu0 0.0
        %3301 = vmatprep.subr.mxu0 0.0
        %3302 = vmatpush1.msra.mxu0 0.0
        %3303 = vmatprep.subr.mxu0 0.0
        %3304 = vmatpush1.msra.mxu0 0.0
        %3305 = vmatprep.subr.mxu0 0.0
        %3306 = vmatpush1.msra.mxu0 0.0
        %3307 = vmatprep.subr.mxu0 0.0
        %3308 = vmatpush1.msra.mxu0 0.0
        %3309 = vmatprep.subr.mxu0 0.0
        %3310 = vmatpush1.msra.mxu0 0.0
        %3311 = vmatprep.subr.mxu0 0.0
        %3312 = vmatpush1.msra.mxu0 0.0
        %3313 = vmatprep.subr.mxu0 0.0
        %3314 = vmatpush1.msra.mxu0 0.0
        %3315 = vmatprep.subr.mxu0 0.0
        %3316 = vmatpush1.msra.mxu0 0.0
        %3317 = vmatprep.subr.mxu0 0.0
        %3318 = vmatpush1.msra.mxu0 0.0
        %3319 = vmatprep.subr.mxu0 0.0
        %3320 = vmatpush1.msra.mxu0 0.0
        %3321 = vmatprep.subr.mxu0 0.0
        %3322 = vmatpush1.msra.mxu0 0.0
        %3323 = vmatprep.subr.mxu0 0.0
        %3324 = vmatpush1.msra.mxu0 0.0
        %3325 = vmatprep.subr.mxu0 0.0
        %3326 = vmatpush1.msra.mxu0 0.0
        %3327 = vmatprep.subr.mxu0 0.0
        %3328 = vmatpush1.msra.mxu0 0.0
        %3329 = vmatprep.subr.mxu0 0.0
        %3330 = vmatpush1.msra.mxu0 0.0
        %3331 = vmatprep.subr.mxu0 0.0
        %3332 = vmatpush1.msra.mxu0 0.0
        %3333 = vmatprep.subr.mxu0 0.0
        %3334 = vmatpush1.msra.mxu0 0.0
        %3335 = vmatprep.subr.mxu0 0.0
        %3336 = vmatpush1.msra.mxu0 0.0
        %3337 = vmatprep.subr.mxu0 0.0
        %3338 = vmatpush1.msra.mxu0 0.0
        %3339 = vmatprep.subr.mxu0 0.0
        %3340 = vmatpush1.msra.mxu0 0.0
        %3341 = vmatprep.subr.mxu0 0.0
        %3342 = vmatpush1.msra.mxu0 0.0
        %3343 = vmatprep.subr.mxu0 0.0
        %3344 = vmatpush1.msra.mxu0 0.0
        %3345 = vmatprep.mubr.f32.mxu0 0.0
        %3346 = vmatmul.mubr.f32.gmra.mrb[0].mxu0 %v3276
        %v3347 = vpop.f32.mrb[0].mxu0
        %v3348 = vadd.f32 0.0, %v3347
        %v3349 = vpop.f32.mrb[0].mxu0
        %v3350 = vadd.f32 0.0, %v3349
        %3351 = vmatprep.mubr.f32.mxu0 0.0
        %3352 = vmatmul.mubr.f32.gmra.mrb[0].mxu0 %v3279
        %v3353 = vpop.f32.mrb[0].mxu0
        %v3354 = vadd.f32 0.0, %v3353
        %v3355 = vpop.f32.mrb[0].mxu0
        %v3356 = vadd.f32 0.0, %v3355
        %3357 = vdwg.mxu0
        %3358 = vmatprep.subr.mxu0 0.0
        %3359 = vmatpush1.msra.mxu0 %v3269
        %3360 = vmatprep.subr.mxu0 0.0
        %3361 = vmatpush1.msra.mxu0 0.0
        %3362 = vmatprep.subr.mxu0 0.0
        %3363 = vmatpush1.msra.mxu0 0.0
        %3364 = vmatprep.subr.mxu0 0.0
        %3365 = vmatpush1.msra.mxu0 0.0
        %3366 = vmatprep.subr.mxu0 0.0
        %3367 = vmatpush1.msra.mxu0 0.0
        %3368 = vmatprep.subr.mxu0 0.0
        %3369 = vmatpush1.msra.mxu0 0.0
        %3370 = vmatprep.subr.mxu0 0.0
        %3371 = vmatpush1.msra.mxu0 0.0
        %3372 = vmatprep.subr.mxu0 0.0
        %3373 = vmatpush1.msra.mxu0 0.0
        %3374 = vmatprep.subr.mxu0 0.0
        %3375 = vmatpush1.msra.mxu0 0.0
        %3376 = vmatprep.subr.mxu0 0.0
        %3377 = vmatpush1.msra.mxu0 0.0
        %3378 = vmatprep.subr.mxu0 0.0
        %3379 = vmatpush1.msra.mxu0 0.0
        %3380 = vmatprep.subr.mxu0 0.0
        %3381 = vmatpush1.msra.mxu0 0.0
        %3382 = vmatprep.subr.mxu0 0.0
        %3383 = vmatpush1.msra.mxu0 0.0
        %3384 = vmatprep.subr.mxu0 0.0
        %3385 = vmatpush1.msra.mxu0 0.0
        %3386 = vmatprep.subr.mxu0 0.0
        %3387 = vmatpush1.msra.mxu0 0.0
        %3388 = vmatprep.subr.mxu0 0.0
        %3389 = vmatpush1.msra.mxu0 0.0
        %3390 = vmatprep.subr.mxu0 0.0
        %3391 = vmatpush1.msra.mxu0 0.0
        %3392 = vmatprep.subr.mxu0 0.0
        %3393 = vmatpush1.msra.mxu0 0.0
        %3394 = vmatprep.subr.mxu0 0.0
        %3395 = vmatpush1.msra.mxu0 0.0
        %3396 = vmatprep.subr.mxu0 0.0
        %3397 = vmatpush1.msra.mxu0 0.0
        %3398 = vmatprep.subr.mxu0 0.0
        %3399 = vmatpush1.msra.mxu0 0.0
        %3400 = vmatprep.subr.mxu0 0.0
        %3401 = vmatpush1.msra.mxu0 0.0
        %3402 = vmatprep.subr.mxu0 0.0
        %3403 = vmatpush1.msra.mxu0 0.0
        %3404 = vmatprep.subr.mxu0 0.0
        %3405 = vmatpush1.msra.mxu0 0.0
        %3406 = vmatprep.subr.mxu0 0.0
        %3407 = vmatpush1.msra.mxu0 0.0
        %3408 = vmatprep.subr.mxu0 0.0
        %3409 = vmatpush1.msra.mxu0 0.0
        %3410 = vmatprep.subr.mxu0 0.0
        %3411 = vmatpush1.msra.mxu0 0.0
        %3412 = vmatprep.subr.mxu0 0.0
        %3413 = vmatpush1.msra.mxu0 0.0
        %3414 = vmatprep.subr.mxu0 0.0
        %3415 = vmatpush1.msra.mxu0 0.0
        %3416 = vmatprep.subr.mxu0 0.0
        %3417 = vmatpush1.msra.mxu0 0.0
        %3418 = vmatprep.subr.mxu0 0.0
        %3419 = vmatpush1.msra.mxu0 0.0
        %3420 = vmatprep.subr.mxu0 0.0
        %3421 = vmatpush1.msra.mxu0 0.0
        %3422 = vmatprep.mubr.f32.mxu0 0.0
        %3423 = vmatmul.mubr.f32.gmra.mrb[0].mxu0 %v3276
        %v3424 = vpop.f32.mrb[0].mxu0
        %v3425 = vadd.f32 0.0, %v3424
        %v3426 = vpop.f32.mrb[0].mxu0
        %3427 = vmatprep.mubr.f32.mxu0 0.0
        %3428 = vmatmul.mubr.f32.gmra.mrb[0].mxu0 %v3279
        %v3429 = vpop.f32.mrb[0].mxu0
        %v3430 = vadd.f32 0.0, %v3429
        %v3431 = vpop.f32.mrb[0].mxu0
        %3432 = vdwg.mxu0
        %v3433 = vadd.f32 %v3255, %v3348
        %v3434 = vadd.f32 %v3256, %v3350
        %v3435 = vadd.f32 %v3257, %v3425
        %v3436 = vadd.f32 %v3258, %v3354
        %v3437 = vadd.f32 %v3259, %v3356
        %v3438 = vadd.f32 %v3260, %v3430
        %s3439 = scalar_lea.vmem %s3, 128
        %v3440 = vld [vmem:[%s3439] sm:$0xff]
        %v3441 = vld [vmem:[%s3439 + $0x8] sm:$0xff]
        %3442 = vrot.lane.b32.xlu0 %v1994, 109
        %v3443 = vpop.permute.xlu0 %3442
        %3444 = vrot.lane.b32.xlu0 %v1995, 109
        %v3445 = vpop.permute.xlu0 %3444
        %3446 = vrot.lane.b32.xlu0 %v1996, 109
        %v3447 = vpop.permute.xlu0 %3446
        %v3448 = vsel %vm1812, %v3443, %v3445
        %v3449 = vsel %vm1812, %v3445, %v3447
        %v3454 = vsel %vm388, %v3440, 0
        %v3457 = vsel %vm388, %v3441, 0
        %3459 = vmatprep.subr.mxu0 %v3449
        %3460 = vmatpush1.msra.mxu0 %v3448
        %3461 = vmatprep.subr.mxu0 0.0
        %3462 = vmatpush1.msra.mxu0 0.0
        %3463 = vmatprep.subr.mxu0 0.0
        %3464 = vmatpush1.msra.mxu0 0.0
        %3465 = vmatprep.subr.mxu0 0.0
        %3466 = vmatpush1.msra.mxu0 0.0
        %3467 = vmatprep.subr.mxu0 0.0
        %3468 = vmatpush1.msra.mxu0 0.0
        %3469 = vmatprep.subr.mxu0 0.0
        %3470 = vmatpush1.msra.mxu0 0.0
        %3471 = vmatprep.subr.mxu0 0.0
        %3472 = vmatpush1.msra.mxu0 0.0
        %3473 = vmatprep.subr.mxu0 0.0
        %3474 = vmatpush1.msra.mxu0 0.0
        %3475 = vmatprep.subr.mxu0 0.0
        %3476 = vmatpush1.msra.mxu0 0.0
        %3477 = vmatprep.subr.mxu0 0.0
        %3478 = vmatpush1.msra.mxu0 0.0
        %3479 = vmatprep.subr.mxu0 0.0
        %3480 = vmatpush1.msra.mxu0 0.0
        %3481 = vmatprep.subr.mxu0 0.0
        %3482 = vmatpush1.msra.mxu0 0.0
        %3483 = vmatprep.subr.mxu0 0.0
        %3484 = vmatpush1.msra.mxu0 0.0
        %3485 = vmatprep.subr.mxu0 0.0
        %3486 = vmatpush1.msra.mxu0 0.0
        %3487 = vmatprep.subr.mxu0 0.0
        %3488 = vmatpush1.msra.mxu0 0.0
        %3489 = vmatprep.subr.mxu0 0.0
        %3490 = vmatpush1.msra.mxu0 0.0
        %3491 = vmatprep.subr.mxu0 0.0
        %3492 = vmatpush1.msra.mxu0 0.0
        %3493 = vmatprep.subr.mxu0 0.0
        %3494 = vmatpush1.msra.mxu0 0.0
        %3495 = vmatprep.subr.mxu0 0.0
        %3496 = vmatpush1.msra.mxu0 0.0
        %3497 = vmatprep.subr.mxu0 0.0
        %3498 = vmatpush1.msra.mxu0 0.0
        %3499 = vmatprep.subr.mxu0 0.0
        %3500 = vmatpush1.msra.mxu0 0.0
        %3501 = vmatprep.subr.mxu0 0.0
        %3502 = vmatpush1.msra.mxu0 0.0
        %3503 = vmatprep.subr.mxu0 0.0
        %3504 = vmatpush1.msra.mxu0 0.0
        %3505 = vmatprep.subr.mxu0 0.0
        %3506 = vmatpush1.msra.mxu0 0.0
        %3507 = vmatprep.subr.mxu0 0.0
        %3508 = vmatpush1.msra.mxu0 0.0
        %3509 = vmatprep.subr.mxu0 0.0
        %3510 = vmatpush1.msra.mxu0 0.0
        %3511 = vmatprep.subr.mxu0 0.0
        %3512 = vmatpush1.msra.mxu0 0.0
        %3513 = vmatprep.subr.mxu0 0.0
        %3514 = vmatpush1.msra.mxu0 0.0
        %3515 = vmatprep.subr.mxu0 0.0
        %3516 = vmatpush1.msra.mxu0 0.0
        %3517 = vmatprep.subr.mxu0 0.0
        %3518 = vmatpush1.msra.mxu0 0.0
        %3519 = vmatprep.subr.mxu0 0.0
        %3520 = vmatpush1.msra.mxu0 0.0
        %3521 = vmatprep.subr.mxu0 0.0
        %3522 = vmatpush1.msra.mxu0 0.0
        %3523 = vmatprep.mubr.f32.mxu0 0.0
        %3524 = vmatmul.mubr.f32.gmra.mrb[0].mxu0 %v3454
        %v3525 = vpop.f32.mrb[0].mxu0
        %v3526 = vadd.f32 0.0, %v3525
        %v3527 = vpop.f32.mrb[0].mxu0
        %v3528 = vadd.f32 0.0, %v3527
        %3529 = vmatprep.mubr.f32.mxu0 0.0
        %3530 = vmatmul.mubr.f32.gmra.mrb[0].mxu0 %v3457
        %v3531 = vpop.f32.mrb[0].mxu0
        %v3532 = vadd.f32 0.0, %v3531
        %v3533 = vpop.f32.mrb[0].mxu0
        %v3534 = vadd.f32 0.0, %v3533
        %3535 = vdwg.mxu0
        %3536 = vmatprep.subr.mxu0 0.0
        %3537 = vmatpush1.msra.mxu0 %v3447
        %3538 = vmatprep.subr.mxu0 0.0
        %3539 = vmatpush1.msra.mxu0 0.0
        %3540 = vmatprep.subr.mxu0 0.0
        %3541 = vmatpush1.msra.mxu0 0.0
        %3542 = vmatprep.subr.mxu0 0.0
        %3543 = vmatpush1.msra.mxu0 0.0
        %3544 = vmatprep.subr.mxu0 0.0
        %3545 = vmatpush1.msra.mxu0 0.0
        %3546 = vmatprep.subr.mxu0 0.0
        %3547 = vmatpush1.msra.mxu0 0.0
        %3548 = vmatprep.subr.mxu0 0.0
        %3549 = vmatpush1.msra.mxu0 0.0
        %3550 = vmatprep.subr.mxu0 0.0
        %3551 = vmatpush1.msra.mxu0 0.0
        %3552 = vmatprep.subr.mxu0 0.0
        %3553 = vmatpush1.msra.mxu0 0.0
        %3554 = vmatprep.subr.mxu0 0.0
        %3555 = vmatpush1.msra.mxu0 0.0
        %3556 = vmatprep.subr.mxu0 0.0
        %3557 = vmatpush1.msra.mxu0 0.0
        %3558 = vmatprep.subr.mxu0 0.0
        %3559 = vmatpush1.msra.mxu0 0.0
        %3560 = vmatprep.subr.mxu0 0.0
        %3561 = vmatpush1.msra.mxu0 0.0
        %3562 = vmatprep.subr.mxu0 0.0
        %3563 = vmatpush1.msra.mxu0 0.0
        %3564 = vmatprep.subr.mxu0 0.0
        %3565 = vmatpush1.msra.mxu0 0.0
        %3566 = vmatprep.subr.mxu0 0.0
        %3567 = vmatpush1.msra.mxu0 0.0
        %3568 = vmatprep.subr.mxu0 0.0
        %3569 = vmatpush1.msra.mxu0 0.0
        %3570 = vmatprep.subr.mxu0 0.0
        %3571 = vmatpush1.msra.mxu0 0.0
        %3572 = vmatprep.subr.mxu0 0.0
        %3573 = vmatpush1.msra.mxu0 0.0
        %3574 = vmatprep.subr.mxu0 0.0
        %3575 = vmatpush1.msra.mxu0 0.0
        %3576 = vmatprep.subr.mxu0 0.0
        %3577 = vmatpush1.msra.mxu0 0.0
        %3578 = vmatprep.subr.mxu0 0.0
        %3579 = vmatpush1.msra.mxu0 0.0
        %3580 = vmatprep.subr.mxu0 0.0
        %3581 = vmatpush1.msra.mxu0 0.0
        %3582 = vmatprep.subr.mxu0 0.0
        %3583 = vmatpush1.msra.mxu0 0.0
        %3584 = vmatprep.subr.mxu0 0.0
        %3585 = vmatpush1.msra.mxu0 0.0
        %3586 = vmatprep.subr.mxu0 0.0
        %3587 = vmatpush1.msra.mxu0 0.0
        %3588 = vmatprep.subr.mxu0 0.0
        %3589 = vmatpush1.msra.mxu0 0.0
        %3590 = vmatprep.subr.mxu0 0.0
        %3591 = vmatpush1.msra.mxu0 0.0
        %3592 = vmatprep.subr.mxu0 0.0
        %3593 = vmatpush1.msra.mxu0 0.0
        %3594 = vmatprep.subr.mxu0 0.0
        %3595 = vmatpush1.msra.mxu0 0.0
        %3596 = vmatprep.subr.mxu0 0.0
        %3597 = vmatpush1.msra.mxu0 0.0
        %3598 = vmatprep.subr.mxu0 0.0
        %3599 = vmatpush1.msra.mxu0 0.0
        %3600 = vmatprep.mubr.f32.mxu0 0.0
        %3601 = vmatmul.mubr.f32.gmra.mrb[0].mxu0 %v3454
        %v3602 = vpop.f32.mrb[0].mxu0
        %v3603 = vadd.f32 0.0, %v3602
        %v3604 = vpop.f32.mrb[0].mxu0
        %3605 = vmatprep.mubr.f32.mxu0 0.0
        %3606 = vmatmul.mubr.f32.gmra.mrb[0].mxu0 %v3457
        %v3607 = vpop.f32.mrb[0].mxu0
        %v3608 = vadd.f32 0.0, %v3607
        %v3609 = vpop.f32.mrb[0].mxu0
        %3610 = vdwg.mxu0
        %v3611 = vadd.f32 %v3433, %v3526
        %v3612 = vadd.f32 %v3434, %v3528
        %v3613 = vadd.f32 %v3435, %v3603
        %v3614 = vadd.f32 %v3436, %v3532
        %v3615 = vadd.f32 %v3437, %v3534
        %v3616 = vadd.f32 %v3438, %v3608
        %v3617 = vmax.f32 %v3611, %v3614
        %v3618 = vmax.f32 %v3612, %v3615
        %v3619 = vmax.f32 %v3613, %v3616
        %v3620 = vadd.f32 %v3617, %v261
        %3622 = vrot.lane.b32.xlu0 %v3620, 109
        %v3623 = vpop.permute.xlu0 %3622
        %vm3625 = vcmask 125952
        %3626 = vst.msk [vmem:[%s244] sm:$0xf] %vm3625, %v3623
        %v3627 = vadd.f32 %v3617, %v266
        %3629 = vrot.lane.b32.xlu0 %v3627, 107
        %v3630 = vpop.permute.xlu0 %3629
        %vm3632 = vcmask 257152
        %3633 = vst.msk [vmem:[%s244] sm:$0xf] %vm3632, %v3630
        %v3634 = vadd.f32 %v3617, %v271
        %3636 = vrot.lane.b32.xlu0 %v3634, 105
        %v3637 = vpop.permute.xlu0 %3636
        %vm3639 = vcmask 388352
        %3640 = vst.msk [vmem:[%s244] sm:$0xf] %vm3639, %v3637
        %v3641 = vadd.f32 %v3617, %v276
        %3643 = vrot.lane.b32.xlu0 %v3641, 103
        %v3644 = vpop.permute.xlu0 %3643
        %vm3646 = vcmask 519552
        %3647 = vst.msk [vmem:[%s244] sm:$0xf] %vm3646, %v3644
        %v3648 = vadd.f32 %v3617, %v281
        %3650 = vrot.lane.b32.xlu0 %v3648, 101
        %v3651 = vpop.permute.xlu0 %3650
        %vm3653 = vcmask 650752
        %3654 = vst.msk [vmem:[%s244] sm:$0xf] %vm3653, %v3651
        %v3655 = vadd.f32 %v3617, %v286
        %3657 = vrot.lane.b32.xlu0 %v3655, 99
        %v3658 = vpop.permute.xlu0 %3657
        %vm3660 = vcmask 781952
        %3661 = vst.msk [vmem:[%s244] sm:$0xf] %vm3660, %v3658
        %v3662 = vadd.f32 %v3617, %v291
        %v3663 = vadd.f32 %v3618, %v291
        %v3666 = vcombine.low %v3662, %v3663
        %3667 = vrot.lane.b32.xlu0 %v3666, 97
        %v3668 = vpop.permute.xlu0 %3667
        %v3669 = vrot.slane %v3668, 4
        %vm3670 = vcmask 793600
        %v3671 = vsel %vm3670, %v3668, %v3669
        %vm3673 = vcmask 913152
        %3674 = vst.msk [vmem:[%s244] sm:$0xf] %vm3673, %v3671
        %v3675 = vadd.f32 %v3618, %v298
        %3677 = vrot.lane.b32.xlu0 %v3675, 95
        %v3678 = vpop.permute.xlu0 %3677
        %vm3680 = vcmask 1044352
        %3681 = vst.msk [vmem:[%s244] sm:$0xf] %vm3680, %v3678
        %v3682 = vadd.f32 %v3618, %v304
        %3684 = vrot.lane.b32.xlu0 %v3682, 93
        %v3685 = vpop.permute.xlu0 %3684
        %3687 = vst.msk [vmem:[%s244 + $0x4] sm:$0xf] %vm3625, %v3685
        %v3688 = vadd.f32 %v3618, %v309
        %3690 = vrot.lane.b32.xlu0 %v3688, 91
        %v3691 = vpop.permute.xlu0 %3690
        %3693 = vst.msk [vmem:[%s244 + $0x4] sm:$0xf] %vm3632, %v3691
        %v3694 = vadd.f32 %v3618, %v314
        %3696 = vrot.lane.b32.xlu0 %v3694, 89
        %v3697 = vpop.permute.xlu0 %3696
        %3699 = vst.msk [vmem:[%s244 + $0x4] sm:$0xf] %vm3639, %v3697
        %v3700 = vadd.f32 %v3618, %v319
        %3702 = vrot.lane.b32.xlu0 %v3700, 87
        %v3703 = vpop.permute.xlu0 %3702
        %3705 = vst.msk [vmem:[%s244 + $0x4] sm:$0xf] %vm3646, %v3703
        %v3706 = vadd.f32 %v3618, %v324
        %3708 = vrot.lane.b32.xlu0 %v3706, 85
        %v3709 = vpop.permute.xlu0 %3708
        %3711 = vst.msk [vmem:[%s244 + $0x4] sm:$0xf] %vm3653, %v3709
        %v3712 = vadd.f32 %v3618, %v329
        %v3713 = vadd.f32 %v3619, %v329
        %v3716 = vcombine.low %v3712, %v3713
        %3717 = vrot.lane.b32.xlu0 %v3716, 83
        %v3718 = vpop.permute.xlu0 %3717
        %v3719 = vrot.slane %v3718, 4
        %vm3720 = vcmask 678912
        %v3721 = vsel %vm3720, %v3718, %v3719
        %3723 = vst.msk [vmem:[%s244 + $0x4] sm:$0xf] %vm3660, %v3721
        %v3724 = vadd.f32 %v3619, %v336
        %3726 = vrot.lane.b32.xlu0 %v3724, 81
        %v3727 = vpop.permute.xlu0 %3726
        %3729 = vst.msk [vmem:[%s244 + $0x4] sm:$0xf] %vm3673, %v3727
        %v3730 = vadd.f32 %v3619, %v341
        %3732 = vrot.lane.b32.xlu0 %v3730, 79
        %v3733 = vpop.permute.xlu0 %3732
        %3735 = vst.msk [vmem:[%s244 + $0x4] sm:$0xf] %vm3680, %v3733
        %s3736 = sand.u32 %s159, 1
        %s3737 = scalar_lea.sflag [#allocation4], %s3736
        %s3738 = sand.u32 %s159, 1
        %s3739 = smul.addr %s3738, 8
        %s3740 = scalar_lea.vmem [#allocation3], %s3739
        // Predicated region
        $region45: #{tpu_custom_call.1} parent=43 // pred_check
          %p3741 = pneg %p169
        $region46: #{tpu_custom_call.1} parent=43 // pred_check_branch
          %3743 = sbr.rel (%p3741) target = $region48
        $region47: #{tpu_custom_call.1} parent=43 // pred_region
          %s3745 = ssub.s32 128, 128
          %3746 = vsyncadd %s3737, %s3745
          %s3747 = smul.addr %s20, 2
          %s3748 = smul.addr %s3747, 64
          %s3749 = scalar_lea.hbm %s6, %s3748
          %s3751 = sshll.u32 %s3740, 4
          %s3752 = int_to_ptr.vmem [resolvable:$true] %s3751
          %3754 = dma.vmem_to_hbm [thread:$0]  %s3752, 128, %s3749, %s3737
        $region48: #{tpu_custom_call.1} parent=43 // pred_fallthru
          _
      $region44: #{tpu_custom_call.1} parent=5 // pred_fallthru
        _
      %p3755 = scmp.le.s32.totalorder 2, %s15
      // Predicated region
      $region49: #{tpu_custom_call.1} parent=5 // pred_check
        %p3756 = pneg %p3755
      $region50: #{tpu_custom_call.1} parent=5 // pred_check_branch
        %3758 = sbr.rel (%p3756) target = $region52
      $region51: #{tpu_custom_call.1} parent=5 // pred_region
        %s3759 = ssub.s32 %s15, 2
        // Predicated region
        $region53: #{tpu_custom_call.1} parent=51 // pred_check
          %p3760 = pneg %p175
        $region54: #{tpu_custom_call.1} parent=51 // pred_check_branch
          %3762 = sbr.rel (%p3760) target = $region56
        $region55: #{tpu_custom_call.1} parent=51 // pred_region
          %s3763 = sand.u32 %s160, 1
          %s3764 = scalar_lea.sflag [#allocation4], %s3763
          %s3765 = sand.u32 %s160, 1
          %s3766 = smul.addr %s3765, 8
          %s3767 = scalar_lea.vmem [#allocation3], %s3766
          %3768 = dma.done %s3764, 128
        $region56: #{tpu_custom_call.1} parent=51 // pred_fallthru
          _
      $region52: #{tpu_custom_call.1} parent=5 // pred_fallthru
        _
    $region6: #{tpu_custom_call.1} parent=1 // loop_footer
      %s19 = sadd.s32 1, %s15
    $region7: #{tpu_custom_call.1} parent=1 // loop_footer_branch
      %14 = sbr.rel target = $region3
    $region8: #{tpu_custom_call.1} parent=1 // loop_exit
      _
    %3769 = vsyncpa [#allocation4], 1
    %s3770 = scalar_lea.sflag [#allocation4], 1
    %3771 = vsyncpa %s3770, 1

</llo_original>
